<compile_context>
chip_gen: v7x
topology: tpu7x:2x2x1
jax: 0.10.0
libtpu: 0.0.40
codegen_flags: <defaults>
</compile_context>

<pallas_src>
import numpy as np
import jax
import jax.numpy as jnp
from jax import lax
from jax.experimental import pallas as pl
from jax.experimental.pallas import tpu as pltpu


def _round_up(x, m):
    return ((x + m - 1) // m) * m


def rrdb_forward(x, conv_w, conv_b, prelu_a):
    """RRDB forward.

    x:       (N, C, H, W) f32
    conv_w:  (2*B, C, C, 3, 3) f32  PyTorch OIHW weights, layer order
             [rb1.conv1, rb1.conv2, rb2.conv1, rb2.conv2, ...]
    conv_b:  (2*B, C) f32           conv biases
    prelu_a: (B,) f32               one shared PReLU slope per residual block
    """
    N, C, H, W = x.shape
    L = conv_w.shape[0]
    B = L // 2
    Hp, Wp = H + 2, W + 2
    P = Hp * Wp
    P_pad = _round_up(P, 128)          # lane-dense, 128-aligned flattened plane
    C_pad = _round_up(C, 8)            # sublane-aligned channel count
    K9 = 9 * C_pad                     # stacked contraction dim (one matmul per conv)
    M = _round_up(Wp + 1, 128)         # margin >= max |tap shift|, lane-aligned
    S = P_pad + 2 * M                  # feature-scratch width

    # Tap offsets in flattened padded coordinates, k = ky*3 + kx, (dy,dx) = (ky-1,kx-1).
    taps = tuple(dy * Wp + dx for dy in (-1, 0, 1) for dx in (-1, 0, 1))

    # Weights: (L, C_out, C_in, 3, 3) -> stacked (L, C_pad, 9*C_pad) so that
    # w_stk[l, co, k*C_pad + ci] = conv_w[l, co, ci, ky, kx],  k = ky*3 + kx.
    w_t = jnp.transpose(conv_w, (0, 3, 4, 1, 2)).reshape(L, 9, C, C)
    w_t = jnp.pad(w_t, ((0, 0), (0, 0), (0, C_pad - C), (0, C_pad - C)))
    w_stk = jnp.transpose(w_t, (0, 2, 1, 3)).reshape(L, C_pad, K9).astype(jnp.float32)
    b = jnp.pad(conv_b, ((0, 0), (0, C_pad - C))).reshape(L, C_pad, 1).astype(jnp.float32)
    a = prelu_a.astype(jnp.float32)

    # Zero-pad spatially (conv padding=1) and channel-pad in the wrapper, flatten,
    # then pad lanes to P_pad.
    xp = jnp.pad(x, ((0, 0), (0, C_pad - C), (1, 1), (1, 1))).reshape(N, C_pad, P)
    xp = jnp.pad(xp, ((0, 0), (0, 0), (0, P_pad - P))).astype(jnp.float32)

    # Interior mask: 1 at real pixels of real channels, 0 on the padding ring,
    # the lane filler and the channel filler.  Broadcast once in the wrapper so the
    # kernel never re-broadcasts inside its loops.
    m2d = np.zeros((Hp, Wp), np.float32)
    m2d[1:H + 1, 1:W + 1] = 1.0
    mask_np = np.zeros((C_pad, P_pad), np.float32)
    mask_np[:C, :P] = m2d.reshape(-1)[None, :]
    mask = jnp.asarray(mask_np)

    def kernel(x_ref, w_ref, b_ref, mask_ref, a_ref, o_ref, feat_ref, stack_ref):
        interior = mask_ref[...]                           # (C_pad, P_pad)
        x0 = x_ref[...]                                    # (C_pad, P_pad), zero border

        # Zero the feature scratch once per step; the margins stay zero and only ever
        # feed border/filler lanes that are masked away afterwards.
        feat_ref[...] = jnp.zeros_like(feat_ref)

        def conv3x3(l):
            # Gather the 9 shifted windows of the zero-bordered feature plane
            # (which lives at feat_ref[:, M:M+P_pad]) into one stacked RHS, then do
            # a single MXU matmul with the stacked (C_pad, 9*C_pad) weight.
            for k in range(9):
                start = M + taps[k]
                stack_ref[k * C_pad:(k + 1) * C_pad, :] = (
                    feat_ref[:, start:start + P_pad])
            return jnp.dot(w_ref[l], stack_ref[...],
                           preferred_element_type=jnp.float32) + b_ref[l]

        h = x0
        for r in range(B):
            feat_ref[:, M:M + P_pad] = h * interior        # enforce zero padding ring
            t = conv3x3(2 * r)
            alpha = a_ref[r]                               # scalar from SMEM
            t = jnp.where(t >= 0, t, alpha * t)            # PReLU (shared alpha)
            feat_ref[:, M:M + P_pad] = t * interior
            t = conv3x3(2 * r + 1)
            h = h + t                                      # ResidualBlock skip
        o_ref[...] = (x0 + h).astype(o_ref.dtype)          # RRDB skip

    out_pad = pl.pallas_call(
        kernel,
        out_shape=jax.ShapeDtypeStruct((N, C_pad, P_pad), x.dtype),
        grid=(N,),
        in_specs=[
            pl.BlockSpec((None, C_pad, P_pad), lambda n: (n, 0, 0)),   # x (one sample)
            pl.BlockSpec((L, C_pad, K9), lambda n: (0, 0, 0)),         # stacked weights
            pl.BlockSpec((L, C_pad, 1), lambda n: (0, 0, 0)),          # conv biases
            pl.BlockSpec((C_pad, P_pad), lambda n: (0, 0)),            # interior mask
            pl.BlockSpec(memory_space=pltpu.SMEM),                     # PReLU slopes
        ],
        out_specs=pl.BlockSpec((None, C_pad, P_pad), lambda n: (n, 0, 0)),
        scratch_shapes=[
            pltpu.VMEM((C_pad, S), jnp.float32),     # zero-bordered feature plane
            pltpu.VMEM((K9, P_pad), jnp.float32),    # stacked shifted windows (im2col)
        ],
        compiler_params=pltpu.CompilerParams(
            dimension_semantics=("parallel",),
        ),
    )(xp, w_stk, b, mask, a)

    # Drop channel filler, lane filler and the zero-pad ring (pure layout plumbing).
    out = out_pad[:, :C, :P].reshape(N, C, Hp, Wp)[:, :, 1:H + 1, 1:W + 1]
    return out
    # TODO(synk): for large H*W / C where the padded plane + im2col stack exceed VMEM
    # (esp. v7x's 64 MiB), tile the spatial plane with 1-pixel halos per grid step.


def _rrdb_reference(x, conv_w, conv_b, prelu_a):
    """Pure-JAX reference matching the PyTorch RRDB forward."""
    B = conv_w.shape[0] // 2

    def conv(h, w, bias):
        y = lax.conv_general_dilated(
            h, w, window_strides=(1, 1), padding="SAME",
            dimension_numbers=("NCHW", "OIHW", "NCHW"),
            precision=lax.Precision.HIGHEST)
        return y + bias[None, :, None, None]

    h = x
    for r in range(B):
        t = conv(h, conv_w[2 * r], conv_b[2 * r])
        alpha = prelu_a[r]
        t = jnp.where(t >= 0, t, alpha * t)
        t = conv(t, conv_w[2 * r + 1], conv_b[2 * r + 1])
        h = h + t
    return x + h


if __name__ == "__main__":
    N, C, H, W = 2, 4, 16, 16
    B = 3                                   # num_dense_layers

    key = jax.random.PRNGKey(0)
    kx, kw, kb = jax.random.split(key, 3)
    x = jax.random.normal(kx, (N, C, H, W), dtype=jnp.float32)
    conv_w = 0.1 * jax.random.normal(kw, (2 * B, C, C, 3, 3), dtype=jnp.float32)
    conv_b = 0.1 * jax.random.normal(kb, (2 * B, C), dtype=jnp.float32)
    prelu_a = jnp.array([0.25, 0.20, 0.30], dtype=jnp.float32)

    out = rrdb_forward(x, conv_w, conv_b, prelu_a)
    out = jax.block_until_ready(out)

    ref = _rrdb_reference(x, conv_w, conv_b, prelu_a)
    assert out.shape == x.shape and out.dtype == x.dtype
    err = float(jnp.max(jnp.abs(out - ref)))
    assert jnp.allclose(out, ref, atol=2e-3, rtol=2e-3), err

    print("KERNEL_OK")
</pallas_src>

<mosaic_0001>
module attributes {stable_mosaic.version = 11 : i64} {
  func.func @kernel(%arg0: i32, %arg1: memref<1x8x384xf32, #tpu.memory_space<vmem>>, %arg2: memref<6x8x72xf32, #tpu.memory_space<vmem>>, %arg3: memref<6x8x1xf32, #tpu.memory_space<vmem>>, %arg4: memref<8x384xf32, #tpu.memory_space<vmem>>, %arg5: memref<3xf32, #tpu.memory_space<smem>>, %arg6: memref<1x8x384xf32, #tpu.memory_space<vmem>>, %arg7: memref<8x640xf32, #tpu.memory_space<vmem>>, %arg8: memref<72x384xf32, #tpu.memory_space<vmem>>) attributes {dimension_semantics = [#tpu.dimension_semantics<parallel>], iteration_bounds = array<i64: 2>, scalar_prefetch = 0 : i64, scratch_operands = 2 : i64, tpu.core_type = #tpu.core_type<tc>, window_params = [{transform_indices = @transform_0, window_bounds = array<i64: 1, 8, 384>}, {pipeline_mode = #tpu.pipeline_mode<synchronous>, transform_indices = @transform_1, window_bounds = array<i64: 6, 8, 72>}, {pipeline_mode = #tpu.pipeline_mode<synchronous>, transform_indices = @transform_2, window_bounds = array<i64: 6, 8, 1>}, {pipeline_mode = #tpu.pipeline_mode<synchronous>, transform_indices = @transform_3, window_bounds = array<i64: 8, 384>}, {transform_indices = @transform_4, window_bounds = array<i64: 3>}, {transform_indices = @transform_5, window_bounds = array<i64: 1, 8, 384>}]} {
    %c0 = arith.constant 0 : index
    %c0_0 = arith.constant 0 : index
    %0 = vector.load %arg4[%c0, %c0_0] : memref<8x384xf32, #tpu.memory_space<vmem>>, vector<8x384xf32>
    %c0_1 = arith.constant 0 : index
    %c0_2 = arith.constant 0 : index
    %c0_3 = arith.constant 0 : index
    %1 = vector.load %arg1[%c0_1, %c0_2, %c0_3] : memref<1x8x384xf32, #tpu.memory_space<vmem>>, vector<1x8x384xf32>
    %2 = vector.shape_cast %1 : vector<1x8x384xf32> to vector<8x384xf32>
    %cst = arith.constant 0.000000e+00 : f32
    %3 = vector.broadcast %cst : f32 to vector<8x640xf32>
    %c0_4 = arith.constant 0 : index
    %c0_5 = arith.constant 0 : index
    %4 = vector.load %arg7[%c0_4, %c0_5] : memref<8x640xf32, #tpu.memory_space<vmem>>, vector<8x640xf32>
    tpu.vector_store %arg7[%c0_4, %c0_5], %3 {strides = array<i32>} : memref<8x640xf32, #tpu.memory_space<vmem>>, vector<8x640xf32>,
    %5 = arith.mulf %2, %0 : vector<8x384xf32>
    %c0_6 = arith.constant 0 : index
    %c128 = arith.constant 128 : index
    %6 = vector.load %arg7[%c0_6, %c128] : memref<8x640xf32, #tpu.memory_space<vmem>>, vector<8x384xf32>
    tpu.vector_store %arg7[%c0_6, %c128], %5 {strides = array<i32>} : memref<8x640xf32, #tpu.memory_space<vmem>>, vector<8x384xf32>,
    %c0_7 = arith.constant 0 : index
    %c109 = arith.constant 109 : index
    %7 = vector.load %arg7[%c0_7, %c109] : memref<8x640xf32, #tpu.memory_space<vmem>>, vector<8x384xf32>
    %c0_8 = arith.constant 0 : index
    %c0_9 = arith.constant 0 : index
    %8 = vector.load %arg8[%c0_8, %c0_9] : memref<72x384xf32, #tpu.memory_space<vmem>>, vector<8x384xf32>
    tpu.vector_store %arg8[%c0_8, %c0_9], %7 {strides = array<i32>} : memref<72x384xf32, #tpu.memory_space<vmem>>, vector<8x384xf32>,
    %c0_10 = arith.constant 0 : index
    %c110 = arith.constant 110 : index
    %9 = vector.load %arg7[%c0_10, %c110] : memref<8x640xf32, #tpu.memory_space<vmem>>, vector<8x384xf32>
    %c8 = arith.constant 8 : index
    %c0_11 = arith.constant 0 : index
    %10 = vector.load %arg8[%c8, %c0_11] : memref<72x384xf32, #tpu.memory_space<vmem>>, vector<8x384xf32>
    tpu.vector_store %arg8[%c8, %c0_11], %9 {strides = array<i32>} : memref<72x384xf32, #tpu.memory_space<vmem>>, vector<8x384xf32>,
    %c0_12 = arith.constant 0 : index
    %c111 = arith.constant 111 : index
    %11 = vector.load %arg7[%c0_12, %c111] : memref<8x640xf32, #tpu.memory_space<vmem>>, vector<8x384xf32>
    %c16 = arith.constant 16 : index
    %c0_13 = arith.constant 0 : index
    %12 = vector.load %arg8[%c16, %c0_13] : memref<72x384xf32, #tpu.memory_space<vmem>>, vector<8x384xf32>
    tpu.vector_store %arg8[%c16, %c0_13], %11 {strides = array<i32>} : memref<72x384xf32, #tpu.memory_space<vmem>>, vector<8x384xf32>,
    %c0_14 = arith.constant 0 : index
    %c127 = arith.constant 127 : index
    %13 = vector.load %arg7[%c0_14, %c127] : memref<8x640xf32, #tpu.memory_space<vmem>>, vector<8x384xf32>
    %c24 = arith.constant 24 : index
    %c0_15 = arith.constant 0 : index
    %14 = vector.load %arg8[%c24, %c0_15] : memref<72x384xf32, #tpu.memory_space<vmem>>, vector<8x384xf32>
    tpu.vector_store %arg8[%c24, %c0_15], %13 {strides = array<i32>} : memref<72x384xf32, #tpu.memory_space<vmem>>, vector<8x384xf32>,
    %c0_16 = arith.constant 0 : index
    %c128_17 = arith.constant 128 : index
    %15 = vector.load %arg7[%c0_16, %c128_17] : memref<8x640xf32, #tpu.memory_space<vmem>>, vector<8x384xf32>
    %c32 = arith.constant 32 : index
    %c0_18 = arith.constant 0 : index
    %16 = vector.load %arg8[%c32, %c0_18] : memref<72x384xf32, #tpu.memory_space<vmem>>, vector<8x384xf32>
    tpu.vector_store %arg8[%c32, %c0_18], %15 {strides = array<i32>} : memref<72x384xf32, #tpu.memory_space<vmem>>, vector<8x384xf32>,
    %c0_19 = arith.constant 0 : index
    %c129 = arith.constant 129 : index
    %17 = vector.load %arg7[%c0_19, %c129] : memref<8x640xf32, #tpu.memory_space<vmem>>, vector<8x384xf32>
    %c40 = arith.constant 40 : index
    %c0_20 = arith.constant 0 : index
    %18 = vector.load %arg8[%c40, %c0_20] : memref<72x384xf32, #tpu.memory_space<vmem>>, vector<8x384xf32>
    tpu.vector_store %arg8[%c40, %c0_20], %17 {strides = array<i32>} : memref<72x384xf32, #tpu.memory_space<vmem>>, vector<8x384xf32>,
    %c0_21 = arith.constant 0 : index
    %c145 = arith.constant 145 : index
    %19 = vector.load %arg7[%c0_21, %c145] : memref<8x640xf32, #tpu.memory_space<vmem>>, vector<8x384xf32>
    %c48 = arith.constant 48 : index
    %c0_22 = arith.constant 0 : index
    %20 = vector.load %arg8[%c48, %c0_22] : memref<72x384xf32, #tpu.memory_space<vmem>>, vector<8x384xf32>
    tpu.vector_store %arg8[%c48, %c0_22], %19 {strides = array<i32>} : memref<72x384xf32, #tpu.memory_space<vmem>>, vector<8x384xf32>,
    %c0_23 = arith.constant 0 : index
    %c146 = arith.constant 146 : index
    %21 = vector.load %arg7[%c0_23, %c146] : memref<8x640xf32, #tpu.memory_space<vmem>>, vector<8x384xf32>
    %c56 = arith.constant 56 : index
    %c0_24 = arith.constant 0 : index
    %22 = vector.load %arg8[%c56, %c0_24] : memref<72x384xf32, #tpu.memory_space<vmem>>, vector<8x384xf32>
    tpu.vector_store %arg8[%c56, %c0_24], %21 {strides = array<i32>} : memref<72x384xf32, #tpu.memory_space<vmem>>, vector<8x384xf32>,
    %c0_25 = arith.constant 0 : index
    %c147 = arith.constant 147 : index
    %23 = vector.load %arg7[%c0_25, %c147] : memref<8x640xf32, #tpu.memory_space<vmem>>, vector<8x384xf32>
    %c64 = arith.constant 64 : index
    %c0_26 = arith.constant 0 : index
    %24 = vector.load %arg8[%c64, %c0_26] : memref<72x384xf32, #tpu.memory_space<vmem>>, vector<8x384xf32>
    tpu.vector_store %arg8[%c64, %c0_26], %23 {strides = array<i32>} : memref<72x384xf32, #tpu.memory_space<vmem>>, vector<8x384xf32>,
    %c0_27 = arith.constant 0 : index
    %c0_28 = arith.constant 0 : index
    %c0_29 = arith.constant 0 : index
    %25 = vector.load %arg2[%c0_27, %c0_28, %c0_29] : memref<6x8x72xf32, #tpu.memory_space<vmem>>, vector<1x8x72xf32>
    %26 = vector.shape_cast %25 : vector<1x8x72xf32> to vector<8x72xf32>
    %c0_30 = arith.constant 0 : index
    %c0_31 = arith.constant 0 : index
    %27 = vector.load %arg8[%c0_30, %c0_31] : memref<72x384xf32, #tpu.memory_space<vmem>>, vector<72x384xf32>
    %cst_32 = arith.constant dense<0.000000e+00> : vector<8x384xf32>
    %28 = tpu.matmul %26, %27, %cst_32 {dimension_numbers = #tpu.dot_dimension_numbers<[1], [0], [0], [1], [0, 0, 1, 1], [], []>} : vector<8x72xf32>, vector<72x384xf32>, vector<8x384xf32> -> vector<8x384xf32>
    %c0_33 = arith.constant 0 : index
    %c0_34 = arith.constant 0 : index
    %c0_35 = arith.constant 0 : index
    %29 = vector.load %arg3[%c0_33, %c0_34, %c0_35] : memref<6x8x1xf32, #tpu.memory_space<vmem>>, vector<1x8x1xf32>
    %30 = vector.shape_cast %29 : vector<1x8x1xf32> to vector<8x1xf32>
    %31 = vector.broadcast %30 : vector<8x1xf32> to vector<8x384xf32>
    %32 = arith.addf %28, %31 : vector<8x384xf32>
    %c0_36 = arith.constant 0 : index
    %33 = memref.load %arg5[%c0_36] : memref<3xf32, #tpu.memory_space<smem>>
    %cst_37 = arith.constant 0.000000e+00 : f32
    %34 = vector.broadcast %cst_37 : f32 to vector<8x384xf32>
    %35 = arith.cmpf oge, %32, %34 : vector<8x384xf32>
    %36 = vector.broadcast %33 : f32 to vector<8x384xf32>
    %37 = arith.mulf %36, %32 : vector<8x384xf32>
    %38 = arith.select %35, %32, %37 : vector<8x384xi1>, vector<8x384xf32>
    %39 = arith.mulf %38, %0 : vector<8x384xf32>
    %c0_38 = arith.constant 0 : index
    %c128_39 = arith.constant 128 : index
    %40 = vector.load %arg7[%c0_38, %c128_39] : memref<8x640xf32, #tpu.memory_space<vmem>>, vector<8x384xf32>
    tpu.vector_store %arg7[%c0_38, %c128_39], %39 {strides = array<i32>} : memref<8x640xf32, #tpu.memory_space<vmem>>, vector<8x384xf32>,
    %c0_40 = arith.constant 0 : index
    %c109_41 = arith.constant 109 : index
    %41 = vector.load %arg7[%c0_40, %c109_41] : memref<8x640xf32, #tpu.memory_space<vmem>>, vector<8x384xf32>
    %c0_42 = arith.constant 0 : index
    %c0_43 = arith.constant 0 : index
    %42 = vector.load %arg8[%c0_42, %c0_43] : memref<72x384xf32, #tpu.memory_space<vmem>>, vector<8x384xf32>
    tpu.vector_store %arg8[%c0_42, %c0_43], %41 {strides = array<i32>} : memref<72x384xf32, #tpu.memory_space<vmem>>, vector<8x384xf32>,
    %c0_44 = arith.constant 0 : index
    %c110_45 = arith.constant 110 : index
    %43 = vector.load %arg7[%c0_44, %c110_45] : memref<8x640xf32, #tpu.memory_space<vmem>>, vector<8x384xf32>
    %c8_46 = arith.constant 8 : index
    %c0_47 = arith.constant 0 : index
    %44 = vector.load %arg8[%c8_46, %c0_47] : memref<72x384xf32, #tpu.memory_space<vmem>>, vector<8x384xf32>
    tpu.vector_store %arg8[%c8_46, %c0_47], %43 {strides = array<i32>} : memref<72x384xf32, #tpu.memory_space<vmem>>, vector<8x384xf32>,
    %c0_48 = arith.constant 0 : index
    %c111_49 = arith.constant 111 : index
    %45 = vector.load %arg7[%c0_48, %c111_49] : memref<8x640xf32, #tpu.memory_space<vmem>>, vector<8x384xf32>
    %c16_50 = arith.constant 16 : index
    %c0_51 = arith.constant 0 : index
    %46 = vector.load %arg8[%c16_50, %c0_51] : memref<72x384xf32, #tpu.memory_space<vmem>>, vector<8x384xf32>
    tpu.vector_store %arg8[%c16_50, %c0_51], %45 {strides = array<i32>} : memref<72x384xf32, #tpu.memory_space<vmem>>, vector<8x384xf32>,
    %c0_52 = arith.constant 0 : index
    %c127_53 = arith.constant 127 : index
    %47 = vector.load %arg7[%c0_52, %c127_53] : memref<8x640xf32, #tpu.memory_space<vmem>>, vector<8x384xf32>
    %c24_54 = arith.constant 24 : index
    %c0_55 = arith.constant 0 : index
    %48 = vector.load %arg8[%c24_54, %c0_55] : memref<72x384xf32, #tpu.memory_space<vmem>>, vector<8x384xf32>
    tpu.vector_store %arg8[%c24_54, %c0_55], %47 {strides = array<i32>} : memref<72x384xf32, #tpu.memory_space<vmem>>, vector<8x384xf32>,
    %c0_56 = arith.constant 0 : index
    %c128_57 = arith.constant 128 : index
    %49 = vector.load %arg7[%c0_56, %c128_57] : memref<8x640xf32, #tpu.memory_space<vmem>>, vector<8x384xf32>
    %c32_58 = arith.constant 32 : index
    %c0_59 = arith.constant 0 : index
    %50 = vector.load %arg8[%c32_58, %c0_59] : memref<72x384xf32, #tpu.memory_space<vmem>>, vector<8x384xf32>
    tpu.vector_store %arg8[%c32_58, %c0_59], %49 {strides = array<i32>} : memref<72x384xf32, #tpu.memory_space<vmem>>, vector<8x384xf32>,
    %c0_60 = arith.constant 0 : index
    %c129_61 = arith.constant 129 : index
    %51 = vector.load %arg7[%c0_60, %c129_61] : memref<8x640xf32, #tpu.memory_space<vmem>>, vector<8x384xf32>
    %c40_62 = arith.constant 40 : index
    %c0_63 = arith.constant 0 : index
    %52 = vector.load %arg8[%c40_62, %c0_63] : memref<72x384xf32, #tpu.memory_space<vmem>>, vector<8x384xf32>
    tpu.vector_store %arg8[%c40_62, %c0_63], %51 {strides = array<i32>} : memref<72x384xf32, #tpu.memory_space<vmem>>, vector<8x384xf32>,
    %c0_64 = arith.constant 0 : index
    %c145_65 = arith.constant 145 : index
    %53 = vector.load %arg7[%c0_64, %c145_65] : memref<8x640xf32, #tpu.memory_space<vmem>>, vector<8x384xf32>
    %c48_66 = arith.constant 48 : index
    %c0_67 = arith.constant 0 : index
    %54 = vector.load %arg8[%c48_66, %c0_67] : memref<72x384xf32, #tpu.memory_space<vmem>>, vector<8x384xf32>
    tpu.vector_store %arg8[%c48_66, %c0_67], %53 {strides = array<i32>} : memref<72x384xf32, #tpu.memory_space<vmem>>, vector<8x384xf32>,
    %c0_68 = arith.constant 0 : index
    %c146_69 = arith.constant 146 : index
    %55 = vector.load %arg7[%c0_68, %c146_69] : memref<8x640xf32, #tpu.memory_space<vmem>>, vector<8x384xf32>
    %c56_70 = arith.constant 56 : index
    %c0_71 = arith.constant 0 : index
    %56 = vector.load %arg8[%c56_70, %c0_71] : memref<72x384xf32, #tpu.memory_space<vmem>>, vector<8x384xf32>
    tpu.vector_store %arg8[%c56_70, %c0_71], %55 {strides = array<i32>} : memref<72x384xf32, #tpu.memory_space<vmem>>, vector<8x384xf32>,
    %c0_72 = arith.constant 0 : index
    %c147_73 = arith.constant 147 : index
    %57 = vector.load %arg7[%c0_72, %c147_73] : memref<8x640xf32, #tpu.memory_space<vmem>>, vector<8x384xf32>
    %c64_74 = arith.constant 64 : index
    %c0_75 = arith.constant 0 : index
    %58 = vector.load %arg8[%c64_74, %c0_75] : memref<72x384xf32, #tpu.memory_space<vmem>>, vector<8x384xf32>
    tpu.vector_store %arg8[%c64_74, %c0_75], %57 {strides = array<i32>} : memref<72x384xf32, #tpu.memory_space<vmem>>, vector<8x384xf32>,
    %c1 = arith.constant 1 : index
    %c0_76 = arith.constant 0 : index
    %c0_77 = arith.constant 0 : index
    %59 = vector.load %arg2[%c1, %c0_76, %c0_77] : memref<6x8x72xf32, #tpu.memory_space<vmem>>, vector<1x8x72xf32>
    %60 = vector.shape_cast %59 : vector<1x8x72xf32> to vector<8x72xf32>
    %c0_78 = arith.constant 0 : index
    %c0_79 = arith.constant 0 : index
    %61 = vector.load %arg8[%c0_78, %c0_79] : memref<72x384xf32, #tpu.memory_space<vmem>>, vector<72x384xf32>
    %cst_80 = arith.constant dense<0.000000e+00> : vector<8x384xf32>
    %62 = tpu.matmul %60, %61, %cst_80 {dimension_numbers = #tpu.dot_dimension_numbers<[1], [0], [0], [1], [0, 0, 1, 1], [], []>} : vector<8x72xf32>, vector<72x384xf32>, vector<8x384xf32> -> vector<8x384xf32>
    %c1_81 = arith.constant 1 : index
    %c0_82 = arith.constant 0 : index
    %c0_83 = arith.constant 0 : index
    %63 = vector.load %arg3[%c1_81, %c0_82, %c0_83] : memref<6x8x1xf32, #tpu.memory_space<vmem>>, vector<1x8x1xf32>
    %64 = vector.shape_cast %63 : vector<1x8x1xf32> to vector<8x1xf32>
    %65 = vector.broadcast %64 : vector<8x1xf32> to vector<8x384xf32>
    %66 = arith.addf %62, %65 : vector<8x384xf32>
    %67 = arith.addf %2, %66 : vector<8x384xf32>
    %68 = arith.mulf %67, %0 : vector<8x384xf32>
    %c0_84 = arith.constant 0 : index
    %c128_85 = arith.constant 128 : index
    %69 = vector.load %arg7[%c0_84, %c128_85] : memref<8x640xf32, #tpu.memory_space<vmem>>, vector<8x384xf32>
    tpu.vector_store %arg7[%c0_84, %c128_85], %68 {strides = array<i32>} : memref<8x640xf32, #tpu.memory_space<vmem>>, vector<8x384xf32>,
    %c0_86 = arith.constant 0 : index
    %c109_87 = arith.constant 109 : index
    %70 = vector.load %arg7[%c0_86, %c109_87] : memref<8x640xf32, #tpu.memory_space<vmem>>, vector<8x384xf32>
    %c0_88 = arith.constant 0 : index
    %c0_89 = arith.constant 0 : index
    %71 = vector.load %arg8[%c0_88, %c0_89] : memref<72x384xf32, #tpu.memory_space<vmem>>, vector<8x384xf32>
    tpu.vector_store %arg8[%c0_88, %c0_89], %70 {strides = array<i32>} : memref<72x384xf32, #tpu.memory_space<vmem>>, vector<8x384xf32>,
    %c0_90 = arith.constant 0 : index
    %c110_91 = arith.constant 110 : index
    %72 = vector.load %arg7[%c0_90, %c110_91] : memref<8x640xf32, #tpu.memory_space<vmem>>, vector<8x384xf32>
    %c8_92 = arith.constant 8 : index
    %c0_93 = arith.constant 0 : index
    %73 = vector.load %arg8[%c8_92, %c0_93] : memref<72x384xf32, #tpu.memory_space<vmem>>, vector<8x384xf32>
    tpu.vector_store %arg8[%c8_92, %c0_93], %72 {strides = array<i32>} : memref<72x384xf32, #tpu.memory_space<vmem>>, vector<8x384xf32>,
    %c0_94 = arith.constant 0 : index
    %c111_95 = arith.constant 111 : index
    %74 = vector.load %arg7[%c0_94, %c111_95] : memref<8x640xf32, #tpu.memory_space<vmem>>, vector<8x384xf32>
    %c16_96 = arith.constant 16 : index
    %c0_97 = arith.constant 0 : index
    %75 = vector.load %arg8[%c16_96, %c0_97] : memref<72x384xf32, #tpu.memory_space<vmem>>, vector<8x384xf32>
    tpu.vector_store %arg8[%c16_96, %c0_97], %74 {strides = array<i32>} : memref<72x384xf32, #tpu.memory_space<vmem>>, vector<8x384xf32>,
    %c0_98 = arith.constant 0 : index
    %c127_99 = arith.constant 127 : index
    %76 = vector.load %arg7[%c0_98, %c127_99] : memref<8x640xf32, #tpu.memory_space<vmem>>, vector<8x384xf32>
    %c24_100 = arith.constant 24 : index
    %c0_101 = arith.constant 0 : index
    %77 = vector.load %arg8[%c24_100, %c0_101] : memref<72x384xf32, #tpu.memory_space<vmem>>, vector<8x384xf32>
    tpu.vector_store %arg8[%c24_100, %c0_101], %76 {strides = array<i32>} : memref<72x384xf32, #tpu.memory_space<vmem>>, vector<8x384xf32>,
    %c0_102 = arith.constant 0 : index
    %c128_103 = arith.constant 128 : index
    %78 = vector.load %arg7[%c0_102, %c128_103] : memref<8x640xf32, #tpu.memory_space<vmem>>, vector<8x384xf32>
    %c32_104 = arith.constant 32 : index
    %c0_105 = arith.constant 0 : index
    %79 = vector.load %arg8[%c32_104, %c0_105] : memref<72x384xf32, #tpu.memory_space<vmem>>, vector<8x384xf32>
    tpu.vector_store %arg8[%c32_104, %c0_105], %78 {strides = array<i32>} : memref<72x384xf32, #tpu.memory_space<vmem>>, vector<8x384xf32>,
    %c0_106 = arith.constant 0 : index
    %c129_107 = arith.constant 129 : index
    %80 = vector.load %arg7[%c0_106, %c129_107] : memref<8x640xf32, #tpu.memory_space<vmem>>, vector<8x384xf32>
    %c40_108 = arith.constant 40 : index
    %c0_109 = arith.constant 0 : index
    %81 = vector.load %arg8[%c40_108, %c0_109] : memref<72x384xf32, #tpu.memory_space<vmem>>, vector<8x384xf32>
    tpu.vector_store %arg8[%c40_108, %c0_109], %80 {strides = array<i32>} : memref<72x384xf32, #tpu.memory_space<vmem>>, vector<8x384xf32>,
    %c0_110 = arith.constant 0 : index
    %c145_111 = arith.constant 145 : index
    %82 = vector.load %arg7[%c0_110, %c145_111] : memref<8x640xf32, #tpu.memory_space<vmem>>, vector<8x384xf32>
    %c48_112 = arith.constant 48 : index
    %c0_113 = arith.constant 0 : index
    %83 = vector.load %arg8[%c48_112, %c0_113] : memref<72x384xf32, #tpu.memory_space<vmem>>, vector<8x384xf32>
    tpu.vector_store %arg8[%c48_112, %c0_113], %82 {strides = array<i32>} : memref<72x384xf32, #tpu.memory_space<vmem>>, vector<8x384xf32>,
    %c0_114 = arith.constant 0 : index
    %c146_115 = arith.constant 146 : index
    %84 = vector.load %arg7[%c0_114, %c146_115] : memref<8x640xf32, #tpu.memory_space<vmem>>, vector<8x384xf32>
    %c56_116 = arith.constant 56 : index
    %c0_117 = arith.constant 0 : index
    %85 = vector.load %arg8[%c56_116, %c0_117] : memref<72x384xf32, #tpu.memory_space<vmem>>, vector<8x384xf32>
    tpu.vector_store %arg8[%c56_116, %c0_117], %84 {strides = array<i32>} : memref<72x384xf32, #tpu.memory_space<vmem>>, vector<8x384xf32>,
    %c0_118 = arith.constant 0 : index
    %c147_119 = arith.constant 147 : index
    %86 = vector.load %arg7[%c0_118, %c147_119] : memref<8x640xf32, #tpu.memory_space<vmem>>, vector<8x384xf32>
    %c64_120 = arith.constant 64 : index
    %c0_121 = arith.constant 0 : index
    %87 = vector.load %arg8[%c64_120, %c0_121] : memref<72x384xf32, #tpu.memory_space<vmem>>, vector<8x384xf32>
    tpu.vector_store %arg8[%c64_120, %c0_121], %86 {strides = array<i32>} : memref<72x384xf32, #tpu.memory_space<vmem>>, vector<8x384xf32>,
    %c2 = arith.constant 2 : index
    %c0_122 = arith.constant 0 : index
    %c0_123 = arith.constant 0 : index
    %88 = vector.load %arg2[%c2, %c0_122, %c0_123] : memref<6x8x72xf32, #tpu.memory_space<vmem>>, vector<1x8x72xf32>
    %89 = vector.shape_cast %88 : vector<1x8x72xf32> to vector<8x72xf32>
    %c0_124 = arith.constant 0 : index
    %c0_125 = arith.constant 0 : index
    %90 = vector.load %arg8[%c0_124, %c0_125] : memref<72x384xf32, #tpu.memory_space<vmem>>, vector<72x384xf32>
    %cst_126 = arith.constant dense<0.000000e+00> : vector<8x384xf32>
    %91 = tpu.matmul %89, %90, %cst_126 {dimension_numbers = #tpu.dot_dimension_numbers<[1], [0], [0], [1], [0, 0, 1, 1], [], []>} : vector<8x72xf32>, vector<72x384xf32>, vector<8x384xf32> -> vector<8x384xf32>
    %c2_127 = arith.constant 2 : index
    %c0_128 = arith.constant 0 : index
    %c0_129 = arith.constant 0 : index
    %92 = vector.load %arg3[%c2_127, %c0_128, %c0_129] : memref<6x8x1xf32, #tpu.memory_space<vmem>>, vector<1x8x1xf32>
    %93 = vector.shape_cast %92 : vector<1x8x1xf32> to vector<8x1xf32>
    %94 = vector.broadcast %93 : vector<8x1xf32> to vector<8x384xf32>
    %95 = arith.addf %91, %94 : vector<8x384xf32>
    %c1_130 = arith.constant 1 : index
    %96 = memref.load %arg5[%c1_130] : memref<3xf32, #tpu.memory_space<smem>>
    %cst_131 = arith.constant 0.000000e+00 : f32
    %97 = vector.broadcast %cst_131 : f32 to vector<8x384xf32>
    %98 = arith.cmpf oge, %95, %97 : vector<8x384xf32>
    %99 = vector.broadcast %96 : f32 to vector<8x384xf32>
    %100 = arith.mulf %99, %95 : vector<8x384xf32>
    %101 = arith.select %98, %95, %100 : vector<8x384xi1>, vector<8x384xf32>
    %102 = arith.mulf %101, %0 : vector<8x384xf32>
    %c0_132 = arith.constant 0 : index
    %c128_133 = arith.constant 128 : index
    %103 = vector.load %arg7[%c0_132, %c128_133] : memref<8x640xf32, #tpu.memory_space<vmem>>, vector<8x384xf32>
    tpu.vector_store %arg7[%c0_132, %c128_133], %102 {strides = array<i32>} : memref<8x640xf32, #tpu.memory_space<vmem>>, vector<8x384xf32>,
    %c0_134 = arith.constant 0 : index
    %c109_135 = arith.constant 109 : index
    %104 = vector.load %arg7[%c0_134, %c109_135] : memref<8x640xf32, #tpu.memory_space<vmem>>, vector<8x384xf32>
    %c0_136 = arith.constant 0 : index
    %c0_137 = arith.constant 0 : index
    %105 = vector.load %arg8[%c0_136, %c0_137] : memref<72x384xf32, #tpu.memory_space<vmem>>, vector<8x384xf32>
    tpu.vector_store %arg8[%c0_136, %c0_137], %104 {strides = array<i32>} : memref<72x384xf32, #tpu.memory_space<vmem>>, vector<8x384xf32>,
    %c0_138 = arith.constant 0 : index
    %c110_139 = arith.constant 110 : index
    %106 = vector.load %arg7[%c0_138, %c110_139] : memref<8x640xf32, #tpu.memory_space<vmem>>, vector<8x384xf32>
    %c8_140 = arith.constant 8 : index
    %c0_141 = arith.constant 0 : index
    %107 = vector.load %arg8[%c8_140, %c0_141] : memref<72x384xf32, #tpu.memory_space<vmem>>, vector<8x384xf32>
    tpu.vector_store %arg8[%c8_140, %c0_141], %106 {strides = array<i32>} : memref<72x384xf32, #tpu.memory_space<vmem>>, vector<8x384xf32>,
    %c0_142 = arith.constant 0 : index
    %c111_143 = arith.constant 111 : index
    %108 = vector.load %arg7[%c0_142, %c111_143] : memref<8x640xf32, #tpu.memory_space<vmem>>, vector<8x384xf32>
    %c16_144 = arith.constant 16 : index
    %c0_145 = arith.constant 0 : index
    %109 = vector.load %arg8[%c16_144, %c0_145] : memref<72x384xf32, #tpu.memory_space<vmem>>, vector<8x384xf32>
    tpu.vector_store %arg8[%c16_144, %c0_145], %108 {strides = array<i32>} : memref<72x384xf32, #tpu.memory_space<vmem>>, vector<8x384xf32>,
    %c0_146 = arith.constant 0 : index
    %c127_147 = arith.constant 127 : index
    %110 = vector.load %arg7[%c0_146, %c127_147] : memref<8x640xf32, #tpu.memory_space<vmem>>, vector<8x384xf32>
    %c24_148 = arith.constant 24 : index
    %c0_149 = arith.constant 0 : index
    %111 = vector.load %arg8[%c24_148, %c0_149] : memref<72x384xf32, #tpu.memory_space<vmem>>, vector<8x384xf32>
    tpu.vector_store %arg8[%c24_148, %c0_149], %110 {strides = array<i32>} : memref<72x384xf32, #tpu.memory_space<vmem>>, vector<8x384xf32>,
    %c0_150 = arith.constant 0 : index
    %c128_151 = arith.constant 128 : index
    %112 = vector.load %arg7[%c0_150, %c128_151] : memref<8x640xf32, #tpu.memory_space<vmem>>, vector<8x384xf32>
    %c32_152 = arith.constant 32 : index
    %c0_153 = arith.constant 0 : index
    %113 = vector.load %arg8[%c32_152, %c0_153] : memref<72x384xf32, #tpu.memory_space<vmem>>, vector<8x384xf32>
    tpu.vector_store %arg8[%c32_152, %c0_153], %112 {strides = array<i32>} : memref<72x384xf32, #tpu.memory_space<vmem>>, vector<8x384xf32>,
    %c0_154 = arith.constant 0 : index
    %c129_155 = arith.constant 129 : index
    %114 = vector.load %arg7[%c0_154, %c129_155] : memref<8x640xf32, #tpu.memory_space<vmem>>, vector<8x384xf32>
    %c40_156 = arith.constant 40 : index
    %c0_157 = arith.constant 0 : index
    %115 = vector.load %arg8[%c40_156, %c0_157] : memref<72x384xf32, #tpu.memory_space<vmem>>, vector<8x384xf32>
    tpu.vector_store %arg8[%c40_156, %c0_157], %114 {strides = array<i32>} : memref<72x384xf32, #tpu.memory_space<vmem>>, vector<8x384xf32>,
    %c0_158 = arith.constant 0 : index
    %c145_159 = arith.constant 145 : index
    %116 = vector.load %arg7[%c0_158, %c145_159] : memref<8x640xf32, #tpu.memory_space<vmem>>, vector<8x384xf32>
    %c48_160 = arith.constant 48 : index
    %c0_161 = arith.constant 0 : index
    %117 = vector.load %arg8[%c48_160, %c0_161] : memref<72x384xf32, #tpu.memory_space<vmem>>, vector<8x384xf32>
    tpu.vector_store %arg8[%c48_160, %c0_161], %116 {strides = array<i32>} : memref<72x384xf32, #tpu.memory_space<vmem>>, vector<8x384xf32>,
    %c0_162 = arith.constant 0 : index
    %c146_163 = arith.constant 146 : index
    %118 = vector.load %arg7[%c0_162, %c146_163] : memref<8x640xf32, #tpu.memory_space<vmem>>, vector<8x384xf32>
    %c56_164 = arith.constant 56 : index
    %c0_165 = arith.constant 0 : index
    %119 = vector.load %arg8[%c56_164, %c0_165] : memref<72x384xf32, #tpu.memory_space<vmem>>, vector<8x384xf32>
    tpu.vector_store %arg8[%c56_164, %c0_165], %118 {strides = array<i32>} : memref<72x384xf32, #tpu.memory_space<vmem>>, vector<8x384xf32>,
    %c0_166 = arith.constant 0 : index
    %c147_167 = arith.constant 147 : index
    %120 = vector.load %arg7[%c0_166, %c147_167] : memref<8x640xf32, #tpu.memory_space<vmem>>, vector<8x384xf32>
    %c64_168 = arith.constant 64 : index
    %c0_169 = arith.constant 0 : index
    %121 = vector.load %arg8[%c64_168, %c0_169] : memref<72x384xf32, #tpu.memory_space<vmem>>, vector<8x384xf32>
    tpu.vector_store %arg8[%c64_168, %c0_169], %120 {strides = array<i32>} : memref<72x384xf32, #tpu.memory_space<vmem>>, vector<8x384xf32>,
    %c3 = arith.constant 3 : index
    %c0_170 = arith.constant 0 : index
    %c0_171 = arith.constant 0 : index
    %122 = vector.load %arg2[%c3, %c0_170, %c0_171] : memref<6x8x72xf32, #tpu.memory_space<vmem>>, vector<1x8x72xf32>
    %123 = vector.shape_cast %122 : vector<1x8x72xf32> to vector<8x72xf32>
    %c0_172 = arith.constant 0 : index
    %c0_173 = arith.constant 0 : index
    %124 = vector.load %arg8[%c0_172, %c0_173] : memref<72x384xf32, #tpu.memory_space<vmem>>, vector<72x384xf32>
    %cst_174 = arith.constant dense<0.000000e+00> : vector<8x384xf32>
    %125 = tpu.matmul %123, %124, %cst_174 {dimension_numbers = #tpu.dot_dimension_numbers<[1], [0], [0], [1], [0, 0, 1, 1], [], []>} : vector<8x72xf32>, vector<72x384xf32>, vector<8x384xf32> -> vector<8x384xf32>
    %c3_175 = arith.constant 3 : index
    %c0_176 = arith.constant 0 : index
    %c0_177 = arith.constant 0 : index
    %126 = vector.load %arg3[%c3_175, %c0_176, %c0_177] : memref<6x8x1xf32, #tpu.memory_space<vmem>>, vector<1x8x1xf32>
    %127 = vector.shape_cast %126 : vector<1x8x1xf32> to vector<8x1xf32>
    %128 = vector.broadcast %127 : vector<8x1xf32> to vector<8x384xf32>
    %129 = arith.addf %125, %128 : vector<8x384xf32>
    %130 = arith.addf %67, %129 : vector<8x384xf32>
    %131 = arith.mulf %130, %0 : vector<8x384xf32>
    %c0_178 = arith.constant 0 : index
    %c128_179 = arith.constant 128 : index
    %132 = vector.load %arg7[%c0_178, %c128_179] : memref<8x640xf32, #tpu.memory_space<vmem>>, vector<8x384xf32>
    tpu.vector_store %arg7[%c0_178, %c128_179], %131 {strides = array<i32>} : memref<8x640xf32, #tpu.memory_space<vmem>>, vector<8x384xf32>,
    %c0_180 = arith.constant 0 : index
    %c109_181 = arith.constant 109 : index
    %133 = vector.load %arg7[%c0_180, %c109_181] : memref<8x640xf32, #tpu.memory_space<vmem>>, vector<8x384xf32>
    %c0_182 = arith.constant 0 : index
    %c0_183 = arith.constant 0 : index
    %134 = vector.load %arg8[%c0_182, %c0_183] : memref<72x384xf32, #tpu.memory_space<vmem>>, vector<8x384xf32>
    tpu.vector_store %arg8[%c0_182, %c0_183], %133 {strides = array<i32>} : memref<72x384xf32, #tpu.memory_space<vmem>>, vector<8x384xf32>,
    %c0_184 = arith.constant 0 : index
    %c110_185 = arith.constant 110 : index
    %135 = vector.load %arg7[%c0_184, %c110_185] : memref<8x640xf32, #tpu.memory_space<vmem>>, vector<8x384xf32>
    %c8_186 = arith.constant 8 : index
    %c0_187 = arith.constant 0 : index
    %136 = vector.load %arg8[%c8_186, %c0_187] : memref<72x384xf32, #tpu.memory_space<vmem>>, vector<8x384xf32>
    tpu.vector_store %arg8[%c8_186, %c0_187], %135 {strides = array<i32>} : memref<72x384xf32, #tpu.memory_space<vmem>>, vector<8x384xf32>,
    %c0_188 = arith.constant 0 : index
    %c111_189 = arith.constant 111 : index
    %137 = vector.load %arg7[%c0_188, %c111_189] : memref<8x640xf32, #tpu.memory_space<vmem>>, vector<8x384xf32>
    %c16_190 = arith.constant 16 : index
    %c0_191 = arith.constant 0 : index
    %138 = vector.load %arg8[%c16_190, %c0_191] : memref<72x384xf32, #tpu.memory_space<vmem>>, vector<8x384xf32>
    tpu.vector_store %arg8[%c16_190, %c0_191], %137 {strides = array<i32>} : memref<72x384xf32, #tpu.memory_space<vmem>>, vector<8x384xf32>,
    %c0_192 = arith.constant 0 : index
    %c127_193 = arith.constant 127 : index
    %139 = vector.load %arg7[%c0_192, %c127_193] : memref<8x640xf32, #tpu.memory_space<vmem>>, vector<8x384xf32>
    %c24_194 = arith.constant 24 : index
    %c0_195 = arith.constant 0 : index
    %140 = vector.load %arg8[%c24_194, %c0_195] : memref<72x384xf32, #tpu.memory_space<vmem>>, vector<8x384xf32>
    tpu.vector_store %arg8[%c24_194, %c0_195], %139 {strides = array<i32>} : memref<72x384xf32, #tpu.memory_space<vmem>>, vector<8x384xf32>,
    %c0_196 = arith.constant 0 : index
    %c128_197 = arith.constant 128 : index
    %141 = vector.load %arg7[%c0_196, %c128_197] : memref<8x640xf32, #tpu.memory_space<vmem>>, vector<8x384xf32>
    %c32_198 = arith.constant 32 : index
    %c0_199 = arith.constant 0 : index
    %142 = vector.load %arg8[%c32_198, %c0_199] : memref<72x384xf32, #tpu.memory_space<vmem>>, vector<8x384xf32>
    tpu.vector_store %arg8[%c32_198, %c0_199], %141 {strides = array<i32>} : memref<72x384xf32, #tpu.memory_space<vmem>>, vector<8x384xf32>,
    %c0_200 = arith.constant 0 : index
    %c129_201 = arith.constant 129 : index
    %143 = vector.load %arg7[%c0_200, %c129_201] : memref<8x640xf32, #tpu.memory_space<vmem>>, vector<8x384xf32>
    %c40_202 = arith.constant 40 : index
    %c0_203 = arith.constant 0 : index
    %144 = vector.load %arg8[%c40_202, %c0_203] : memref<72x384xf32, #tpu.memory_space<vmem>>, vector<8x384xf32>
    tpu.vector_store %arg8[%c40_202, %c0_203], %143 {strides = array<i32>} : memref<72x384xf32, #tpu.memory_space<vmem>>, vector<8x384xf32>,
    %c0_204 = arith.constant 0 : index
    %c145_205 = arith.constant 145 : index
    %145 = vector.load %arg7[%c0_204, %c145_205] : memref<8x640xf32, #tpu.memory_space<vmem>>, vector<8x384xf32>
    %c48_206 = arith.constant 48 : index
    %c0_207 = arith.constant 0 : index
    %146 = vector.load %arg8[%c48_206, %c0_207] : memref<72x384xf32, #tpu.memory_space<vmem>>, vector<8x384xf32>
    tpu.vector_store %arg8[%c48_206, %c0_207], %145 {strides = array<i32>} : memref<72x384xf32, #tpu.memory_space<vmem>>, vector<8x384xf32>,
    %c0_208 = arith.constant 0 : index
    %c146_209 = arith.constant 146 : index
    %147 = vector.load %arg7[%c0_208, %c146_209] : memref<8x640xf32, #tpu.memory_space<vmem>>, vector<8x384xf32>
    %c56_210 = arith.constant 56 : index
    %c0_211 = arith.constant 0 : index
    %148 = vector.load %arg8[%c56_210, %c0_211] : memref<72x384xf32, #tpu.memory_space<vmem>>, vector<8x384xf32>
    tpu.vector_store %arg8[%c56_210, %c0_211], %147 {strides = array<i32>} : memref<72x384xf32, #tpu.memory_space<vmem>>, vector<8x384xf32>,
    %c0_212 = arith.constant 0 : index
    %c147_213 = arith.constant 147 : index
    %149 = vector.load %arg7[%c0_212, %c147_213] : memref<8x640xf32, #tpu.memory_space<vmem>>, vector<8x384xf32>
    %c64_214 = arith.constant 64 : index
    %c0_215 = arith.constant 0 : index
    %150 = vector.load %arg8[%c64_214, %c0_215] : memref<72x384xf32, #tpu.memory_space<vmem>>, vector<8x384xf32>
    tpu.vector_store %arg8[%c64_214, %c0_215], %149 {strides = array<i32>} : memref<72x384xf32, #tpu.memory_space<vmem>>, vector<8x384xf32>,
    %c4 = arith.constant 4 : index
    %c0_216 = arith.constant 0 : index
    %c0_217 = arith.constant 0 : index
    %151 = vector.load %arg2[%c4, %c0_216, %c0_217] : memref<6x8x72xf32, #tpu.memory_space<vmem>>, vector<1x8x72xf32>
    %152 = vector.shape_cast %151 : vector<1x8x72xf32> to vector<8x72xf32>
    %c0_218 = arith.constant 0 : index
    %c0_219 = arith.constant 0 : index
    %153 = vector.load %arg8[%c0_218, %c0_219] : memref<72x384xf32, #tpu.memory_space<vmem>>, vector<72x384xf32>
    %cst_220 = arith.constant dense<0.000000e+00> : vector<8x384xf32>
    %154 = tpu.matmul %152, %153, %cst_220 {dimension_numbers = #tpu.dot_dimension_numbers<[1], [0], [0], [1], [0, 0, 1, 1], [], []>} : vector<8x72xf32>, vector<72x384xf32>, vector<8x384xf32> -> vector<8x384xf32>
    %c4_221 = arith.constant 4 : index
    %c0_222 = arith.constant 0 : index
    %c0_223 = arith.constant 0 : index
    %155 = vector.load %arg3[%c4_221, %c0_222, %c0_223] : memref<6x8x1xf32, #tpu.memory_space<vmem>>, vector<1x8x1xf32>
    %156 = vector.shape_cast %155 : vector<1x8x1xf32> to vector<8x1xf32>
    %157 = vector.broadcast %156 : vector<8x1xf32> to vector<8x384xf32>
    %158 = arith.addf %154, %157 : vector<8x384xf32>
    %c2_224 = arith.constant 2 : index
    %159 = memref.load %arg5[%c2_224] : memref<3xf32, #tpu.memory_space<smem>>
    %cst_225 = arith.constant 0.000000e+00 : f32
    %160 = vector.broadcast %cst_225 : f32 to vector<8x384xf32>
    %161 = arith.cmpf oge, %158, %160 : vector<8x384xf32>
    %162 = vector.broadcast %159 : f32 to vector<8x384xf32>
    %163 = arith.mulf %162, %158 : vector<8x384xf32>
    %164 = arith.select %161, %158, %163 : vector<8x384xi1>, vector<8x384xf32>
    %165 = arith.mulf %164, %0 : vector<8x384xf32>
    %c0_226 = arith.constant 0 : index
    %c128_227 = arith.constant 128 : index
    %166 = vector.load %arg7[%c0_226, %c128_227] : memref<8x640xf32, #tpu.memory_space<vmem>>, vector<8x384xf32>
    tpu.vector_store %arg7[%c0_226, %c128_227], %165 {strides = array<i32>} : memref<8x640xf32, #tpu.memory_space<vmem>>, vector<8x384xf32>,
    %c0_228 = arith.constant 0 : index
    %c109_229 = arith.constant 109 : index
    %167 = vector.load %arg7[%c0_228, %c109_229] : memref<8x640xf32, #tpu.memory_space<vmem>>, vector<8x384xf32>
    %c0_230 = arith.constant 0 : index
    %c0_231 = arith.constant 0 : index
    %168 = vector.load %arg8[%c0_230, %c0_231] : memref<72x384xf32, #tpu.memory_space<vmem>>, vector<8x384xf32>
    tpu.vector_store %arg8[%c0_230, %c0_231], %167 {strides = array<i32>} : memref<72x384xf32, #tpu.memory_space<vmem>>, vector<8x384xf32>,
    %c0_232 = arith.constant 0 : index
    %c110_233 = arith.constant 110 : index
    %169 = vector.load %arg7[%c0_232, %c110_233] : memref<8x640xf32, #tpu.memory_space<vmem>>, vector<8x384xf32>
    %c8_234 = arith.constant 8 : index
    %c0_235 = arith.constant 0 : index
    %170 = vector.load %arg8[%c8_234, %c0_235] : memref<72x384xf32, #tpu.memory_space<vmem>>, vector<8x384xf32>
    tpu.vector_store %arg8[%c8_234, %c0_235], %169 {strides = array<i32>} : memref<72x384xf32, #tpu.memory_space<vmem>>, vector<8x384xf32>,
    %c0_236 = arith.constant 0 : index
    %c111_237 = arith.constant 111 : index
    %171 = vector.load %arg7[%c0_236, %c111_237] : memref<8x640xf32, #tpu.memory_space<vmem>>, vector<8x384xf32>
    %c16_238 = arith.constant 16 : index
    %c0_239 = arith.constant 0 : index
    %172 = vector.load %arg8[%c16_238, %c0_239] : memref<72x384xf32, #tpu.memory_space<vmem>>, vector<8x384xf32>
    tpu.vector_store %arg8[%c16_238, %c0_239], %171 {strides = array<i32>} : memref<72x384xf32, #tpu.memory_space<vmem>>, vector<8x384xf32>,
    %c0_240 = arith.constant 0 : index
    %c127_241 = arith.constant 127 : index
    %173 = vector.load %arg7[%c0_240, %c127_241] : memref<8x640xf32, #tpu.memory_space<vmem>>, vector<8x384xf32>
    %c24_242 = arith.constant 24 : index
    %c0_243 = arith.constant 0 : index
    %174 = vector.load %arg8[%c24_242, %c0_243] : memref<72x384xf32, #tpu.memory_space<vmem>>, vector<8x384xf32>
    tpu.vector_store %arg8[%c24_242, %c0_243], %173 {strides = array<i32>} : memref<72x384xf32, #tpu.memory_space<vmem>>, vector<8x384xf32>,
    %c0_244 = arith.constant 0 : index
    %c128_245 = arith.constant 128 : index
    %175 = vector.load %arg7[%c0_244, %c128_245] : memref<8x640xf32, #tpu.memory_space<vmem>>, vector<8x384xf32>
    %c32_246 = arith.constant 32 : index
    %c0_247 = arith.constant 0 : index
    %176 = vector.load %arg8[%c32_246, %c0_247] : memref<72x384xf32, #tpu.memory_space<vmem>>, vector<8x384xf32>
    tpu.vector_store %arg8[%c32_246, %c0_247], %175 {strides = array<i32>} : memref<72x384xf32, #tpu.memory_space<vmem>>, vector<8x384xf32>,
    %c0_248 = arith.constant 0 : index
    %c129_249 = arith.constant 129 : index
    %177 = vector.load %arg7[%c0_248, %c129_249] : memref<8x640xf32, #tpu.memory_space<vmem>>, vector<8x384xf32>
    %c40_250 = arith.constant 40 : index
    %c0_251 = arith.constant 0 : index
    %178 = vector.load %arg8[%c40_250, %c0_251] : memref<72x384xf32, #tpu.memory_space<vmem>>, vector<8x384xf32>
    tpu.vector_store %arg8[%c40_250, %c0_251], %177 {strides = array<i32>} : memref<72x384xf32, #tpu.memory_space<vmem>>, vector<8x384xf32>,
    %c0_252 = arith.constant 0 : index
    %c145_253 = arith.constant 145 : index
    %179 = vector.load %arg7[%c0_252, %c145_253] : memref<8x640xf32, #tpu.memory_space<vmem>>, vector<8x384xf32>
    %c48_254 = arith.constant 48 : index
    %c0_255 = arith.constant 0 : index
    %180 = vector.load %arg8[%c48_254, %c0_255] : memref<72x384xf32, #tpu.memory_space<vmem>>, vector<8x384xf32>
    tpu.vector_store %arg8[%c48_254, %c0_255], %179 {strides = array<i32>} : memref<72x384xf32, #tpu.memory_space<vmem>>, vector<8x384xf32>,
    %c0_256 = arith.constant 0 : index
    %c146_257 = arith.constant 146 : index
    %181 = vector.load %arg7[%c0_256, %c146_257] : memref<8x640xf32, #tpu.memory_space<vmem>>, vector<8x384xf32>
    %c56_258 = arith.constant 56 : index
    %c0_259 = arith.constant 0 : index
    %182 = vector.load %arg8[%c56_258, %c0_259] : memref<72x384xf32, #tpu.memory_space<vmem>>, vector<8x384xf32>
    tpu.vector_store %arg8[%c56_258, %c0_259], %181 {strides = array<i32>} : memref<72x384xf32, #tpu.memory_space<vmem>>, vector<8x384xf32>,
    %c0_260 = arith.constant 0 : index
    %c147_261 = arith.constant 147 : index
    %183 = vector.load %arg7[%c0_260, %c147_261] : memref<8x640xf32, #tpu.memory_space<vmem>>, vector<8x384xf32>
    %c64_262 = arith.constant 64 : index
    %c0_263 = arith.constant 0 : index
    %184 = vector.load %arg8[%c64_262, %c0_263] : memref<72x384xf32, #tpu.memory_space<vmem>>, vector<8x384xf32>
    tpu.vector_store %arg8[%c64_262, %c0_263], %183 {strides = array<i32>} : memref<72x384xf32, #tpu.memory_space<vmem>>, vector<8x384xf32>,
    %c5 = arith.constant 5 : index
    %c0_264 = arith.constant 0 : index
    %c0_265 = arith.constant 0 : index
    %185 = vector.load %arg2[%c5, %c0_264, %c0_265] : memref<6x8x72xf32, #tpu.memory_space<vmem>>, vector<1x8x72xf32>
    %186 = vector.shape_cast %185 : vector<1x8x72xf32> to vector<8x72xf32>
    %c0_266 = arith.constant 0 : index
    %c0_267 = arith.constant 0 : index
    %187 = vector.load %arg8[%c0_266, %c0_267] : memref<72x384xf32, #tpu.memory_space<vmem>>, vector<72x384xf32>
    %cst_268 = arith.constant dense<0.000000e+00> : vector<8x384xf32>
    %188 = tpu.matmul %186, %187, %cst_268 {dimension_numbers = #tpu.dot_dimension_numbers<[1], [0], [0], [1], [0, 0, 1, 1], [], []>} : vector<8x72xf32>, vector<72x384xf32>, vector<8x384xf32> -> vector<8x384xf32>
    %c5_269 = arith.constant 5 : index
    %c0_270 = arith.constant 0 : index
    %c0_271 = arith.constant 0 : index
    %189 = vector.load %arg3[%c5_269, %c0_270, %c0_271] : memref<6x8x1xf32, #tpu.memory_space<vmem>>, vector<1x8x1xf32>
    %190 = vector.shape_cast %189 : vector<1x8x1xf32> to vector<8x1xf32>
    %191 = vector.broadcast %190 : vector<8x1xf32> to vector<8x384xf32>
    %192 = arith.addf %188, %191 : vector<8x384xf32>
    %193 = arith.addf %130, %192 : vector<8x384xf32>
    %194 = arith.addf %2, %193 : vector<8x384xf32>
    %c0_272 = arith.constant 0 : index
    %c0_273 = arith.constant 0 : index
    %c0_274 = arith.constant 0 : index
    %195 = vector.load %arg6[%c0_272, %c0_273, %c0_274] : memref<1x8x384xf32, #tpu.memory_space<vmem>>, vector<1x8x384xf32>
    %196 = vector.shape_cast %195 : vector<1x8x384xf32> to vector<8x384xf32>
    %197 = vector.shape_cast %194 : vector<8x384xf32> to vector<1x8x384xf32>
    tpu.vector_store %arg6[%c0_272, %c0_273, %c0_274], %197 {strides = array<i32>} : memref<1x8x384xf32, #tpu.memory_space<vmem>>, vector<1x8x384xf32>,
    return
  }
  func.func @transform_0(%arg0: i32) -> (i32, i32, i32) {
    %c0_i32 = arith.constant 0 : i32
    %c0_i32_0 = arith.constant 0 : i32
    %c0_i32_1 = arith.constant 0 : i32
    return %arg0, %c0_i32, %c0_i32_0 : i32, i32, i32
  }
  func.func @transform_1(%arg0: i32) -> (i32, i32, i32) {
    %c0_i32 = arith.constant 0 : i32
    %c0_i32_0 = arith.constant 0 : i32
    %c0_i32_1 = arith.constant 0 : i32
    %c0_i32_2 = arith.constant 0 : i32
    return %c0_i32, %c0_i32_0, %c0_i32_1 : i32, i32, i32
  }
  func.func @transform_2(%arg0: i32) -> (i32, i32, i32) {
    %c0_i32 = arith.constant 0 : i32
    %c0_i32_0 = arith.constant 0 : i32
    %c0_i32_1 = arith.constant 0 : i32
    %c0_i32_2 = arith.constant 0 : i32
    return %c0_i32, %c0_i32_0, %c0_i32_1 : i32, i32, i32
  }
  func.func @transform_3(%arg0: i32) -> (i32, i32) {
    %c0_i32 = arith.constant 0 : i32
    %c0_i32_0 = arith.constant 0 : i32
    %c0_i32_1 = arith.constant 0 : i32
    return %c0_i32, %c0_i32_0 : i32, i32
  }
  func.func @transform_4(%arg0: i32) -> i32 {
    %c0_i32 = arith.constant 0 : i32
    %c0_i32_0 = arith.constant 0 : i32
    return %c0_i32 : i32
  }
  func.func @transform_5(%arg0: i32) -> (i32, i32, i32) {
    %c0_i32 = arith.constant 0 : i32
    %c0_i32_0 = arith.constant 0 : i32
    %c0_i32_1 = arith.constant 0 : i32
    return %arg0, %c0_i32, %c0_i32_0 : i32, i32, i32
  }
}

</mosaic_0001>

<llo_original>
// kernel: tpu_custom_call.1
$region0: #{tpu_custom_call.1}
  #allocation0 [shape = 'u32[]', space=smem, size = 0x4, offset = 0x4, fixed_abs, tag = 'smem constant byte address 0x4 - core index']
  #allocation1 [shape = 'u32[144,128]{1,0:T(1,128)}', space=vmem, size = 0x12000, scoped, tag = 'internal scratch']
  #allocation2 [shape = 'f32[8,640]{1,0:T(8,128)}', space=vmem, size = 0x5000, scoped, tag = 'scratch operand']
  #allocation3 [shape = 'f32[72,384]{1,0:T(8,128)}', space=vmem, size = 0x1b000, scoped, tag = 'scratch operand']
  %s0 = inlined_call_operand.vmem [shape: f32[2,8,384], index: 0, kind: input, shape index: {}]
  %s1 = inlined_call_operand.hbm [shape: f32[6,8,72], index: 1, kind: input, shape index: {}]
  %s2 = inlined_call_operand.vmem [shape: f32[6,8,1], index: 2, kind: input, shape index: {}]
  %s3 = inlined_call_operand.hbm [shape: f32[8,384], index: 3, kind: input, shape index: {}]
  %s4 = inlined_call_operand.vmem [shape: f32[3], index: 4, kind: input, shape index: {}]
  %s5 = inlined_call_operand.hbm [shape: f32[2,8,384], index: 5, kind: output, shape index: {}]
  %s6 = sld [smem:[#allocation0]]
  $region65: #{tpu_custom_call.1} parent=0
    _
  %s8 = ssub.s32 1, %s6
  %s9 = scalar_select 0, %s8, %s6
  $region1: #{tpu_custom_call.1} parent=0
    #allocation4 [shape = 'u8[24576]{0}', space=vmem, size = 0x6000, scoped, tag = 'input window, operand 1, single buffered']
    #allocation5 [shape = 's32[2]{0}', space=sflag, size = 0x8, scoped, tag = 'scoped memory for tpu_custom_call.1']
    #allocation6 [shape = 's32[2]{0}', space=sflag, size = 0x8, scoped, tag = 'scoped memory for tpu_custom_call.1']
    #allocation7 [shape = 's32[2]{0}', space=sflag, size = 0x8, scoped, tag = 'scoped memory for tpu_custom_call.1']
    #allocation8 [shape = 'u8[12288]{0}', space=vmem, size = 0x3000, scoped, tag = 'input window, operand 3, single buffered']
    #allocation9 [shape = 's32[1]{0}', space=sflag, size = 0x4, scoped, tag = 'scoped memory for tpu_custom_call.1']
    #allocation10 [shape = 'u8[512]{0}', space=smem, size = 0x200, scoped, tag = 'input window, operand 4, single buffered']
    #allocation11 [shape = 'u8[24576]{0}', space=vmem, size = 0x6000, scoped, tag = 'output window, operand 0']
    %10 = vsyncpa [#allocation5], 0
    %11 = vsyncpa [#allocation9], 0
    %12 = vsyncpa [#allocation7], 0
    %13 = vsyncpa [#allocation6], 0
    %s14 = scalar_lea.sflag [#allocation6], 1
    %15 = vsyncpa %s14, 0
    loop: start=0, step=1, limit=4
    $region2: #{tpu_custom_call.1} parent=1 // loop_pre_header
      _
    $region3: #{tpu_custom_call.1} parent=1 // loop_header
      %s17 = sphi 0, %s21
      %p18 = scmp.ge.s32.totalorder %s17, 4
      %s27 = sphi 0, %s29
      %s30 = sphi 0, %s27
      %s31 = sphi 0, %s30
      %s47 = sphi 0, %s31
      %s51 = sphi 0, %s51
      %s53 = sphi 0, %s51
      %s54 = sphi 0, %s53
      %s68 = sphi 0, %s54
      %s72 = sphi 0, %s72
      %s74 = sphi 0, %s72
      %s75 = sphi 0, %s74
      %s89 = sphi 0, %s75
      %s93 = sphi 0, %s93
      %s95 = sphi 0, %s93
      %s96 = sphi 0, %s95
      %s110 = sphi 0, %s96
      %s114 = sphi 0, %s114
      %s116 = sphi 0, %s114
      %s117 = sphi 0, %s116
      %s131 = sphi 0, %s117
      %s137 = sphi 0, %s139
      %s140 = sphi 0, %s137
      %s141 = sphi 0, %s140
      %s157 = sphi 0, %s141
    $region4: #{tpu_custom_call.1} parent=1 // loop_header_branch
      %20 = sbr.rel (%p18) target = $region8
    $region5: #{tpu_custom_call.1} parent=1 // loop_body
      %s22 = ssub.s32 %s17, 1
      %s23 = ssub.s32 %s17, 2
      %s24 = sadd.s32 %s17, 1
      %s25 = ssub.s32 %s17, %s24
      %p26 = scmp.eq.s32.totalorder %s25, 0
      %s28 = sadd.s32 %s27, 1
      %s29 = scalar_select %p26, %s27, %s28
      %p32 = pneg %p26
      %p33 = scmp.eq.s32.totalorder %s17, 1
      %p34 = por %p32, %p33
      %p35 = scmp.ne.s32.totalorder %s27, %s30
      %p36 = scmp.eq.s32.totalorder %s17, 0
      %p37 = por %p35, %p36
      %p38 = scmp.ne.s32.totalorder %s27, %s30
      %p39 = scmp.eq.s32.totalorder %s22, 1
      %p40 = por %p38, %p39
      %p41 = scmp.ne.s32.totalorder %s30, %s31
      %p42 = scmp.eq.s32.totalorder %s22, 0
      %p43 = por %p41, %p42
      %p44 = scmp.ne.s32.totalorder %s30, %s31
      %p45 = scmp.eq.s32.totalorder %s23, 1
      %p46 = por %p44, %p45
      %p48 = scmp.ne.s32.totalorder %s31, %s47
      %p49 = scmp.eq.s32.totalorder %s23, 0
      %p50 = por %p48, %p49
      %s52 = sadd.s32 %s51, 1
      %p55 = scmp.eq.s32.totalorder %s17, 1
      %p56 = scmp.ne.s32.totalorder %s51, %s53
      %p57 = scmp.eq.s32.totalorder %s17, 0
      %p58 = por %p56, %p57
      %p59 = scmp.ne.s32.totalorder %s51, %s53
      %p60 = scmp.eq.s32.totalorder %s22, 1
      %p61 = por %p59, %p60
      %p62 = scmp.ne.s32.totalorder %s53, %s54
      %p63 = scmp.eq.s32.totalorder %s22, 0
      %p64 = por %p62, %p63
      %p65 = scmp.ne.s32.totalorder %s53, %s54
      %p66 = scmp.eq.s32.totalorder %s23, 1
      %p67 = por %p65, %p66
      %p69 = scmp.ne.s32.totalorder %s54, %s68
      %p70 = scmp.eq.s32.totalorder %s23, 0
      %p71 = por %p69, %p70
      %s73 = sadd.s32 %s72, 1
      %p76 = scmp.eq.s32.totalorder %s17, 1
      %p77 = scmp.ne.s32.totalorder %s72, %s74
      %p78 = scmp.eq.s32.totalorder %s17, 0
      %p79 = por %p77, %p78
      %p80 = scmp.ne.s32.totalorder %s72, %s74
      %p81 = scmp.eq.s32.totalorder %s22, 1
      %p82 = por %p80, %p81
      %p83 = scmp.ne.s32.totalorder %s74, %s75
      %p84 = scmp.eq.s32.totalorder %s22, 0
      %p85 = por %p83, %p84
      %p86 = scmp.ne.s32.totalorder %s74, %s75
      %p87 = scmp.eq.s32.totalorder %s23, 1
      %p88 = por %p86, %p87
      %p90 = scmp.ne.s32.totalorder %s75, %s89
      %p91 = scmp.eq.s32.totalorder %s23, 0
      %p92 = por %p90, %p91
      %s94 = sadd.s32 %s93, 1
      %p97 = scmp.eq.s32.totalorder %s17, 1
      %p98 = scmp.ne.s32.totalorder %s93, %s95
      %p99 = scmp.eq.s32.totalorder %s17, 0
      %p100 = por %p98, %p99
      %p101 = scmp.ne.s32.totalorder %s93, %s95
      %p102 = scmp.eq.s32.totalorder %s22, 1
      %p103 = por %p101, %p102
      %p104 = scmp.ne.s32.totalorder %s95, %s96
      %p105 = scmp.eq.s32.totalorder %s22, 0
      %p106 = por %p104, %p105
      %p107 = scmp.ne.s32.totalorder %s95, %s96
      %p108 = scmp.eq.s32.totalorder %s23, 1
      %p109 = por %p107, %p108
      %p111 = scmp.ne.s32.totalorder %s96, %s110
      %p112 = scmp.eq.s32.totalorder %s23, 0
      %p113 = por %p111, %p112
      %s115 = sadd.s32 %s114, 1
      %p118 = scmp.eq.s32.totalorder %s17, 1
      %p119 = scmp.ne.s32.totalorder %s114, %s116
      %p120 = scmp.eq.s32.totalorder %s17, 0
      %p121 = por %p119, %p120
      %p122 = scmp.ne.s32.totalorder %s114, %s116
      %p123 = scmp.eq.s32.totalorder %s22, 1
      %p124 = por %p122, %p123
      %p125 = scmp.ne.s32.totalorder %s116, %s117
      %p126 = scmp.eq.s32.totalorder %s22, 0
      %p127 = por %p125, %p126
      %p128 = scmp.ne.s32.totalorder %s116, %s117
      %p129 = scmp.eq.s32.totalorder %s23, 1
      %p130 = por %p128, %p129
      %p132 = scmp.ne.s32.totalorder %s117, %s131
      %p133 = scmp.eq.s32.totalorder %s23, 0
      %p134 = por %p132, %p133
      %s135 = ssub.s32 %s17, %s24
      %p136 = scmp.eq.s32.totalorder %s135, 0
      %s138 = sadd.s32 %s137, 1
      %s139 = scalar_select %p136, %s137, %s138
      %p142 = pneg %p136
      %p143 = scmp.eq.s32.totalorder %s17, 1
      %p144 = por %p142, %p143
      %p145 = scmp.ne.s32.totalorder %s137, %s140
      %p146 = scmp.eq.s32.totalorder %s17, 0
      %p147 = por %p145, %p146
      %p148 = scmp.ne.s32.totalorder %s137, %s140
      %p149 = scmp.eq.s32.totalorder %s22, 1
      %p150 = por %p148, %p149
      %p151 = scmp.ne.s32.totalorder %s140, %s141
      %p152 = scmp.eq.s32.totalorder %s22, 0
      %p153 = por %p151, %p152
      %p154 = scmp.ne.s32.totalorder %s140, %s141
      %p155 = scmp.eq.s32.totalorder %s23, 1
      %p156 = por %p154, %p155
      %p158 = scmp.ne.s32.totalorder %s141, %s157
      %p159 = scmp.eq.s32.totalorder %s23, 0
      %p160 = por %p158, %p159
      %p161 = scmp.le.s32.totalorder 1, %s17
      %p162 = scmp.lt.s32.totalorder %s17, 3
      %p163 = pnand %p161, %p162
      %p164 = pneg %p163
      // Predicated region
      $region9: #{tpu_custom_call.1} parent=5 // pred_check
        _
      $region10: #{tpu_custom_call.1} parent=5 // pred_check_branch
        %166 = sbr.rel (%p163) target = $region12
      $region11: #{tpu_custom_call.1} parent=5 // pred_region
        %s167 = ssub.s32 %s17, 1
        // Predicated region
        $region13: #{tpu_custom_call.1} parent=11 // pred_check
          %p168 = pneg %p64
        $region14: #{tpu_custom_call.1} parent=11 // pred_check_branch
          %170 = sbr.rel (%p168) target = $region16
        $region15: #{tpu_custom_call.1} parent=11 // pred_region
          %s172 = ssub.s32 768, 768
          %173 = vsyncadd [#allocation5], %s172
          %s174 = sshll.u32 [#allocation4], 4
          %s175 = int_to_ptr.vmem [resolvable:$true] %s174
          %180 = dma.hbm_to_vmem [thread:$0]  %s1, 768, %s175, [#allocation5], 128, 128, 8
        $region16: #{tpu_custom_call.1} parent=11 // pred_fallthru
          _
        // Predicated region
        $region17: #{tpu_custom_call.1} parent=11 // pred_check
          %p181 = pneg %p85
        $region18: #{tpu_custom_call.1} parent=11 // pred_check_branch
          %183 = sbr.rel (%p181) target = $region20
        $region19: #{tpu_custom_call.1} parent=11 // pred_region
          _
        $region20: #{tpu_custom_call.1} parent=11 // pred_fallthru
          _
        // Predicated region
        $region21: #{tpu_custom_call.1} parent=11 // pred_check
          %p184 = pneg %p106
        $region22: #{tpu_custom_call.1} parent=11 // pred_check_branch
          %186 = sbr.rel (%p184) target = $region24
        $region23: #{tpu_custom_call.1} parent=11 // pred_region
          %s188 = ssub.s32 384, 384
          %189 = vsyncadd [#allocation9], %s188
          %s191 = sshll.u32 [#allocation8], 4
          %s192 = int_to_ptr.vmem [resolvable:$true] %s191
          %194 = dma.hbm_to_vmem [thread:$0]  %s3, 384, %s192, [#allocation9]
        $region24: #{tpu_custom_call.1} parent=11 // pred_fallthru
          _
        // Predicated region
        $region25: #{tpu_custom_call.1} parent=11 // pred_check
          %p195 = pneg %p127
        $region26: #{tpu_custom_call.1} parent=11 // pred_check_branch
          %197 = sbr.rel (%p195) target = $region28
        $region27: #{tpu_custom_call.1} parent=11 // pred_region
          %s199 = ssub.s32 16, 16
          %200 = vsyncadd [#allocation7], %s199
          %s202 = sshll.u32 %s4, 4
          %s203 = int_to_ptr.vmem [resolvable:$true] %s202
          %205 = dma.vmem_to_smem %s203, 16, [#allocation10], [#allocation7]
        $region28: #{tpu_custom_call.1} parent=11 // pred_fallthru
          _
      $region12: #{tpu_custom_call.1} parent=5 // pred_fallthru
        _
      %p206 = scmp.lt.s32.totalorder %s17, 2
      // Predicated region
      $region29: #{tpu_custom_call.1} parent=5 // pred_check
        %p207 = pneg %p206
      $region30: #{tpu_custom_call.1} parent=5 // pred_check_branch
        %209 = sbr.rel (%p207) target = $region32
      $region31: #{tpu_custom_call.1} parent=5 // pred_region
        // Predicated region
        $region33: #{tpu_custom_call.1} parent=31 // pred_check
          %p210 = pneg %p37
        $region34: #{tpu_custom_call.1} parent=31 // pred_check_branch
          %212 = sbr.rel (%p210) target = $region36
        $region35: #{tpu_custom_call.1} parent=31 // pred_region
          %p213 = scmp.lt.s32.totalorder %s17, 1
          %s214 = scalar_select %p213, %s17, 1
          %s215 = smul.addr %s214, 3
          %s216 = smul.addr %s215, 8
          %s217 = scalar_lea.vmem %s0, %s216
        $region36: #{tpu_custom_call.1} parent=31 // pred_fallthru
          _
      $region32: #{tpu_custom_call.1} parent=5 // pred_fallthru
        _
      %p218 = scmp.le.s32.totalorder 1, %s17
      %p219 = scmp.lt.s32.totalorder %s17, 3
      %p220 = pnand %p218, %p219
      %p221 = pneg %p220
      // Predicated region
      $region37: #{tpu_custom_call.1} parent=5 // pred_check
        _
      $region38: #{tpu_custom_call.1} parent=5 // pred_check_branch
        %223 = sbr.rel (%p220) target = $region40
      $region39: #{tpu_custom_call.1} parent=5 // pred_region
        %s224 = ssub.s32 %s17, 1
        // Predicated region
        $region41: #{tpu_custom_call.1} parent=39 // pred_check
          %p225 = pneg %p64
        $region42: #{tpu_custom_call.1} parent=39 // pred_check_branch
          %227 = sbr.rel (%p225) target = $region44
        $region43: #{tpu_custom_call.1} parent=39 // pred_region
          %228 = dma.done [#allocation5], 768
        $region44: #{tpu_custom_call.1} parent=39 // pred_fallthru
          _
        // Predicated region
        $region45: #{tpu_custom_call.1} parent=39 // pred_check
          %p229 = pneg %p106
        $region46: #{tpu_custom_call.1} parent=39 // pred_check_branch
          %231 = sbr.rel (%p229) target = $region48
        $region47: #{tpu_custom_call.1} parent=39 // pred_region
          %232 = dma.done [#allocation9], 384
        $region48: #{tpu_custom_call.1} parent=39 // pred_fallthru
          _
        // Predicated region
        $region49: #{tpu_custom_call.1} parent=39 // pred_check
          %p233 = pneg %p127
        $region50: #{tpu_custom_call.1} parent=39 // pred_check_branch
          %235 = sbr.rel (%p233) target = $region52
        $region51: #{tpu_custom_call.1} parent=39 // pred_region
          %236 = dma.done [#allocation7], 16
        $region52: #{tpu_custom_call.1} parent=39 // pred_fallthru
          _
        %237 = sfence
        %p238 = scmp.lt.s32.totalorder %s22, 1
        %s239 = scalar_select %p238, %s22, 1
        %s240 = smul.addr %s239, 3
        %s241 = smul.addr %s240, 8
        %s242 = scalar_lea.vmem %s0, %s241
        %p243 = pneg %p43
        %p244 = pneg %p40
        %p245 = pneg %p64
        %p246 = pneg %p61
        %p247 = pneg %p85
        %p248 = pneg %p82
        %p249 = pneg %p106
        %p250 = pneg %p103
        %p251 = pneg %p127
        %p252 = pneg %p124
        %p253 = pneg %p153
        %p254 = pneg %p150
        %s255 = sand.u32 %s140, 1
        %s256 = scalar_lea.sflag [#allocation6], %s255
        %s257 = sand.u32 %s140, 1
        %s258 = smul.addr %s257, 24
        %s259 = scalar_lea.vmem [#allocation11], %s258
        %p260 = scmp.lt.s32.totalorder %s22, 1
        %s261 = scalar_select %p260, %s22, 1
        %s262 = smul.addr %s261, 3
        %s263 = smul.addr %s262, 8
        %s264 = scalar_lea.vmem %s0, %s263
        %v265 = vld [vmem:[#allocation8] sm:$0xff]
        %v266 = vld [vmem:[#allocation8 + $0x8] sm:$0xff]
        %v267 = vld [vmem:[#allocation8 + $0x10] sm:$0xff]
        %v268 = vld [vmem:[%s264] sm:$0xff]
        %v269 = vld [vmem:[%s264 + $0x8] sm:$0xff]
        %v270 = vld [vmem:[%s264 + $0x10] sm:$0xff]
        %271 = vst [vmem:[#allocation2] sm:$0xff] 0.0
        %272 = vst [vmem:[#allocation2 + $0x8] sm:$0xff] 0.0
        %273 = vst [vmem:[#allocation2 + $0x10] sm:$0xff] 0.0
        %274 = vst [vmem:[#allocation2 + $0x18] sm:$0xff] 0.0
        %275 = vst [vmem:[#allocation2 + $0x20] sm:$0xff] 0.0
        %v276 = vmul.f32 %v268, %v265
        %v277 = vmul.f32 %v269, %v266
        %v278 = vmul.f32 %v270, %v267
        %279 = vst [vmem:[#allocation2 + $0x8] sm:$0xff] %v276
        %280 = vst [vmem:[#allocation2 + $0x10] sm:$0xff] %v277
        %281 = vst [vmem:[#allocation2 + $0x18] sm:$0xff] %v278
        %v282 = vld [vmem:[#allocation2] sm:$0xff]
        %v283 = vld [vmem:[#allocation2 + $0x8] sm:$0xff]
        %v284 = vld [vmem:[#allocation2 + $0x10] sm:$0xff]
        %v285 = vld [vmem:[#allocation2 + $0x18] sm:$0xff]
        %290 = vrot.lane.b32.xlu0 %v282, 19
        %v291 = vpop.permute.xlu0 %290
        %292 = vrot.lane.b32.xlu0 %v283, 19
        %v293 = vpop.permute.xlu0 %292
        %294 = vrot.lane.b32.xlu0 %v284, 19
        %v295 = vpop.permute.xlu0 %294
        %296 = vrot.lane.b32.xlu0 %v285, 19
        %v297 = vpop.permute.xlu0 %296
        %vm298 = vcmask 154624
        %v299 = vsel %vm298, %v291, %v293
        %v300 = vsel %vm298, %v293, %v295
        %v301 = vsel %vm298, %v295, %v297
        %305 = vst [vmem:[#allocation3] sm:$0xff] %v299
        %306 = vst [vmem:[#allocation3 + $0x8] sm:$0xff] %v300
        %307 = vst [vmem:[#allocation3 + $0x10] sm:$0xff] %v301
        %v308 = vld [vmem:[#allocation2] sm:$0xff]
        %v309 = vld [vmem:[#allocation2 + $0x8] sm:$0xff]
        %v310 = vld [vmem:[#allocation2 + $0x10] sm:$0xff]
        %v311 = vld [vmem:[#allocation2 + $0x18] sm:$0xff]
        %316 = vrot.lane.b32.xlu0 %v308, 18
        %v317 = vpop.permute.xlu0 %316
        %318 = vrot.lane.b32.xlu0 %v309, 18
        %v319 = vpop.permute.xlu0 %318
        %320 = vrot.lane.b32.xlu0 %v310, 18
        %v321 = vpop.permute.xlu0 %320
        %322 = vrot.lane.b32.xlu0 %v311, 18
        %v323 = vpop.permute.xlu0 %322
        %vm324 = vcmask 146432
        %v325 = vsel %vm324, %v317, %v319
        %v326 = vsel %vm324, %v319, %v321
        %v327 = vsel %vm324, %v321, %v323
        %331 = vst [vmem:[#allocation3 + $0x18] sm:$0xff] %v325
        %332 = vst [vmem:[#allocation3 + $0x20] sm:$0xff] %v326
        %333 = vst [vmem:[#allocation3 + $0x28] sm:$0xff] %v327
        %v334 = vld [vmem:[#allocation2] sm:$0xff]
        %v335 = vld [vmem:[#allocation2 + $0x8] sm:$0xff]
        %v336 = vld [vmem:[#allocation2 + $0x10] sm:$0xff]
        %v337 = vld [vmem:[#allocation2 + $0x18] sm:$0xff]
        %342 = vrot.lane.b32.xlu0 %v334, 17
        %v343 = vpop.permute.xlu0 %342
        %344 = vrot.lane.b32.xlu0 %v335, 17
        %v345 = vpop.permute.xlu0 %344
        %346 = vrot.lane.b32.xlu0 %v336, 17
        %v347 = vpop.permute.xlu0 %346
        %348 = vrot.lane.b32.xlu0 %v337, 17
        %v349 = vpop.permute.xlu0 %348
        %vm350 = vcmask 138240
        %v351 = vsel %vm350, %v343, %v345
        %v352 = vsel %vm350, %v345, %v347
        %v353 = vsel %vm350, %v347, %v349
        %357 = vst [vmem:[#allocation3 + $0x30] sm:$0xff] %v351
        %358 = vst [vmem:[#allocation3 + $0x38] sm:$0xff] %v352
        %359 = vst [vmem:[#allocation3 + $0x40] sm:$0xff] %v353
        %v360 = vld [vmem:[#allocation2] sm:$0xff]
        %v361 = vld [vmem:[#allocation2 + $0x8] sm:$0xff]
        %v362 = vld [vmem:[#allocation2 + $0x10] sm:$0xff]
        %v363 = vld [vmem:[#allocation2 + $0x18] sm:$0xff]
        %368 = vrot.lane.b32.xlu0 %v360, 1
        %v369 = vpop.permute.xlu0 %368
        %370 = vrot.lane.b32.xlu0 %v361, 1
        %v371 = vpop.permute.xlu0 %370
        %372 = vrot.lane.b32.xlu0 %v362, 1
        %v373 = vpop.permute.xlu0 %372
        %374 = vrot.lane.b32.xlu0 %v363, 1
        %v375 = vpop.permute.xlu0 %374
        %vm376 = vcmask 7168
        %v377 = vsel %vm376, %v369, %v371
        %v378 = vsel %vm376, %v371, %v373
        %v379 = vsel %vm376, %v373, %v375
        %383 = vst [vmem:[#allocation3 + $0x48] sm:$0xff] %v377
        %384 = vst [vmem:[#allocation3 + $0x50] sm:$0xff] %v378
        %385 = vst [vmem:[#allocation3 + $0x58] sm:$0xff] %v379
        %v386 = vld [vmem:[#allocation2 + $0x8] sm:$0xff]
        %v387 = vld [vmem:[#allocation2 + $0x10] sm:$0xff]
        %v388 = vld [vmem:[#allocation2 + $0x18] sm:$0xff]
        %389 = vst [vmem:[#allocation3 + $0x60] sm:$0xff] %v386
        %390 = vst [vmem:[#allocation3 + $0x68] sm:$0xff] %v387
        %391 = vst [vmem:[#allocation3 + $0x70] sm:$0xff] %v388
        %v392 = vld [vmem:[#allocation2 + $0x8] sm:$0xff]
        %v393 = vld [vmem:[#allocation2 + $0x10] sm:$0xff]
        %v394 = vld [vmem:[#allocation2 + $0x18] sm:$0xff]
        %v395 = vld [vmem:[#allocation2 + $0x20] sm:$0xff]
        %400 = vrot.lane.b32.xlu0 %v392, 127
        %v401 = vpop.permute.xlu0 %400
        %402 = vrot.lane.b32.xlu0 %v393, 127
        %v403 = vpop.permute.xlu0 %402
        %404 = vrot.lane.b32.xlu0 %v394, 127
        %v405 = vpop.permute.xlu0 %404
        %406 = vrot.lane.b32.xlu0 %v395, 127
        %v407 = vpop.permute.xlu0 %406
        %vm408 = vcmask 1039360
        %v409 = vsel %vm408, %v401, %v403
        %v410 = vsel %vm408, %v403, %v405
        %v411 = vsel %vm408, %v405, %v407
        %415 = vst [vmem:[#allocation3 + $0x78] sm:$0xff] %v409
        %416 = vst [vmem:[#allocation3 + $0x80] sm:$0xff] %v410
        %417 = vst [vmem:[#allocation3 + $0x88] sm:$0xff] %v411
        %v418 = vld [vmem:[#allocation2 + $0x8] sm:$0xff]
        %v419 = vld [vmem:[#allocation2 + $0x10] sm:$0xff]
        %v420 = vld [vmem:[#allocation2 + $0x18] sm:$0xff]
        %v421 = vld [vmem:[#allocation2 + $0x20] sm:$0xff]
        %426 = vrot.lane.b32.xlu0 %v418, 111
        %v427 = vpop.permute.xlu0 %426
        %428 = vrot.lane.b32.xlu0 %v419, 111
        %v429 = vpop.permute.xlu0 %428
        %430 = vrot.lane.b32.xlu0 %v420, 111
        %v431 = vpop.permute.xlu0 %430
        %432 = vrot.lane.b32.xlu0 %v421, 111
        %v433 = vpop.permute.xlu0 %432
        %vm434 = vcmask 908288
        %v435 = vsel %vm434, %v427, %v429
        %v436 = vsel %vm434, %v429, %v431
        %v437 = vsel %vm434, %v431, %v433
        %441 = vst [vmem:[#allocation3 + $0x90] sm:$0xff] %v435
        %442 = vst [vmem:[#allocation3 + $0x98] sm:$0xff] %v436
        %443 = vst [vmem:[#allocation3 + $0xa0] sm:$0xff] %v437
        %v444 = vld [vmem:[#allocation2 + $0x8] sm:$0xff]
        %v445 = vld [vmem:[#allocation2 + $0x10] sm:$0xff]
        %v446 = vld [vmem:[#allocation2 + $0x18] sm:$0xff]
        %v447 = vld [vmem:[#allocation2 + $0x20] sm:$0xff]
        %452 = vrot.lane.b32.xlu0 %v444, 110
        %v453 = vpop.permute.xlu0 %452
        %454 = vrot.lane.b32.xlu0 %v445, 110
        %v455 = vpop.permute.xlu0 %454
        %456 = vrot.lane.b32.xlu0 %v446, 110
        %v457 = vpop.permute.xlu0 %456
        %458 = vrot.lane.b32.xlu0 %v447, 110
        %v459 = vpop.permute.xlu0 %458
        %vm460 = vcmask 900096
        %v461 = vsel %vm460, %v453, %v455
        %v462 = vsel %vm460, %v455, %v457
        %v463 = vsel %vm460, %v457, %v459
        %467 = vst [vmem:[#allocation3 + $0xa8] sm:$0xff] %v461
        %468 = vst [vmem:[#allocation3 + $0xb0] sm:$0xff] %v462
        %469 = vst [vmem:[#allocation3 + $0xb8] sm:$0xff] %v463
        %v470 = vld [vmem:[#allocation2 + $0x8] sm:$0xff]
        %v471 = vld [vmem:[#allocation2 + $0x10] sm:$0xff]
        %v472 = vld [vmem:[#allocation2 + $0x18] sm:$0xff]
        %v473 = vld [vmem:[#allocation2 + $0x20] sm:$0xff]
        %478 = vrot.lane.b32.xlu0 %v470, 109
        %v479 = vpop.permute.xlu0 %478
        %480 = vrot.lane.b32.xlu0 %v471, 109
        %v481 = vpop.permute.xlu0 %480
        %482 = vrot.lane.b32.xlu0 %v472, 109
        %v483 = vpop.permute.xlu0 %482
        %484 = vrot.lane.b32.xlu0 %v473, 109
        %v485 = vpop.permute.xlu0 %484
        %vm486 = vcmask 891904
        %v487 = vsel %vm486, %v479, %v481
        %v488 = vsel %vm486, %v481, %v483
        %v489 = vsel %vm486, %v483, %v485
        %493 = vst [vmem:[#allocation3 + $0xc0] sm:$0xff] %v487
        %494 = vst [vmem:[#allocation3 + $0xc8] sm:$0xff] %v488
        %495 = vst [vmem:[#allocation3 + $0xd0] sm:$0xff] %v489
        %v496 = vld [vmem:[#allocation4] sm:$0xff]
        %v497 = vld [vmem:[#allocation3] sm:$0xff]
        %v498 = vld [vmem:[#allocation3 + $0x8] sm:$0xff]
        %v499 = vld [vmem:[#allocation3 + $0x10] sm:$0xff]
        %v500 = vld [vmem:[#allocation3 + $0x18] sm:$0xff]
        %v501 = vld [vmem:[#allocation3 + $0x20] sm:$0xff]
        %v502 = vld [vmem:[#allocation3 + $0x28] sm:$0xff]
        %v503 = vld [vmem:[#allocation3 + $0x30] sm:$0xff]
        %v504 = vld [vmem:[#allocation3 + $0x38] sm:$0xff]
        %v505 = vld [vmem:[#allocation3 + $0x40] sm:$0xff]
        %v506 = vld [vmem:[#allocation3 + $0x48] sm:$0xff]
        %v507 = vld [vmem:[#allocation3 + $0x50] sm:$0xff]
        %v508 = vld [vmem:[#allocation3 + $0x58] sm:$0xff]
        %v509 = vld [vmem:[#allocation3 + $0x60] sm:$0xff]
        %v510 = vld [vmem:[#allocation3 + $0x68] sm:$0xff]
        %v511 = vld [vmem:[#allocation3 + $0x70] sm:$0xff]
        %v512 = vld [vmem:[#allocation3 + $0x78] sm:$0xff]
        %v513 = vld [vmem:[#allocation3 + $0x80] sm:$0xff]
        %v514 = vld [vmem:[#allocation3 + $0x88] sm:$0xff]
        %v515 = vld [vmem:[#allocation3 + $0x90] sm:$0xff]
        %v516 = vld [vmem:[#allocation3 + $0x98] sm:$0xff]
        %v517 = vld [vmem:[#allocation3 + $0xa0] sm:$0xff]
        %v518 = vld [vmem:[#allocation3 + $0xa8] sm:$0xff]
        %v519 = vld [vmem:[#allocation3 + $0xb0] sm:$0xff]
        %v520 = vld [vmem:[#allocation3 + $0xb8] sm:$0xff]
        %v521 = vld [vmem:[#allocation3 + $0xc0] sm:$0xff]
        %v522 = vld [vmem:[#allocation3 + $0xc8] sm:$0xff]
        %v523 = vld [vmem:[#allocation3 + $0xd0] sm:$0xff]
        %v524 = vld [vmem:[%s2] sm:$0xff]
        %526 = vset.pattern.permute.xlu0 0
        %527 = vperm.xlu0 %526, %v524
        %v528 = vpop.permute.xlu0 %527
        %vm530 = vcmask 588800
        %v532 = vsel %vm530, %v496, 0
        %534 = vmatprep.subr.mxu0 %v498
        %535 = vmatpush1.msra.mxu0 %v497
        %536 = vmatprep.subr.mxu0 %v501
        %537 = vmatpush1.msra.mxu0 %v500
        %538 = vmatprep.subr.mxu0 %v504
        %539 = vmatpush1.msra.mxu0 %v503
        %540 = vmatprep.subr.mxu0 %v507
        %541 = vmatpush1.msra.mxu0 %v506
        %542 = vmatprep.subr.mxu0 %v510
        %543 = vmatpush1.msra.mxu0 %v509
        %544 = vmatprep.subr.mxu0 %v513
        %545 = vmatpush1.msra.mxu0 %v512
        %546 = vmatprep.subr.mxu0 %v516
        %547 = vmatpush1.msra.mxu0 %v515
        %548 = vmatprep.subr.mxu0 %v519
        %549 = vmatpush1.msra.mxu0 %v518
        %550 = vmatprep.subr.mxu0 %v522
        %551 = vmatpush1.msra.mxu0 %v521
        %552 = vmatprep.subr.mxu0 0.0
        %553 = vmatpush1.msra.mxu0 0.0
        %554 = vmatprep.subr.mxu0 0.0
        %555 = vmatpush1.msra.mxu0 0.0
        %556 = vmatprep.subr.mxu0 0.0
        %557 = vmatpush1.msra.mxu0 0.0
        %558 = vmatprep.subr.mxu0 0.0
        %559 = vmatpush1.msra.mxu0 0.0
        %560 = vmatprep.subr.mxu0 0.0
        %561 = vmatpush1.msra.mxu0 0.0
        %562 = vmatprep.subr.mxu0 0.0
        %563 = vmatpush1.msra.mxu0 0.0
        %564 = vmatprep.subr.mxu0 0.0
        %565 = vmatpush1.msra.mxu0 0.0
        %566 = vmatprep.subr.mxu0 0.0
        %567 = vmatpush1.msra.mxu0 0.0
        %568 = vmatprep.subr.mxu0 0.0
        %569 = vmatpush1.msra.mxu0 0.0
        %570 = vmatprep.subr.mxu0 0.0
        %571 = vmatpush1.msra.mxu0 0.0
        %572 = vmatprep.subr.mxu0 0.0
        %573 = vmatpush1.msra.mxu0 0.0
        %574 = vmatprep.subr.mxu0 0.0
        %575 = vmatpush1.msra.mxu0 0.0
        %576 = vmatprep.subr.mxu0 0.0
        %577 = vmatpush1.msra.mxu0 0.0
        %578 = vmatprep.subr.mxu0 0.0
        %579 = vmatpush1.msra.mxu0 0.0
        %580 = vmatprep.subr.mxu0 0.0
        %581 = vmatpush1.msra.mxu0 0.0
        %582 = vmatprep.subr.mxu0 0.0
        %583 = vmatpush1.msra.mxu0 0.0
        %584 = vmatprep.subr.mxu0 0.0
        %585 = vmatpush1.msra.mxu0 0.0
        %586 = vmatprep.subr.mxu0 0.0
        %587 = vmatpush1.msra.mxu0 0.0
        %588 = vmatprep.subr.mxu0 0.0
        %589 = vmatpush1.msra.mxu0 0.0
        %590 = vmatprep.subr.mxu0 0.0
        %591 = vmatpush1.msra.mxu0 0.0
        %592 = vmatprep.subr.mxu0 0.0
        %593 = vmatpush1.msra.mxu0 0.0
        %594 = vmatprep.subr.mxu0 0.0
        %595 = vmatpush1.msra.mxu0 0.0
        %596 = vmatprep.subr.mxu0 0.0
        %597 = vmatpush1.msra.mxu0 0.0
        %598 = vmatprep.mubr.f32.mxu0 0.0
        %599 = vmatmul.mubr.f32.gmra.mrb[0].mxu0 %v532
        %v600 = vpop.f32.mrb[0].mxu0
        %v601 = vadd.f32 %v528, %v600
        %v602 = vpop.f32.mrb[0].mxu0
        %v603 = vadd.f32 %v528, %v602
        %604 = vdwg.mxu0
        %605 = vmatprep.subr.mxu0 0.0
        %606 = vmatpush1.msra.mxu0 %v499
        %607 = vmatprep.subr.mxu0 0.0
        %608 = vmatpush1.msra.mxu0 %v502
        %609 = vmatprep.subr.mxu0 0.0
        %610 = vmatpush1.msra.mxu0 %v505
        %611 = vmatprep.subr.mxu0 0.0
        %612 = vmatpush1.msra.mxu0 %v508
        %613 = vmatprep.subr.mxu0 0.0
        %614 = vmatpush1.msra.mxu0 %v511
        %615 = vmatprep.subr.mxu0 0.0
        %616 = vmatpush1.msra.mxu0 %v514
        %617 = vmatprep.subr.mxu0 0.0
        %618 = vmatpush1.msra.mxu0 %v517
        %619 = vmatprep.subr.mxu0 0.0
        %620 = vmatpush1.msra.mxu0 %v520
        %621 = vmatprep.subr.mxu0 0.0
        %622 = vmatpush1.msra.mxu0 %v523
        %623 = vmatprep.subr.mxu0 0.0
        %624 = vmatpush1.msra.mxu0 0.0
        %625 = vmatprep.subr.mxu0 0.0
        %626 = vmatpush1.msra.mxu0 0.0
        %627 = vmatprep.subr.mxu0 0.0
        %628 = vmatpush1.msra.mxu0 0.0
        %629 = vmatprep.subr.mxu0 0.0
        %630 = vmatpush1.msra.mxu0 0.0
        %631 = vmatprep.subr.mxu0 0.0
        %632 = vmatpush1.msra.mxu0 0.0
        %633 = vmatprep.subr.mxu0 0.0
        %634 = vmatpush1.msra.mxu0 0.0
        %635 = vmatprep.subr.mxu0 0.0
        %636 = vmatpush1.msra.mxu0 0.0
        %637 = vmatprep.subr.mxu0 0.0
        %638 = vmatpush1.msra.mxu0 0.0
        %639 = vmatprep.subr.mxu0 0.0
        %640 = vmatpush1.msra.mxu0 0.0
        %641 = vmatprep.subr.mxu0 0.0
        %642 = vmatpush1.msra.mxu0 0.0
        %643 = vmatprep.subr.mxu0 0.0
        %644 = vmatpush1.msra.mxu0 0.0
        %645 = vmatprep.subr.mxu0 0.0
        %646 = vmatpush1.msra.mxu0 0.0
        %647 = vmatprep.subr.mxu0 0.0
        %648 = vmatpush1.msra.mxu0 0.0
        %649 = vmatprep.subr.mxu0 0.0
        %650 = vmatpush1.msra.mxu0 0.0
        %651 = vmatprep.subr.mxu0 0.0
        %652 = vmatpush1.msra.mxu0 0.0
        %653 = vmatprep.subr.mxu0 0.0
        %654 = vmatpush1.msra.mxu0 0.0
        %655 = vmatprep.subr.mxu0 0.0
        %656 = vmatpush1.msra.mxu0 0.0
        %657 = vmatprep.subr.mxu0 0.0
        %658 = vmatpush1.msra.mxu0 0.0
        %659 = vmatprep.subr.mxu0 0.0
        %660 = vmatpush1.msra.mxu0 0.0
        %661 = vmatprep.subr.mxu0 0.0
        %662 = vmatpush1.msra.mxu0 0.0
        %663 = vmatprep.subr.mxu0 0.0
        %664 = vmatpush1.msra.mxu0 0.0
        %665 = vmatprep.subr.mxu0 0.0
        %666 = vmatpush1.msra.mxu0 0.0
        %667 = vmatprep.subr.mxu0 0.0
        %668 = vmatpush1.msra.mxu0 0.0
        %669 = vmatprep.mubr.f32.mxu0 0.0
        %670 = vmatmul.mubr.f32.gmra.mrb[0].mxu0 %v532
        %v671 = vpop.f32.mrb[0].mxu0
        %v672 = vadd.f32 %v528, %v671
        %v673 = vpop.f32.mrb[0].mxu0
        %674 = vdwg.mxu0
        %s675 = sld [smem:[#allocation10]]
        %vm676 = vcmp.ge.f32.partialorder %v601, 0.0
        %vm677 = vcmp.ge.f32.partialorder %v603, 0.0
        %vm678 = vcmp.ge.f32.partialorder %v672, 0.0
        %v679 = vstv %s675
        %v680 = vmul.f32 %v679, %v601
        %v681 = vmul.f32 %v679, %v603
        %v682 = vmul.f32 %v679, %v672
        %v683 = vsel %vm676, %v601, %v680
        %v684 = vsel %vm677, %v603, %v681
        %v685 = vsel %vm678, %v672, %v682
        %v686 = vmul.f32 %v683, %v265
        %v687 = vmul.f32 %v684, %v266
        %v688 = vmul.f32 %v685, %v267
        %689 = vst [vmem:[#allocation2 + $0x8] sm:$0xff] %v686
        %690 = vst [vmem:[#allocation2 + $0x10] sm:$0xff] %v687
        %691 = vst [vmem:[#allocation2 + $0x18] sm:$0xff] %v688
        %v692 = vld [vmem:[#allocation2] sm:$0xff]
        %v693 = vld [vmem:[#allocation2 + $0x8] sm:$0xff]
        %v694 = vld [vmem:[#allocation2 + $0x10] sm:$0xff]
        %v695 = vld [vmem:[#allocation2 + $0x18] sm:$0xff]
        %700 = vrot.lane.b32.xlu0 %v692, 19
        %v701 = vpop.permute.xlu0 %700
        %702 = vrot.lane.b32.xlu0 %v693, 19
        %v703 = vpop.permute.xlu0 %702
        %704 = vrot.lane.b32.xlu0 %v694, 19
        %v705 = vpop.permute.xlu0 %704
        %706 = vrot.lane.b32.xlu0 %v695, 19
        %v707 = vpop.permute.xlu0 %706
        %v708 = vsel %vm298, %v701, %v703
        %v709 = vsel %vm298, %v703, %v705
        %v710 = vsel %vm298, %v705, %v707
        %714 = vst [vmem:[#allocation3] sm:$0xff] %v708
        %715 = vst [vmem:[#allocation3 + $0x8] sm:$0xff] %v709
        %716 = vst [vmem:[#allocation3 + $0x10] sm:$0xff] %v710
        %v717 = vld [vmem:[#allocation2] sm:$0xff]
        %v718 = vld [vmem:[#allocation2 + $0x8] sm:$0xff]
        %v719 = vld [vmem:[#allocation2 + $0x10] sm:$0xff]
        %v720 = vld [vmem:[#allocation2 + $0x18] sm:$0xff]
        %725 = vrot.lane.b32.xlu0 %v717, 18
        %v726 = vpop.permute.xlu0 %725
        %727 = vrot.lane.b32.xlu0 %v718, 18
        %v728 = vpop.permute.xlu0 %727
        %729 = vrot.lane.b32.xlu0 %v719, 18
        %v730 = vpop.permute.xlu0 %729
        %731 = vrot.lane.b32.xlu0 %v720, 18
        %v732 = vpop.permute.xlu0 %731
        %v733 = vsel %vm324, %v726, %v728
        %v734 = vsel %vm324, %v728, %v730
        %v735 = vsel %vm324, %v730, %v732
        %739 = vst [vmem:[#allocation3 + $0x18] sm:$0xff] %v733
        %740 = vst [vmem:[#allocation3 + $0x20] sm:$0xff] %v734
        %741 = vst [vmem:[#allocation3 + $0x28] sm:$0xff] %v735
        %v742 = vld [vmem:[#allocation2] sm:$0xff]
        %v743 = vld [vmem:[#allocation2 + $0x8] sm:$0xff]
        %v744 = vld [vmem:[#allocation2 + $0x10] sm:$0xff]
        %v745 = vld [vmem:[#allocation2 + $0x18] sm:$0xff]
        %750 = vrot.lane.b32.xlu0 %v742, 17
        %v751 = vpop.permute.xlu0 %750
        %752 = vrot.lane.b32.xlu0 %v743, 17
        %v753 = vpop.permute.xlu0 %752
        %754 = vrot.lane.b32.xlu0 %v744, 17
        %v755 = vpop.permute.xlu0 %754
        %756 = vrot.lane.b32.xlu0 %v745, 17
        %v757 = vpop.permute.xlu0 %756
        %v758 = vsel %vm350, %v751, %v753
        %v759 = vsel %vm350, %v753, %v755
        %v760 = vsel %vm350, %v755, %v757
        %764 = vst [vmem:[#allocation3 + $0x30] sm:$0xff] %v758
        %765 = vst [vmem:[#allocation3 + $0x38] sm:$0xff] %v759
        %766 = vst [vmem:[#allocation3 + $0x40] sm:$0xff] %v760
        %v767 = vld [vmem:[#allocation2] sm:$0xff]
        %v768 = vld [vmem:[#allocation2 + $0x8] sm:$0xff]
        %v769 = vld [vmem:[#allocation2 + $0x10] sm:$0xff]
        %v770 = vld [vmem:[#allocation2 + $0x18] sm:$0xff]
        %775 = vrot.lane.b32.xlu0 %v767, 1
        %v776 = vpop.permute.xlu0 %775
        %777 = vrot.lane.b32.xlu0 %v768, 1
        %v778 = vpop.permute.xlu0 %777
        %779 = vrot.lane.b32.xlu0 %v769, 1
        %v780 = vpop.permute.xlu0 %779
        %781 = vrot.lane.b32.xlu0 %v770, 1
        %v782 = vpop.permute.xlu0 %781
        %v783 = vsel %vm376, %v776, %v778
        %v784 = vsel %vm376, %v778, %v780
        %v785 = vsel %vm376, %v780, %v782
        %789 = vst [vmem:[#allocation3 + $0x48] sm:$0xff] %v783
        %790 = vst [vmem:[#allocation3 + $0x50] sm:$0xff] %v784
        %791 = vst [vmem:[#allocation3 + $0x58] sm:$0xff] %v785
        %v792 = vld [vmem:[#allocation2 + $0x8] sm:$0xff]
        %v793 = vld [vmem:[#allocation2 + $0x10] sm:$0xff]
        %v794 = vld [vmem:[#allocation2 + $0x18] sm:$0xff]
        %795 = vst [vmem:[#allocation3 + $0x60] sm:$0xff] %v792
        %796 = vst [vmem:[#allocation3 + $0x68] sm:$0xff] %v793
        %797 = vst [vmem:[#allocation3 + $0x70] sm:$0xff] %v794
        %v798 = vld [vmem:[#allocation2 + $0x8] sm:$0xff]
        %v799 = vld [vmem:[#allocation2 + $0x10] sm:$0xff]
        %v800 = vld [vmem:[#allocation2 + $0x18] sm:$0xff]
        %v801 = vld [vmem:[#allocation2 + $0x20] sm:$0xff]
        %806 = vrot.lane.b32.xlu0 %v798, 127
        %v807 = vpop.permute.xlu0 %806
        %808 = vrot.lane.b32.xlu0 %v799, 127
        %v809 = vpop.permute.xlu0 %808
        %810 = vrot.lane.b32.xlu0 %v800, 127
        %v811 = vpop.permute.xlu0 %810
        %812 = vrot.lane.b32.xlu0 %v801, 127
        %v813 = vpop.permute.xlu0 %812
        %v814 = vsel %vm408, %v807, %v809
        %v815 = vsel %vm408, %v809, %v811
        %v816 = vsel %vm408, %v811, %v813
        %820 = vst [vmem:[#allocation3 + $0x78] sm:$0xff] %v814
        %821 = vst [vmem:[#allocation3 + $0x80] sm:$0xff] %v815
        %822 = vst [vmem:[#allocation3 + $0x88] sm:$0xff] %v816
        %v823 = vld [vmem:[#allocation2 + $0x8] sm:$0xff]
        %v824 = vld [vmem:[#allocation2 + $0x10] sm:$0xff]
        %v825 = vld [vmem:[#allocation2 + $0x18] sm:$0xff]
        %v826 = vld [vmem:[#allocation2 + $0x20] sm:$0xff]
        %831 = vrot.lane.b32.xlu0 %v823, 111
        %v832 = vpop.permute.xlu0 %831
        %833 = vrot.lane.b32.xlu0 %v824, 111
        %v834 = vpop.permute.xlu0 %833
        %835 = vrot.lane.b32.xlu0 %v825, 111
        %v836 = vpop.permute.xlu0 %835
        %837 = vrot.lane.b32.xlu0 %v826, 111
        %v838 = vpop.permute.xlu0 %837
        %v839 = vsel %vm434, %v832, %v834
        %v840 = vsel %vm434, %v834, %v836
        %v841 = vsel %vm434, %v836, %v838
        %845 = vst [vmem:[#allocation3 + $0x90] sm:$0xff] %v839
        %846 = vst [vmem:[#allocation3 + $0x98] sm:$0xff] %v840
        %847 = vst [vmem:[#allocation3 + $0xa0] sm:$0xff] %v841
        %v848 = vld [vmem:[#allocation2 + $0x8] sm:$0xff]
        %v849 = vld [vmem:[#allocation2 + $0x10] sm:$0xff]
        %v850 = vld [vmem:[#allocation2 + $0x18] sm:$0xff]
        %v851 = vld [vmem:[#allocation2 + $0x20] sm:$0xff]
        %856 = vrot.lane.b32.xlu0 %v848, 110
        %v857 = vpop.permute.xlu0 %856
        %858 = vrot.lane.b32.xlu0 %v849, 110
        %v859 = vpop.permute.xlu0 %858
        %860 = vrot.lane.b32.xlu0 %v850, 110
        %v861 = vpop.permute.xlu0 %860
        %862 = vrot.lane.b32.xlu0 %v851, 110
        %v863 = vpop.permute.xlu0 %862
        %v864 = vsel %vm460, %v857, %v859
        %v865 = vsel %vm460, %v859, %v861
        %v866 = vsel %vm460, %v861, %v863
        %870 = vst [vmem:[#allocation3 + $0xa8] sm:$0xff] %v864
        %871 = vst [vmem:[#allocation3 + $0xb0] sm:$0xff] %v865
        %872 = vst [vmem:[#allocation3 + $0xb8] sm:$0xff] %v866
        %v873 = vld [vmem:[#allocation2 + $0x8] sm:$0xff]
        %v874 = vld [vmem:[#allocation2 + $0x10] sm:$0xff]
        %v875 = vld [vmem:[#allocation2 + $0x18] sm:$0xff]
        %v876 = vld [vmem:[#allocation2 + $0x20] sm:$0xff]
        %881 = vrot.lane.b32.xlu0 %v873, 109
        %v882 = vpop.permute.xlu0 %881
        %883 = vrot.lane.b32.xlu0 %v874, 109
        %v884 = vpop.permute.xlu0 %883
        %885 = vrot.lane.b32.xlu0 %v875, 109
        %v886 = vpop.permute.xlu0 %885
        %887 = vrot.lane.b32.xlu0 %v876, 109
        %v888 = vpop.permute.xlu0 %887
        %v889 = vsel %vm486, %v882, %v884
        %v890 = vsel %vm486, %v884, %v886
        %v891 = vsel %vm486, %v886, %v888
        %895 = vst [vmem:[#allocation3 + $0xc0] sm:$0xff] %v889
        %896 = vst [vmem:[#allocation3 + $0xc8] sm:$0xff] %v890
        %897 = vst [vmem:[#allocation3 + $0xd0] sm:$0xff] %v891
        %s898 = scalar_lea.vmem [#allocation4], 8
        %v899 = vld [vmem:[%s898] sm:$0xff]
        %v900 = vld [vmem:[#allocation3] sm:$0xff]
        %v901 = vld [vmem:[#allocation3 + $0x8] sm:$0xff]
        %v902 = vld [vmem:[#allocation3 + $0x10] sm:$0xff]
        %v903 = vld [vmem:[#allocation3 + $0x18] sm:$0xff]
        %v904 = vld [vmem:[#allocation3 + $0x20] sm:$0xff]
        %v905 = vld [vmem:[#allocation3 + $0x28] sm:$0xff]
        %v906 = vld [vmem:[#allocation3 + $0x30] sm:$0xff]
        %v907 = vld [vmem:[#allocation3 + $0x38] sm:$0xff]
        %v908 = vld [vmem:[#allocation3 + $0x40] sm:$0xff]
        %v909 = vld [vmem:[#allocation3 + $0x48] sm:$0xff]
        %v910 = vld [vmem:[#allocation3 + $0x50] sm:$0xff]
        %v911 = vld [vmem:[#allocation3 + $0x58] sm:$0xff]
        %v912 = vld [vmem:[#allocation3 + $0x60] sm:$0xff]
        %v913 = vld [vmem:[#allocation3 + $0x68] sm:$0xff]
        %v914 = vld [vmem:[#allocation3 + $0x70] sm:$0xff]
        %v915 = vld [vmem:[#allocation3 + $0x78] sm:$0xff]
        %v916 = vld [vmem:[#allocation3 + $0x80] sm:$0xff]
        %v917 = vld [vmem:[#allocation3 + $0x88] sm:$0xff]
        %v918 = vld [vmem:[#allocation3 + $0x90] sm:$0xff]
        %v919 = vld [vmem:[#allocation3 + $0x98] sm:$0xff]
        %v920 = vld [vmem:[#allocation3 + $0xa0] sm:$0xff]
        %v921 = vld [vmem:[#allocation3 + $0xa8] sm:$0xff]
        %v922 = vld [vmem:[#allocation3 + $0xb0] sm:$0xff]
        %v923 = vld [vmem:[#allocation3 + $0xb8] sm:$0xff]
        %v924 = vld [vmem:[#allocation3 + $0xc0] sm:$0xff]
        %v925 = vld [vmem:[#allocation3 + $0xc8] sm:$0xff]
        %v926 = vld [vmem:[#allocation3 + $0xd0] sm:$0xff]
        %s927 = scalar_lea.vmem %s2, 8
        %v928 = vld [vmem:[%s927] sm:$0xff]
        %930 = vset.pattern.permute.xlu0 0
        %931 = vperm.xlu0 %930, %v928
        %v932 = vpop.permute.xlu0 %931
        %v935 = vsel %vm530, %v899, 0
        %937 = vmatprep.subr.mxu0 %v901
        %938 = vmatpush1.msra.mxu0 %v900
        %939 = vmatprep.subr.mxu0 %v904
        %940 = vmatpush1.msra.mxu0 %v903
        %941 = vmatprep.subr.mxu0 %v907
        %942 = vmatpush1.msra.mxu0 %v906
        %943 = vmatprep.subr.mxu0 %v910
        %944 = vmatpush1.msra.mxu0 %v909
        %945 = vmatprep.subr.mxu0 %v913
        %946 = vmatpush1.msra.mxu0 %v912
        %947 = vmatprep.subr.mxu0 %v916
        %948 = vmatpush1.msra.mxu0 %v915
        %949 = vmatprep.subr.mxu0 %v919
        %950 = vmatpush1.msra.mxu0 %v918
        %951 = vmatprep.subr.mxu0 %v922
        %952 = vmatpush1.msra.mxu0 %v921
        %953 = vmatprep.subr.mxu0 %v925
        %954 = vmatpush1.msra.mxu0 %v924
        %955 = vmatprep.subr.mxu0 0.0
        %956 = vmatpush1.msra.mxu0 0.0
        %957 = vmatprep.subr.mxu0 0.0
        %958 = vmatpush1.msra.mxu0 0.0
        %959 = vmatprep.subr.mxu0 0.0
        %960 = vmatpush1.msra.mxu0 0.0
        %961 = vmatprep.subr.mxu0 0.0
        %962 = vmatpush1.msra.mxu0 0.0
        %963 = vmatprep.subr.mxu0 0.0
        %964 = vmatpush1.msra.mxu0 0.0
        %965 = vmatprep.subr.mxu0 0.0
        %966 = vmatpush1.msra.mxu0 0.0
        %967 = vmatprep.subr.mxu0 0.0
        %968 = vmatpush1.msra.mxu0 0.0
        %969 = vmatprep.subr.mxu0 0.0
        %970 = vmatpush1.msra.mxu0 0.0
        %971 = vmatprep.subr.mxu0 0.0
        %972 = vmatpush1.msra.mxu0 0.0
        %973 = vmatprep.subr.mxu0 0.0
        %974 = vmatpush1.msra.mxu0 0.0
        %975 = vmatprep.subr.mxu0 0.0
        %976 = vmatpush1.msra.mxu0 0.0
        %977 = vmatprep.subr.mxu0 0.0
        %978 = vmatpush1.msra.mxu0 0.0
        %979 = vmatprep.subr.mxu0 0.0
        %980 = vmatpush1.msra.mxu0 0.0
        %981 = vmatprep.subr.mxu0 0.0
        %982 = vmatpush1.msra.mxu0 0.0
        %983 = vmatprep.subr.mxu0 0.0
        %984 = vmatpush1.msra.mxu0 0.0
        %985 = vmatprep.subr.mxu0 0.0
        %986 = vmatpush1.msra.mxu0 0.0
        %987 = vmatprep.subr.mxu0 0.0
        %988 = vmatpush1.msra.mxu0 0.0
        %989 = vmatprep.subr.mxu0 0.0
        %990 = vmatpush1.msra.mxu0 0.0
        %991 = vmatprep.subr.mxu0 0.0
        %992 = vmatpush1.msra.mxu0 0.0
        %993 = vmatprep.subr.mxu0 0.0
        %994 = vmatpush1.msra.mxu0 0.0
        %995 = vmatprep.subr.mxu0 0.0
        %996 = vmatpush1.msra.mxu0 0.0
        %997 = vmatprep.subr.mxu0 0.0
        %998 = vmatpush1.msra.mxu0 0.0
        %999 = vmatprep.subr.mxu0 0.0
        %1000 = vmatpush1.msra.mxu0 0.0
        %1001 = vmatprep.mubr.f32.mxu0 0.0
        %1002 = vmatmul.mubr.f32.gmra.mrb[0].mxu0 %v935
        %v1003 = vpop.f32.mrb[0].mxu0
        %v1004 = vadd.f32 %v932, %v1003
        %v1005 = vpop.f32.mrb[0].mxu0
        %v1006 = vadd.f32 %v932, %v1005
        %1007 = vdwg.mxu0
        %1008 = vmatprep.subr.mxu0 0.0
        %1009 = vmatpush1.msra.mxu0 %v902
        %1010 = vmatprep.subr.mxu0 0.0
        %1011 = vmatpush1.msra.mxu0 %v905
        %1012 = vmatprep.subr.mxu0 0.0
        %1013 = vmatpush1.msra.mxu0 %v908
        %1014 = vmatprep.subr.mxu0 0.0
        %1015 = vmatpush1.msra.mxu0 %v911
        %1016 = vmatprep.subr.mxu0 0.0
        %1017 = vmatpush1.msra.mxu0 %v914
        %1018 = vmatprep.subr.mxu0 0.0
        %1019 = vmatpush1.msra.mxu0 %v917
        %1020 = vmatprep.subr.mxu0 0.0
        %1021 = vmatpush1.msra.mxu0 %v920
        %1022 = vmatprep.subr.mxu0 0.0
        %1023 = vmatpush1.msra.mxu0 %v923
        %1024 = vmatprep.subr.mxu0 0.0
        %1025 = vmatpush1.msra.mxu0 %v926
        %1026 = vmatprep.subr.mxu0 0.0
        %1027 = vmatpush1.msra.mxu0 0.0
        %1028 = vmatprep.subr.mxu0 0.0
        %1029 = vmatpush1.msra.mxu0 0.0
        %1030 = vmatprep.subr.mxu0 0.0
        %1031 = vmatpush1.msra.mxu0 0.0
        %1032 = vmatprep.subr.mxu0 0.0
        %1033 = vmatpush1.msra.mxu0 0.0
        %1034 = vmatprep.subr.mxu0 0.0
        %1035 = vmatpush1.msra.mxu0 0.0
        %1036 = vmatprep.subr.mxu0 0.0
        %1037 = vmatpush1.msra.mxu0 0.0
        %1038 = vmatprep.subr.mxu0 0.0
        %1039 = vmatpush1.msra.mxu0 0.0
        %1040 = vmatprep.subr.mxu0 0.0
        %1041 = vmatpush1.msra.mxu0 0.0
        %1042 = vmatprep.subr.mxu0 0.0
        %1043 = vmatpush1.msra.mxu0 0.0
        %1044 = vmatprep.subr.mxu0 0.0
        %1045 = vmatpush1.msra.mxu0 0.0
        %1046 = vmatprep.subr.mxu0 0.0
        %1047 = vmatpush1.msra.mxu0 0.0
        %1048 = vmatprep.subr.mxu0 0.0
        %1049 = vmatpush1.msra.mxu0 0.0
        %1050 = vmatprep.subr.mxu0 0.0
        %1051 = vmatpush1.msra.mxu0 0.0
        %1052 = vmatprep.subr.mxu0 0.0
        %1053 = vmatpush1.msra.mxu0 0.0
        %1054 = vmatprep.subr.mxu0 0.0
        %1055 = vmatpush1.msra.mxu0 0.0
        %1056 = vmatprep.subr.mxu0 0.0
        %1057 = vmatpush1.msra.mxu0 0.0
        %1058 = vmatprep.subr.mxu0 0.0
        %1059 = vmatpush1.msra.mxu0 0.0
        %1060 = vmatprep.subr.mxu0 0.0
        %1061 = vmatpush1.msra.mxu0 0.0
        %1062 = vmatprep.subr.mxu0 0.0
        %1063 = vmatpush1.msra.mxu0 0.0
        %1064 = vmatprep.subr.mxu0 0.0
        %1065 = vmatpush1.msra.mxu0 0.0
        %1066 = vmatprep.subr.mxu0 0.0
        %1067 = vmatpush1.msra.mxu0 0.0
        %1068 = vmatprep.subr.mxu0 0.0
        %1069 = vmatpush1.msra.mxu0 0.0
        %1070 = vmatprep.subr.mxu0 0.0
        %1071 = vmatpush1.msra.mxu0 0.0
        %1072 = vmatprep.mubr.f32.mxu0 0.0
        %1073 = vmatmul.mubr.f32.gmra.mrb[0].mxu0 %v935
        %v1074 = vpop.f32.mrb[0].mxu0
        %v1075 = vadd.f32 %v932, %v1074
        %v1076 = vpop.f32.mrb[0].mxu0
        %1077 = vdwg.mxu0
        %v1078 = vadd.f32 %v268, %v1004
        %v1079 = vadd.f32 %v269, %v1006
        %v1080 = vadd.f32 %v270, %v1075
        %v1081 = vmul.f32 %v1078, %v265
        %v1082 = vmul.f32 %v1079, %v266
        %v1083 = vmul.f32 %v1080, %v267
        %1084 = vst [vmem:[#allocation2 + $0x8] sm:$0xff] %v1081
        %1085 = vst [vmem:[#allocation2 + $0x10] sm:$0xff] %v1082
        %1086 = vst [vmem:[#allocation2 + $0x18] sm:$0xff] %v1083
        %v1087 = vld [vmem:[#allocation2] sm:$0xff]
        %v1088 = vld [vmem:[#allocation2 + $0x8] sm:$0xff]
        %v1089 = vld [vmem:[#allocation2 + $0x10] sm:$0xff]
        %v1090 = vld [vmem:[#allocation2 + $0x18] sm:$0xff]
        %1095 = vrot.lane.b32.xlu0 %v1087, 19
        %v1096 = vpop.permute.xlu0 %1095
        %1097 = vrot.lane.b32.xlu0 %v1088, 19
        %v1098 = vpop.permute.xlu0 %1097
        %1099 = vrot.lane.b32.xlu0 %v1089, 19
        %v1100 = vpop.permute.xlu0 %1099
        %1101 = vrot.lane.b32.xlu0 %v1090, 19
        %v1102 = vpop.permute.xlu0 %1101
        %v1103 = vsel %vm298, %v1096, %v1098
        %v1104 = vsel %vm298, %v1098, %v1100
        %v1105 = vsel %vm298, %v1100, %v1102
        %1109 = vst [vmem:[#allocation3] sm:$0xff] %v1103
        %1110 = vst [vmem:[#allocation3 + $0x8] sm:$0xff] %v1104
        %1111 = vst [vmem:[#allocation3 + $0x10] sm:$0xff] %v1105
        %v1112 = vld [vmem:[#allocation2] sm:$0xff]
        %v1113 = vld [vmem:[#allocation2 + $0x8] sm:$0xff]
        %v1114 = vld [vmem:[#allocation2 + $0x10] sm:$0xff]
        %v1115 = vld [vmem:[#allocation2 + $0x18] sm:$0xff]
        %1120 = vrot.lane.b32.xlu0 %v1112, 18
        %v1121 = vpop.permute.xlu0 %1120
        %1122 = vrot.lane.b32.xlu0 %v1113, 18
        %v1123 = vpop.permute.xlu0 %1122
        %1124 = vrot.lane.b32.xlu0 %v1114, 18
        %v1125 = vpop.permute.xlu0 %1124
        %1126 = vrot.lane.b32.xlu0 %v1115, 18
        %v1127 = vpop.permute.xlu0 %1126
        %v1128 = vsel %vm324, %v1121, %v1123
        %v1129 = vsel %vm324, %v1123, %v1125
        %v1130 = vsel %vm324, %v1125, %v1127
        %1134 = vst [vmem:[#allocation3 + $0x18] sm:$0xff] %v1128
        %1135 = vst [vmem:[#allocation3 + $0x20] sm:$0xff] %v1129
        %1136 = vst [vmem:[#allocation3 + $0x28] sm:$0xff] %v1130
        %v1137 = vld [vmem:[#allocation2] sm:$0xff]
        %v1138 = vld [vmem:[#allocation2 + $0x8] sm:$0xff]
        %v1139 = vld [vmem:[#allocation2 + $0x10] sm:$0xff]
        %v1140 = vld [vmem:[#allocation2 + $0x18] sm:$0xff]
        %1145 = vrot.lane.b32.xlu0 %v1137, 17
        %v1146 = vpop.permute.xlu0 %1145
        %1147 = vrot.lane.b32.xlu0 %v1138, 17
        %v1148 = vpop.permute.xlu0 %1147
        %1149 = vrot.lane.b32.xlu0 %v1139, 17
        %v1150 = vpop.permute.xlu0 %1149
        %1151 = vrot.lane.b32.xlu0 %v1140, 17
        %v1152 = vpop.permute.xlu0 %1151
        %v1153 = vsel %vm350, %v1146, %v1148
        %v1154 = vsel %vm350, %v1148, %v1150
        %v1155 = vsel %vm350, %v1150, %v1152
        %1159 = vst [vmem:[#allocation3 + $0x30] sm:$0xff] %v1153
        %1160 = vst [vmem:[#allocation3 + $0x38] sm:$0xff] %v1154
        %1161 = vst [vmem:[#allocation3 + $0x40] sm:$0xff] %v1155
        %v1162 = vld [vmem:[#allocation2] sm:$0xff]
        %v1163 = vld [vmem:[#allocation2 + $0x8] sm:$0xff]
        %v1164 = vld [vmem:[#allocation2 + $0x10] sm:$0xff]
        %v1165 = vld [vmem:[#allocation2 + $0x18] sm:$0xff]
        %1170 = vrot.lane.b32.xlu0 %v1162, 1
        %v1171 = vpop.permute.xlu0 %1170
        %1172 = vrot.lane.b32.xlu0 %v1163, 1
        %v1173 = vpop.permute.xlu0 %1172
        %1174 = vrot.lane.b32.xlu0 %v1164, 1
        %v1175 = vpop.permute.xlu0 %1174
        %1176 = vrot.lane.b32.xlu0 %v1165, 1
        %v1177 = vpop.permute.xlu0 %1176
        %v1178 = vsel %vm376, %v1171, %v1173
        %v1179 = vsel %vm376, %v1173, %v1175
        %v1180 = vsel %vm376, %v1175, %v1177
        %1184 = vst [vmem:[#allocation3 + $0x48] sm:$0xff] %v1178
        %1185 = vst [vmem:[#allocation3 + $0x50] sm:$0xff] %v1179
        %1186 = vst [vmem:[#allocation3 + $0x58] sm:$0xff] %v1180
        %v1187 = vld [vmem:[#allocation2 + $0x8] sm:$0xff]
        %v1188 = vld [vmem:[#allocation2 + $0x10] sm:$0xff]
        %v1189 = vld [vmem:[#allocation2 + $0x18] sm:$0xff]
        %1190 = vst [vmem:[#allocation3 + $0x60] sm:$0xff] %v1187
        %1191 = vst [vmem:[#allocation3 + $0x68] sm:$0xff] %v1188
        %1192 = vst [vmem:[#allocation3 + $0x70] sm:$0xff] %v1189
        %v1193 = vld [vmem:[#allocation2 + $0x8] sm:$0xff]
        %v1194 = vld [vmem:[#allocation2 + $0x10] sm:$0xff]
        %v1195 = vld [vmem:[#allocation2 + $0x18] sm:$0xff]
        %v1196 = vld [vmem:[#allocation2 + $0x20] sm:$0xff]
        %1201 = vrot.lane.b32.xlu0 %v1193, 127
        %v1202 = vpop.permute.xlu0 %1201
        %1203 = vrot.lane.b32.xlu0 %v1194, 127
        %v1204 = vpop.permute.xlu0 %1203
        %1205 = vrot.lane.b32.xlu0 %v1195, 127
        %v1206 = vpop.permute.xlu0 %1205
        %1207 = vrot.lane.b32.xlu0 %v1196, 127
        %v1208 = vpop.permute.xlu0 %1207
        %v1209 = vsel %vm408, %v1202, %v1204
        %v1210 = vsel %vm408, %v1204, %v1206
        %v1211 = vsel %vm408, %v1206, %v1208
        %1215 = vst [vmem:[#allocation3 + $0x78] sm:$0xff] %v1209
        %1216 = vst [vmem:[#allocation3 + $0x80] sm:$0xff] %v1210
        %1217 = vst [vmem:[#allocation3 + $0x88] sm:$0xff] %v1211
        %v1218 = vld [vmem:[#allocation2 + $0x8] sm:$0xff]
        %v1219 = vld [vmem:[#allocation2 + $0x10] sm:$0xff]
        %v1220 = vld [vmem:[#allocation2 + $0x18] sm:$0xff]
        %v1221 = vld [vmem:[#allocation2 + $0x20] sm:$0xff]
        %1226 = vrot.lane.b32.xlu0 %v1218, 111
        %v1227 = vpop.permute.xlu0 %1226
        %1228 = vrot.lane.b32.xlu0 %v1219, 111
        %v1229 = vpop.permute.xlu0 %1228
        %1230 = vrot.lane.b32.xlu0 %v1220, 111
        %v1231 = vpop.permute.xlu0 %1230
        %1232 = vrot.lane.b32.xlu0 %v1221, 111
        %v1233 = vpop.permute.xlu0 %1232
        %v1234 = vsel %vm434, %v1227, %v1229
        %v1235 = vsel %vm434, %v1229, %v1231
        %v1236 = vsel %vm434, %v1231, %v1233
        %1240 = vst [vmem:[#allocation3 + $0x90] sm:$0xff] %v1234
        %1241 = vst [vmem:[#allocation3 + $0x98] sm:$0xff] %v1235
        %1242 = vst [vmem:[#allocation3 + $0xa0] sm:$0xff] %v1236
        %v1243 = vld [vmem:[#allocation2 + $0x8] sm:$0xff]
        %v1244 = vld [vmem:[#allocation2 + $0x10] sm:$0xff]
        %v1245 = vld [vmem:[#allocation2 + $0x18] sm:$0xff]
        %v1246 = vld [vmem:[#allocation2 + $0x20] sm:$0xff]
        %1251 = vrot.lane.b32.xlu0 %v1243, 110
        %v1252 = vpop.permute.xlu0 %1251
        %1253 = vrot.lane.b32.xlu0 %v1244, 110
        %v1254 = vpop.permute.xlu0 %1253
        %1255 = vrot.lane.b32.xlu0 %v1245, 110
        %v1256 = vpop.permute.xlu0 %1255
        %1257 = vrot.lane.b32.xlu0 %v1246, 110
        %v1258 = vpop.permute.xlu0 %1257
        %v1259 = vsel %vm460, %v1252, %v1254
        %v1260 = vsel %vm460, %v1254, %v1256
        %v1261 = vsel %vm460, %v1256, %v1258
        %1265 = vst [vmem:[#allocation3 + $0xa8] sm:$0xff] %v1259
        %1266 = vst [vmem:[#allocation3 + $0xb0] sm:$0xff] %v1260
        %1267 = vst [vmem:[#allocation3 + $0xb8] sm:$0xff] %v1261
        %v1268 = vld [vmem:[#allocation2 + $0x8] sm:$0xff]
        %v1269 = vld [vmem:[#allocation2 + $0x10] sm:$0xff]
        %v1270 = vld [vmem:[#allocation2 + $0x18] sm:$0xff]
        %v1271 = vld [vmem:[#allocation2 + $0x20] sm:$0xff]
        %1276 = vrot.lane.b32.xlu0 %v1268, 109
        %v1277 = vpop.permute.xlu0 %1276
        %1278 = vrot.lane.b32.xlu0 %v1269, 109
        %v1279 = vpop.permute.xlu0 %1278
        %1280 = vrot.lane.b32.xlu0 %v1270, 109
        %v1281 = vpop.permute.xlu0 %1280
        %1282 = vrot.lane.b32.xlu0 %v1271, 109
        %v1283 = vpop.permute.xlu0 %1282
        %v1284 = vsel %vm486, %v1277, %v1279
        %v1285 = vsel %vm486, %v1279, %v1281
        %v1286 = vsel %vm486, %v1281, %v1283
        %1290 = vst [vmem:[#allocation3 + $0xc0] sm:$0xff] %v1284
        %1291 = vst [vmem:[#allocation3 + $0xc8] sm:$0xff] %v1285
        %1292 = vst [vmem:[#allocation3 + $0xd0] sm:$0xff] %v1286
        %s1293 = scalar_lea.vmem [#allocation4], 16
        %v1294 = vld [vmem:[%s1293] sm:$0xff]
        %v1295 = vld [vmem:[#allocation3] sm:$0xff]
        %v1296 = vld [vmem:[#allocation3 + $0x8] sm:$0xff]
        %v1297 = vld [vmem:[#allocation3 + $0x10] sm:$0xff]
        %v1298 = vld [vmem:[#allocation3 + $0x18] sm:$0xff]
        %v1299 = vld [vmem:[#allocation3 + $0x20] sm:$0xff]
        %v1300 = vld [vmem:[#allocation3 + $0x28] sm:$0xff]
        %v1301 = vld [vmem:[#allocation3 + $0x30] sm:$0xff]
        %v1302 = vld [vmem:[#allocation3 + $0x38] sm:$0xff]
        %v1303 = vld [vmem:[#allocation3 + $0x40] sm:$0xff]
        %v1304 = vld [vmem:[#allocation3 + $0x48] sm:$0xff]
        %v1305 = vld [vmem:[#allocation3 + $0x50] sm:$0xff]
        %v1306 = vld [vmem:[#allocation3 + $0x58] sm:$0xff]
        %v1307 = vld [vmem:[#allocation3 + $0x60] sm:$0xff]
        %v1308 = vld [vmem:[#allocation3 + $0x68] sm:$0xff]
        %v1309 = vld [vmem:[#allocation3 + $0x70] sm:$0xff]
        %v1310 = vld [vmem:[#allocation3 + $0x78] sm:$0xff]
        %v1311 = vld [vmem:[#allocation3 + $0x80] sm:$0xff]
        %v1312 = vld [vmem:[#allocation3 + $0x88] sm:$0xff]
        %v1313 = vld [vmem:[#allocation3 + $0x90] sm:$0xff]
        %v1314 = vld [vmem:[#allocation3 + $0x98] sm:$0xff]
        %v1315 = vld [vmem:[#allocation3 + $0xa0] sm:$0xff]
        %v1316 = vld [vmem:[#allocation3 + $0xa8] sm:$0xff]
        %v1317 = vld [vmem:[#allocation3 + $0xb0] sm:$0xff]
        %v1318 = vld [vmem:[#allocation3 + $0xb8] sm:$0xff]
        %v1319 = vld [vmem:[#allocation3 + $0xc0] sm:$0xff]
        %v1320 = vld [vmem:[#allocation3 + $0xc8] sm:$0xff]
        %v1321 = vld [vmem:[#allocation3 + $0xd0] sm:$0xff]
        %s1322 = scalar_lea.vmem %s2, 16
        %v1323 = vld [vmem:[%s1322] sm:$0xff]
        %1325 = vset.pattern.permute.xlu0 0
        %1326 = vperm.xlu0 %1325, %v1323
        %v1327 = vpop.permute.xlu0 %1326
        %v1330 = vsel %vm530, %v1294, 0
        %1332 = vmatprep.subr.mxu0 %v1296
        %1333 = vmatpush1.msra.mxu0 %v1295
        %1334 = vmatprep.subr.mxu0 %v1299
        %1335 = vmatpush1.msra.mxu0 %v1298
        %1336 = vmatprep.subr.mxu0 %v1302
        %1337 = vmatpush1.msra.mxu0 %v1301
        %1338 = vmatprep.subr.mxu0 %v1305
        %1339 = vmatpush1.msra.mxu0 %v1304
        %1340 = vmatprep.subr.mxu0 %v1308
        %1341 = vmatpush1.msra.mxu0 %v1307
        %1342 = vmatprep.subr.mxu0 %v1311
        %1343 = vmatpush1.msra.mxu0 %v1310
        %1344 = vmatprep.subr.mxu0 %v1314
        %1345 = vmatpush1.msra.mxu0 %v1313
        %1346 = vmatprep.subr.mxu0 %v1317
        %1347 = vmatpush1.msra.mxu0 %v1316
        %1348 = vmatprep.subr.mxu0 %v1320
        %1349 = vmatpush1.msra.mxu0 %v1319
        %1350 = vmatprep.subr.mxu0 0.0
        %1351 = vmatpush1.msra.mxu0 0.0
        %1352 = vmatprep.subr.mxu0 0.0
        %1353 = vmatpush1.msra.mxu0 0.0
        %1354 = vmatprep.subr.mxu0 0.0
        %1355 = vmatpush1.msra.mxu0 0.0
        %1356 = vmatprep.subr.mxu0 0.0
        %1357 = vmatpush1.msra.mxu0 0.0
        %1358 = vmatprep.subr.mxu0 0.0
        %1359 = vmatpush1.msra.mxu0 0.0
        %1360 = vmatprep.subr.mxu0 0.0
        %1361 = vmatpush1.msra.mxu0 0.0
        %1362 = vmatprep.subr.mxu0 0.0
        %1363 = vmatpush1.msra.mxu0 0.0
        %1364 = vmatprep.subr.mxu0 0.0
        %1365 = vmatpush1.msra.mxu0 0.0
        %1366 = vmatprep.subr.mxu0 0.0
        %1367 = vmatpush1.msra.mxu0 0.0
        %1368 = vmatprep.subr.mxu0 0.0
        %1369 = vmatpush1.msra.mxu0 0.0
        %1370 = vmatprep.subr.mxu0 0.0
        %1371 = vmatpush1.msra.mxu0 0.0
        %1372 = vmatprep.subr.mxu0 0.0
        %1373 = vmatpush1.msra.mxu0 0.0
        %1374 = vmatprep.subr.mxu0 0.0
        %1375 = vmatpush1.msra.mxu0 0.0
        %1376 = vmatprep.subr.mxu0 0.0
        %1377 = vmatpush1.msra.mxu0 0.0
        %1378 = vmatprep.subr.mxu0 0.0
        %1379 = vmatpush1.msra.mxu0 0.0
        %1380 = vmatprep.subr.mxu0 0.0
        %1381 = vmatpush1.msra.mxu0 0.0
        %1382 = vmatprep.subr.mxu0 0.0
        %1383 = vmatpush1.msra.mxu0 0.0
        %1384 = vmatprep.subr.mxu0 0.0
        %1385 = vmatpush1.msra.mxu0 0.0
        %1386 = vmatprep.subr.mxu0 0.0
        %1387 = vmatpush1.msra.mxu0 0.0
        %1388 = vmatprep.subr.mxu0 0.0
        %1389 = vmatpush1.msra.mxu0 0.0
        %1390 = vmatprep.subr.mxu0 0.0
        %1391 = vmatpush1.msra.mxu0 0.0
        %1392 = vmatprep.subr.mxu0 0.0
        %1393 = vmatpush1.msra.mxu0 0.0
        %1394 = vmatprep.subr.mxu0 0.0
        %1395 = vmatpush1.msra.mxu0 0.0
        %1396 = vmatprep.mubr.f32.mxu0 0.0
        %1397 = vmatmul.mubr.f32.gmra.mrb[0].mxu0 %v1330
        %v1398 = vpop.f32.mrb[0].mxu0
        %v1399 = vadd.f32 %v1327, %v1398
        %v1400 = vpop.f32.mrb[0].mxu0
        %v1401 = vadd.f32 %v1327, %v1400
        %1402 = vdwg.mxu0
        %1403 = vmatprep.subr.mxu0 0.0
        %1404 = vmatpush1.msra.mxu0 %v1297
        %1405 = vmatprep.subr.mxu0 0.0
        %1406 = vmatpush1.msra.mxu0 %v1300
        %1407 = vmatprep.subr.mxu0 0.0
        %1408 = vmatpush1.msra.mxu0 %v1303
        %1409 = vmatprep.subr.mxu0 0.0
        %1410 = vmatpush1.msra.mxu0 %v1306
        %1411 = vmatprep.subr.mxu0 0.0
        %1412 = vmatpush1.msra.mxu0 %v1309
        %1413 = vmatprep.subr.mxu0 0.0
        %1414 = vmatpush1.msra.mxu0 %v1312
        %1415 = vmatprep.subr.mxu0 0.0
        %1416 = vmatpush1.msra.mxu0 %v1315
        %1417 = vmatprep.subr.mxu0 0.0
        %1418 = vmatpush1.msra.mxu0 %v1318
        %1419 = vmatprep.subr.mxu0 0.0
        %1420 = vmatpush1.msra.mxu0 %v1321
        %1421 = vmatprep.subr.mxu0 0.0
        %1422 = vmatpush1.msra.mxu0 0.0
        %1423 = vmatprep.subr.mxu0 0.0
        %1424 = vmatpush1.msra.mxu0 0.0
        %1425 = vmatprep.subr.mxu0 0.0
        %1426 = vmatpush1.msra.mxu0 0.0
        %1427 = vmatprep.subr.mxu0 0.0
        %1428 = vmatpush1.msra.mxu0 0.0
        %1429 = vmatprep.subr.mxu0 0.0
        %1430 = vmatpush1.msra.mxu0 0.0
        %1431 = vmatprep.subr.mxu0 0.0
        %1432 = vmatpush1.msra.mxu0 0.0
        %1433 = vmatprep.subr.mxu0 0.0
        %1434 = vmatpush1.msra.mxu0 0.0
        %1435 = vmatprep.subr.mxu0 0.0
        %1436 = vmatpush1.msra.mxu0 0.0
        %1437 = vmatprep.subr.mxu0 0.0
        %1438 = vmatpush1.msra.mxu0 0.0
        %1439 = vmatprep.subr.mxu0 0.0
        %1440 = vmatpush1.msra.mxu0 0.0
        %1441 = vmatprep.subr.mxu0 0.0
        %1442 = vmatpush1.msra.mxu0 0.0
        %1443 = vmatprep.subr.mxu0 0.0
        %1444 = vmatpush1.msra.mxu0 0.0
        %1445 = vmatprep.subr.mxu0 0.0
        %1446 = vmatpush1.msra.mxu0 0.0
        %1447 = vmatprep.subr.mxu0 0.0
        %1448 = vmatpush1.msra.mxu0 0.0
        %1449 = vmatprep.subr.mxu0 0.0
        %1450 = vmatpush1.msra.mxu0 0.0
        %1451 = vmatprep.subr.mxu0 0.0
        %1452 = vmatpush1.msra.mxu0 0.0
        %1453 = vmatprep.subr.mxu0 0.0
        %1454 = vmatpush1.msra.mxu0 0.0
        %1455 = vmatprep.subr.mxu0 0.0
        %1456 = vmatpush1.msra.mxu0 0.0
        %1457 = vmatprep.subr.mxu0 0.0
        %1458 = vmatpush1.msra.mxu0 0.0
        %1459 = vmatprep.subr.mxu0 0.0
        %1460 = vmatpush1.msra.mxu0 0.0
        %1461 = vmatprep.subr.mxu0 0.0
        %1462 = vmatpush1.msra.mxu0 0.0
        %1463 = vmatprep.subr.mxu0 0.0
        %1464 = vmatpush1.msra.mxu0 0.0
        %1465 = vmatprep.subr.mxu0 0.0
        %1466 = vmatpush1.msra.mxu0 0.0
        %1467 = vmatprep.mubr.f32.mxu0 0.0
        %1468 = vmatmul.mubr.f32.gmra.mrb[0].mxu0 %v1330
        %v1469 = vpop.f32.mrb[0].mxu0
        %v1470 = vadd.f32 %v1327, %v1469
        %v1471 = vpop.f32.mrb[0].mxu0
        %1472 = vdwg.mxu0
        %s1473 = sld [smem:[#allocation10 + $0x1]]
        %vm1474 = vcmp.ge.f32.partialorder %v1399, 0.0
        %vm1475 = vcmp.ge.f32.partialorder %v1401, 0.0
        %vm1476 = vcmp.ge.f32.partialorder %v1470, 0.0
        %v1477 = vstv %s1473
        %v1478 = vmul.f32 %v1477, %v1399
        %v1479 = vmul.f32 %v1477, %v1401
        %v1480 = vmul.f32 %v1477, %v1470
        %v1481 = vsel %vm1474, %v1399, %v1478
        %v1482 = vsel %vm1475, %v1401, %v1479
        %v1483 = vsel %vm1476, %v1470, %v1480
        %v1484 = vmul.f32 %v1481, %v265
        %v1485 = vmul.f32 %v1482, %v266
        %v1486 = vmul.f32 %v1483, %v267
        %1487 = vst [vmem:[#allocation2 + $0x8] sm:$0xff] %v1484
        %1488 = vst [vmem:[#allocation2 + $0x10] sm:$0xff] %v1485
        %1489 = vst [vmem:[#allocation2 + $0x18] sm:$0xff] %v1486
        %v1490 = vld [vmem:[#allocation2] sm:$0xff]
        %v1491 = vld [vmem:[#allocation2 + $0x8] sm:$0xff]
        %v1492 = vld [vmem:[#allocation2 + $0x10] sm:$0xff]
        %v1493 = vld [vmem:[#allocation2 + $0x18] sm:$0xff]
        %1498 = vrot.lane.b32.xlu0 %v1490, 19
        %v1499 = vpop.permute.xlu0 %1498
        %1500 = vrot.lane.b32.xlu0 %v1491, 19
        %v1501 = vpop.permute.xlu0 %1500
        %1502 = vrot.lane.b32.xlu0 %v1492, 19
        %v1503 = vpop.permute.xlu0 %1502
        %1504 = vrot.lane.b32.xlu0 %v1493, 19
        %v1505 = vpop.permute.xlu0 %1504
        %v1506 = vsel %vm298, %v1499, %v1501
        %v1507 = vsel %vm298, %v1501, %v1503
        %v1508 = vsel %vm298, %v1503, %v1505
        %1512 = vst [vmem:[#allocation3] sm:$0xff] %v1506
        %1513 = vst [vmem:[#allocation3 + $0x8] sm:$0xff] %v1507
        %1514 = vst [vmem:[#allocation3 + $0x10] sm:$0xff] %v1508
        %v1515 = vld [vmem:[#allocation2] sm:$0xff]
        %v1516 = vld [vmem:[#allocation2 + $0x8] sm:$0xff]
        %v1517 = vld [vmem:[#allocation2 + $0x10] sm:$0xff]
        %v1518 = vld [vmem:[#allocation2 + $0x18] sm:$0xff]
        %1523 = vrot.lane.b32.xlu0 %v1515, 18
        %v1524 = vpop.permute.xlu0 %1523
        %1525 = vrot.lane.b32.xlu0 %v1516, 18
        %v1526 = vpop.permute.xlu0 %1525
        %1527 = vrot.lane.b32.xlu0 %v1517, 18
        %v1528 = vpop.permute.xlu0 %1527
        %1529 = vrot.lane.b32.xlu0 %v1518, 18
        %v1530 = vpop.permute.xlu0 %1529
        %v1531 = vsel %vm324, %v1524, %v1526
        %v1532 = vsel %vm324, %v1526, %v1528
        %v1533 = vsel %vm324, %v1528, %v1530
        %1537 = vst [vmem:[#allocation3 + $0x18] sm:$0xff] %v1531
        %1538 = vst [vmem:[#allocation3 + $0x20] sm:$0xff] %v1532
        %1539 = vst [vmem:[#allocation3 + $0x28] sm:$0xff] %v1533
        %v1540 = vld [vmem:[#allocation2] sm:$0xff]
        %v1541 = vld [vmem:[#allocation2 + $0x8] sm:$0xff]
        %v1542 = vld [vmem:[#allocation2 + $0x10] sm:$0xff]
        %v1543 = vld [vmem:[#allocation2 + $0x18] sm:$0xff]
        %1548 = vrot.lane.b32.xlu0 %v1540, 17
        %v1549 = vpop.permute.xlu0 %1548
        %1550 = vrot.lane.b32.xlu0 %v1541, 17
        %v1551 = vpop.permute.xlu0 %1550
        %1552 = vrot.lane.b32.xlu0 %v1542, 17
        %v1553 = vpop.permute.xlu0 %1552
        %1554 = vrot.lane.b32.xlu0 %v1543, 17
        %v1555 = vpop.permute.xlu0 %1554
        %v1556 = vsel %vm350, %v1549, %v1551
        %v1557 = vsel %vm350, %v1551, %v1553
        %v1558 = vsel %vm350, %v1553, %v1555
        %1562 = vst [vmem:[#allocation3 + $0x30] sm:$0xff] %v1556
        %1563 = vst [vmem:[#allocation3 + $0x38] sm:$0xff] %v1557
        %1564 = vst [vmem:[#allocation3 + $0x40] sm:$0xff] %v1558
        %v1565 = vld [vmem:[#allocation2] sm:$0xff]
        %v1566 = vld [vmem:[#allocation2 + $0x8] sm:$0xff]
        %v1567 = vld [vmem:[#allocation2 + $0x10] sm:$0xff]
        %v1568 = vld [vmem:[#allocation2 + $0x18] sm:$0xff]
        %1573 = vrot.lane.b32.xlu0 %v1565, 1
        %v1574 = vpop.permute.xlu0 %1573
        %1575 = vrot.lane.b32.xlu0 %v1566, 1
        %v1576 = vpop.permute.xlu0 %1575
        %1577 = vrot.lane.b32.xlu0 %v1567, 1
        %v1578 = vpop.permute.xlu0 %1577
        %1579 = vrot.lane.b32.xlu0 %v1568, 1
        %v1580 = vpop.permute.xlu0 %1579
        %v1581 = vsel %vm376, %v1574, %v1576
        %v1582 = vsel %vm376, %v1576, %v1578
        %v1583 = vsel %vm376, %v1578, %v1580
        %1587 = vst [vmem:[#allocation3 + $0x48] sm:$0xff] %v1581
        %1588 = vst [vmem:[#allocation3 + $0x50] sm:$0xff] %v1582
        %1589 = vst [vmem:[#allocation3 + $0x58] sm:$0xff] %v1583
        %v1590 = vld [vmem:[#allocation2 + $0x8] sm:$0xff]
        %v1591 = vld [vmem:[#allocation2 + $0x10] sm:$0xff]
        %v1592 = vld [vmem:[#allocation2 + $0x18] sm:$0xff]
        %1593 = vst [vmem:[#allocation3 + $0x60] sm:$0xff] %v1590
        %1594 = vst [vmem:[#allocation3 + $0x68] sm:$0xff] %v1591
        %1595 = vst [vmem:[#allocation3 + $0x70] sm:$0xff] %v1592
        %v1596 = vld [vmem:[#allocation2 + $0x8] sm:$0xff]
        %v1597 = vld [vmem:[#allocation2 + $0x10] sm:$0xff]
        %v1598 = vld [vmem:[#allocation2 + $0x18] sm:$0xff]
        %v1599 = vld [vmem:[#allocation2 + $0x20] sm:$0xff]
        %1604 = vrot.lane.b32.xlu0 %v1596, 127
        %v1605 = vpop.permute.xlu0 %1604
        %1606 = vrot.lane.b32.xlu0 %v1597, 127
        %v1607 = vpop.permute.xlu0 %1606
        %1608 = vrot.lane.b32.xlu0 %v1598, 127
        %v1609 = vpop.permute.xlu0 %1608
        %1610 = vrot.lane.b32.xlu0 %v1599, 127
        %v1611 = vpop.permute.xlu0 %1610
        %v1612 = vsel %vm408, %v1605, %v1607
        %v1613 = vsel %vm408, %v1607, %v1609
        %v1614 = vsel %vm408, %v1609, %v1611
        %1618 = vst [vmem:[#allocation3 + $0x78] sm:$0xff] %v1612
        %1619 = vst [vmem:[#allocation3 + $0x80] sm:$0xff] %v1613
        %1620 = vst [vmem:[#allocation3 + $0x88] sm:$0xff] %v1614
        %v1621 = vld [vmem:[#allocation2 + $0x8] sm:$0xff]
        %v1622 = vld [vmem:[#allocation2 + $0x10] sm:$0xff]
        %v1623 = vld [vmem:[#allocation2 + $0x18] sm:$0xff]
        %v1624 = vld [vmem:[#allocation2 + $0x20] sm:$0xff]
        %1629 = vrot.lane.b32.xlu0 %v1621, 111
        %v1630 = vpop.permute.xlu0 %1629
        %1631 = vrot.lane.b32.xlu0 %v1622, 111
        %v1632 = vpop.permute.xlu0 %1631
        %1633 = vrot.lane.b32.xlu0 %v1623, 111
        %v1634 = vpop.permute.xlu0 %1633
        %1635 = vrot.lane.b32.xlu0 %v1624, 111
        %v1636 = vpop.permute.xlu0 %1635
        %v1637 = vsel %vm434, %v1630, %v1632
        %v1638 = vsel %vm434, %v1632, %v1634
        %v1639 = vsel %vm434, %v1634, %v1636
        %1643 = vst [vmem:[#allocation3 + $0x90] sm:$0xff] %v1637
        %1644 = vst [vmem:[#allocation3 + $0x98] sm:$0xff] %v1638
        %1645 = vst [vmem:[#allocation3 + $0xa0] sm:$0xff] %v1639
        %v1646 = vld [vmem:[#allocation2 + $0x8] sm:$0xff]
        %v1647 = vld [vmem:[#allocation2 + $0x10] sm:$0xff]
        %v1648 = vld [vmem:[#allocation2 + $0x18] sm:$0xff]
        %v1649 = vld [vmem:[#allocation2 + $0x20] sm:$0xff]
        %1654 = vrot.lane.b32.xlu0 %v1646, 110
        %v1655 = vpop.permute.xlu0 %1654
        %1656 = vrot.lane.b32.xlu0 %v1647, 110
        %v1657 = vpop.permute.xlu0 %1656
        %1658 = vrot.lane.b32.xlu0 %v1648, 110
        %v1659 = vpop.permute.xlu0 %1658
        %1660 = vrot.lane.b32.xlu0 %v1649, 110
        %v1661 = vpop.permute.xlu0 %1660
        %v1662 = vsel %vm460, %v1655, %v1657
        %v1663 = vsel %vm460, %v1657, %v1659
        %v1664 = vsel %vm460, %v1659, %v1661
        %1668 = vst [vmem:[#allocation3 + $0xa8] sm:$0xff] %v1662
        %1669 = vst [vmem:[#allocation3 + $0xb0] sm:$0xff] %v1663
        %1670 = vst [vmem:[#allocation3 + $0xb8] sm:$0xff] %v1664
        %v1671 = vld [vmem:[#allocation2 + $0x8] sm:$0xff]
        %v1672 = vld [vmem:[#allocation2 + $0x10] sm:$0xff]
        %v1673 = vld [vmem:[#allocation2 + $0x18] sm:$0xff]
        %v1674 = vld [vmem:[#allocation2 + $0x20] sm:$0xff]
        %1679 = vrot.lane.b32.xlu0 %v1671, 109
        %v1680 = vpop.permute.xlu0 %1679
        %1681 = vrot.lane.b32.xlu0 %v1672, 109
        %v1682 = vpop.permute.xlu0 %1681
        %1683 = vrot.lane.b32.xlu0 %v1673, 109
        %v1684 = vpop.permute.xlu0 %1683
        %1685 = vrot.lane.b32.xlu0 %v1674, 109
        %v1686 = vpop.permute.xlu0 %1685
        %v1687 = vsel %vm486, %v1680, %v1682
        %v1688 = vsel %vm486, %v1682, %v1684
        %v1689 = vsel %vm486, %v1684, %v1686
        %1693 = vst [vmem:[#allocation3 + $0xc0] sm:$0xff] %v1687
        %1694 = vst [vmem:[#allocation3 + $0xc8] sm:$0xff] %v1688
        %1695 = vst [vmem:[#allocation3 + $0xd0] sm:$0xff] %v1689
        %s1696 = scalar_lea.vmem [#allocation4], 24
        %v1697 = vld [vmem:[%s1696] sm:$0xff]
        %v1698 = vld [vmem:[#allocation3] sm:$0xff]
        %v1699 = vld [vmem:[#allocation3 + $0x8] sm:$0xff]
        %v1700 = vld [vmem:[#allocation3 + $0x10] sm:$0xff]
        %v1701 = vld [vmem:[#allocation3 + $0x18] sm:$0xff]
        %v1702 = vld [vmem:[#allocation3 + $0x20] sm:$0xff]
        %v1703 = vld [vmem:[#allocation3 + $0x28] sm:$0xff]
        %v1704 = vld [vmem:[#allocation3 + $0x30] sm:$0xff]
        %v1705 = vld [vmem:[#allocation3 + $0x38] sm:$0xff]
        %v1706 = vld [vmem:[#allocation3 + $0x40] sm:$0xff]
        %v1707 = vld [vmem:[#allocation3 + $0x48] sm:$0xff]
        %v1708 = vld [vmem:[#allocation3 + $0x50] sm:$0xff]
        %v1709 = vld [vmem:[#allocation3 + $0x58] sm:$0xff]
        %v1710 = vld [vmem:[#allocation3 + $0x60] sm:$0xff]
        %v1711 = vld [vmem:[#allocation3 + $0x68] sm:$0xff]
        %v1712 = vld [vmem:[#allocation3 + $0x70] sm:$0xff]
        %v1713 = vld [vmem:[#allocation3 + $0x78] sm:$0xff]
        %v1714 = vld [vmem:[#allocation3 + $0x80] sm:$0xff]
        %v1715 = vld [vmem:[#allocation3 + $0x88] sm:$0xff]
        %v1716 = vld [vmem:[#allocation3 + $0x90] sm:$0xff]
        %v1717 = vld [vmem:[#allocation3 + $0x98] sm:$0xff]
        %v1718 = vld [vmem:[#allocation3 + $0xa0] sm:$0xff]
        %v1719 = vld [vmem:[#allocation3 + $0xa8] sm:$0xff]
        %v1720 = vld [vmem:[#allocation3 + $0xb0] sm:$0xff]
        %v1721 = vld [vmem:[#allocation3 + $0xb8] sm:$0xff]
        %v1722 = vld [vmem:[#allocation3 + $0xc0] sm:$0xff]
        %v1723 = vld [vmem:[#allocation3 + $0xc8] sm:$0xff]
        %v1724 = vld [vmem:[#allocation3 + $0xd0] sm:$0xff]
        %s1725 = scalar_lea.vmem %s2, 24
        %v1726 = vld [vmem:[%s1725] sm:$0xff]
        %1728 = vset.pattern.permute.xlu0 0
        %1729 = vperm.xlu0 %1728, %v1726
        %v1730 = vpop.permute.xlu0 %1729
        %v1733 = vsel %vm530, %v1697, 0
        %1735 = vmatprep.subr.mxu0 %v1699
        %1736 = vmatpush1.msra.mxu0 %v1698
        %1737 = vmatprep.subr.mxu0 %v1702
        %1738 = vmatpush1.msra.mxu0 %v1701
        %1739 = vmatprep.subr.mxu0 %v1705
        %1740 = vmatpush1.msra.mxu0 %v1704
        %1741 = vmatprep.subr.mxu0 %v1708
        %1742 = vmatpush1.msra.mxu0 %v1707
        %1743 = vmatprep.subr.mxu0 %v1711
        %1744 = vmatpush1.msra.mxu0 %v1710
        %1745 = vmatprep.subr.mxu0 %v1714
        %1746 = vmatpush1.msra.mxu0 %v1713
        %1747 = vmatprep.subr.mxu0 %v1717
        %1748 = vmatpush1.msra.mxu0 %v1716
        %1749 = vmatprep.subr.mxu0 %v1720
        %1750 = vmatpush1.msra.mxu0 %v1719
        %1751 = vmatprep.subr.mxu0 %v1723
        %1752 = vmatpush1.msra.mxu0 %v1722
        %1753 = vmatprep.subr.mxu0 0.0
        %1754 = vmatpush1.msra.mxu0 0.0
        %1755 = vmatprep.subr.mxu0 0.0
        %1756 = vmatpush1.msra.mxu0 0.0
        %1757 = vmatprep.subr.mxu0 0.0
        %1758 = vmatpush1.msra.mxu0 0.0
        %1759 = vmatprep.subr.mxu0 0.0
        %1760 = vmatpush1.msra.mxu0 0.0
        %1761 = vmatprep.subr.mxu0 0.0
        %1762 = vmatpush1.msra.mxu0 0.0
        %1763 = vmatprep.subr.mxu0 0.0
        %1764 = vmatpush1.msra.mxu0 0.0
        %1765 = vmatprep.subr.mxu0 0.0
        %1766 = vmatpush1.msra.mxu0 0.0
        %1767 = vmatprep.subr.mxu0 0.0
        %1768 = vmatpush1.msra.mxu0 0.0
        %1769 = vmatprep.subr.mxu0 0.0
        %1770 = vmatpush1.msra.mxu0 0.0
        %1771 = vmatprep.subr.mxu0 0.0
        %1772 = vmatpush1.msra.mxu0 0.0
        %1773 = vmatprep.subr.mxu0 0.0
        %1774 = vmatpush1.msra.mxu0 0.0
        %1775 = vmatprep.subr.mxu0 0.0
        %1776 = vmatpush1.msra.mxu0 0.0
        %1777 = vmatprep.subr.mxu0 0.0
        %1778 = vmatpush1.msra.mxu0 0.0
        %1779 = vmatprep.subr.mxu0 0.0
        %1780 = vmatpush1.msra.mxu0 0.0
        %1781 = vmatprep.subr.mxu0 0.0
        %1782 = vmatpush1.msra.mxu0 0.0
        %1783 = vmatprep.subr.mxu0 0.0
        %1784 = vmatpush1.msra.mxu0 0.0
        %1785 = vmatprep.subr.mxu0 0.0
        %1786 = vmatpush1.msra.mxu0 0.0
        %1787 = vmatprep.subr.mxu0 0.0
        %1788 = vmatpush1.msra.mxu0 0.0
        %1789 = vmatprep.subr.mxu0 0.0
        %1790 = vmatpush1.msra.mxu0 0.0
        %1791 = vmatprep.subr.mxu0 0.0
        %1792 = vmatpush1.msra.mxu0 0.0
        %1793 = vmatprep.subr.mxu0 0.0
        %1794 = vmatpush1.msra.mxu0 0.0
        %1795 = vmatprep.subr.mxu0 0.0
        %1796 = vmatpush1.msra.mxu0 0.0
        %1797 = vmatprep.subr.mxu0 0.0
        %1798 = vmatpush1.msra.mxu0 0.0
        %1799 = vmatprep.mubr.f32.mxu0 0.0
        %1800 = vmatmul.mubr.f32.gmra.mrb[0].mxu0 %v1733
        %v1801 = vpop.f32.mrb[0].mxu0
        %v1802 = vadd.f32 %v1730, %v1801
        %v1803 = vpop.f32.mrb[0].mxu0
        %v1804 = vadd.f32 %v1730, %v1803
        %1805 = vdwg.mxu0
        %1806 = vmatprep.subr.mxu0 0.0
        %1807 = vmatpush1.msra.mxu0 %v1700
        %1808 = vmatprep.subr.mxu0 0.0
        %1809 = vmatpush1.msra.mxu0 %v1703
        %1810 = vmatprep.subr.mxu0 0.0
        %1811 = vmatpush1.msra.mxu0 %v1706
        %1812 = vmatprep.subr.mxu0 0.0
        %1813 = vmatpush1.msra.mxu0 %v1709
        %1814 = vmatprep.subr.mxu0 0.0
        %1815 = vmatpush1.msra.mxu0 %v1712
        %1816 = vmatprep.subr.mxu0 0.0
        %1817 = vmatpush1.msra.mxu0 %v1715
        %1818 = vmatprep.subr.mxu0 0.0
        %1819 = vmatpush1.msra.mxu0 %v1718
        %1820 = vmatprep.subr.mxu0 0.0
        %1821 = vmatpush1.msra.mxu0 %v1721
        %1822 = vmatprep.subr.mxu0 0.0
        %1823 = vmatpush1.msra.mxu0 %v1724
        %1824 = vmatprep.subr.mxu0 0.0
        %1825 = vmatpush1.msra.mxu0 0.0
        %1826 = vmatprep.subr.mxu0 0.0
        %1827 = vmatpush1.msra.mxu0 0.0
        %1828 = vmatprep.subr.mxu0 0.0
        %1829 = vmatpush1.msra.mxu0 0.0
        %1830 = vmatprep.subr.mxu0 0.0
        %1831 = vmatpush1.msra.mxu0 0.0
        %1832 = vmatprep.subr.mxu0 0.0
        %1833 = vmatpush1.msra.mxu0 0.0
        %1834 = vmatprep.subr.mxu0 0.0
        %1835 = vmatpush1.msra.mxu0 0.0
        %1836 = vmatprep.subr.mxu0 0.0
        %1837 = vmatpush1.msra.mxu0 0.0
        %1838 = vmatprep.subr.mxu0 0.0
        %1839 = vmatpush1.msra.mxu0 0.0
        %1840 = vmatprep.subr.mxu0 0.0
        %1841 = vmatpush1.msra.mxu0 0.0
        %1842 = vmatprep.subr.mxu0 0.0
        %1843 = vmatpush1.msra.mxu0 0.0
        %1844 = vmatprep.subr.mxu0 0.0
        %1845 = vmatpush1.msra.mxu0 0.0
        %1846 = vmatprep.subr.mxu0 0.0
        %1847 = vmatpush1.msra.mxu0 0.0
        %1848 = vmatprep.subr.mxu0 0.0
        %1849 = vmatpush1.msra.mxu0 0.0
        %1850 = vmatprep.subr.mxu0 0.0
        %1851 = vmatpush1.msra.mxu0 0.0
        %1852 = vmatprep.subr.mxu0 0.0
        %1853 = vmatpush1.msra.mxu0 0.0
        %1854 = vmatprep.subr.mxu0 0.0
        %1855 = vmatpush1.msra.mxu0 0.0
        %1856 = vmatprep.subr.mxu0 0.0
        %1857 = vmatpush1.msra.mxu0 0.0
        %1858 = vmatprep.subr.mxu0 0.0
        %1859 = vmatpush1.msra.mxu0 0.0
        %1860 = vmatprep.subr.mxu0 0.0
        %1861 = vmatpush1.msra.mxu0 0.0
        %1862 = vmatprep.subr.mxu0 0.0
        %1863 = vmatpush1.msra.mxu0 0.0
        %1864 = vmatprep.subr.mxu0 0.0
        %1865 = vmatpush1.msra.mxu0 0.0
        %1866 = vmatprep.subr.mxu0 0.0
        %1867 = vmatpush1.msra.mxu0 0.0
        %1868 = vmatprep.subr.mxu0 0.0
        %1869 = vmatpush1.msra.mxu0 0.0
        %1870 = vmatprep.mubr.f32.mxu0 0.0
        %1871 = vmatmul.mubr.f32.gmra.mrb[0].mxu0 %v1733
        %v1872 = vpop.f32.mrb[0].mxu0
        %v1873 = vadd.f32 %v1730, %v1872
        %v1874 = vpop.f32.mrb[0].mxu0
        %1875 = vdwg.mxu0
        %v1876 = vadd.f32 %v1078, %v1802
        %v1877 = vadd.f32 %v1079, %v1804
        %v1878 = vadd.f32 %v1080, %v1873
        %v1879 = vmul.f32 %v1876, %v265
        %v1880 = vmul.f32 %v1877, %v266
        %v1881 = vmul.f32 %v1878, %v267
        %1882 = vst [vmem:[#allocation2 + $0x8] sm:$0xff] %v1879
        %1883 = vst [vmem:[#allocation2 + $0x10] sm:$0xff] %v1880
        %1884 = vst [vmem:[#allocation2 + $0x18] sm:$0xff] %v1881
        %v1885 = vld [vmem:[#allocation2] sm:$0xff]
        %v1886 = vld [vmem:[#allocation2 + $0x8] sm:$0xff]
        %v1887 = vld [vmem:[#allocation2 + $0x10] sm:$0xff]
        %v1888 = vld [vmem:[#allocation2 + $0x18] sm:$0xff]
        %1893 = vrot.lane.b32.xlu0 %v1885, 19
        %v1894 = vpop.permute.xlu0 %1893
        %1895 = vrot.lane.b32.xlu0 %v1886, 19
        %v1896 = vpop.permute.xlu0 %1895
        %1897 = vrot.lane.b32.xlu0 %v1887, 19
        %v1898 = vpop.permute.xlu0 %1897
        %1899 = vrot.lane.b32.xlu0 %v1888, 19
        %v1900 = vpop.permute.xlu0 %1899
        %v1901 = vsel %vm298, %v1894, %v1896
        %v1902 = vsel %vm298, %v1896, %v1898
        %v1903 = vsel %vm298, %v1898, %v1900
        %1907 = vst [vmem:[#allocation3] sm:$0xff] %v1901
        %1908 = vst [vmem:[#allocation3 + $0x8] sm:$0xff] %v1902
        %1909 = vst [vmem:[#allocation3 + $0x10] sm:$0xff] %v1903
        %v1910 = vld [vmem:[#allocation2] sm:$0xff]
        %v1911 = vld [vmem:[#allocation2 + $0x8] sm:$0xff]
        %v1912 = vld [vmem:[#allocation2 + $0x10] sm:$0xff]
        %v1913 = vld [vmem:[#allocation2 + $0x18] sm:$0xff]
        %1918 = vrot.lane.b32.xlu0 %v1910, 18
        %v1919 = vpop.permute.xlu0 %1918
        %1920 = vrot.lane.b32.xlu0 %v1911, 18
        %v1921 = vpop.permute.xlu0 %1920
        %1922 = vrot.lane.b32.xlu0 %v1912, 18
        %v1923 = vpop.permute.xlu0 %1922
        %1924 = vrot.lane.b32.xlu0 %v1913, 18
        %v1925 = vpop.permute.xlu0 %1924
        %v1926 = vsel %vm324, %v1919, %v1921
        %v1927 = vsel %vm324, %v1921, %v1923
        %v1928 = vsel %vm324, %v1923, %v1925
        %1932 = vst [vmem:[#allocation3 + $0x18] sm:$0xff] %v1926
        %1933 = vst [vmem:[#allocation3 + $0x20] sm:$0xff] %v1927
        %1934 = vst [vmem:[#allocation3 + $0x28] sm:$0xff] %v1928
        %v1935 = vld [vmem:[#allocation2] sm:$0xff]
        %v1936 = vld [vmem:[#allocation2 + $0x8] sm:$0xff]
        %v1937 = vld [vmem:[#allocation2 + $0x10] sm:$0xff]
        %v1938 = vld [vmem:[#allocation2 + $0x18] sm:$0xff]
        %1943 = vrot.lane.b32.xlu0 %v1935, 17
        %v1944 = vpop.permute.xlu0 %1943
        %1945 = vrot.lane.b32.xlu0 %v1936, 17
        %v1946 = vpop.permute.xlu0 %1945
        %1947 = vrot.lane.b32.xlu0 %v1937, 17
        %v1948 = vpop.permute.xlu0 %1947
        %1949 = vrot.lane.b32.xlu0 %v1938, 17
        %v1950 = vpop.permute.xlu0 %1949
        %v1951 = vsel %vm350, %v1944, %v1946
        %v1952 = vsel %vm350, %v1946, %v1948
        %v1953 = vsel %vm350, %v1948, %v1950
        %1957 = vst [vmem:[#allocation3 + $0x30] sm:$0xff] %v1951
        %1958 = vst [vmem:[#allocation3 + $0x38] sm:$0xff] %v1952
        %1959 = vst [vmem:[#allocation3 + $0x40] sm:$0xff] %v1953
        %v1960 = vld [vmem:[#allocation2] sm:$0xff]
        %v1961 = vld [vmem:[#allocation2 + $0x8] sm:$0xff]
        %v1962 = vld [vmem:[#allocation2 + $0x10] sm:$0xff]
        %v1963 = vld [vmem:[#allocation2 + $0x18] sm:$0xff]
        %1968 = vrot.lane.b32.xlu0 %v1960, 1
        %v1969 = vpop.permute.xlu0 %1968
        %1970 = vrot.lane.b32.xlu0 %v1961, 1
        %v1971 = vpop.permute.xlu0 %1970
        %1972 = vrot.lane.b32.xlu0 %v1962, 1
        %v1973 = vpop.permute.xlu0 %1972
        %1974 = vrot.lane.b32.xlu0 %v1963, 1
        %v1975 = vpop.permute.xlu0 %1974
        %v1976 = vsel %vm376, %v1969, %v1971
        %v1977 = vsel %vm376, %v1971, %v1973
        %v1978 = vsel %vm376, %v1973, %v1975
        %1982 = vst [vmem:[#allocation3 + $0x48] sm:$0xff] %v1976
        %1983 = vst [vmem:[#allocation3 + $0x50] sm:$0xff] %v1977
        %1984 = vst [vmem:[#allocation3 + $0x58] sm:$0xff] %v1978
        %v1985 = vld [vmem:[#allocation2 + $0x8] sm:$0xff]
        %v1986 = vld [vmem:[#allocation2 + $0x10] sm:$0xff]
        %v1987 = vld [vmem:[#allocation2 + $0x18] sm:$0xff]
        %1988 = vst [vmem:[#allocation3 + $0x60] sm:$0xff] %v1985
        %1989 = vst [vmem:[#allocation3 + $0x68] sm:$0xff] %v1986
        %1990 = vst [vmem:[#allocation3 + $0x70] sm:$0xff] %v1987
        %v1991 = vld [vmem:[#allocation2 + $0x8] sm:$0xff]
        %v1992 = vld [vmem:[#allocation2 + $0x10] sm:$0xff]
        %v1993 = vld [vmem:[#allocation2 + $0x18] sm:$0xff]
        %v1994 = vld [vmem:[#allocation2 + $0x20] sm:$0xff]
        %1999 = vrot.lane.b32.xlu0 %v1991, 127
        %v2000 = vpop.permute.xlu0 %1999
        %2001 = vrot.lane.b32.xlu0 %v1992, 127
        %v2002 = vpop.permute.xlu0 %2001
        %2003 = vrot.lane.b32.xlu0 %v1993, 127
        %v2004 = vpop.permute.xlu0 %2003
        %2005 = vrot.lane.b32.xlu0 %v1994, 127
        %v2006 = vpop.permute.xlu0 %2005
        %v2007 = vsel %vm408, %v2000, %v2002
        %v2008 = vsel %vm408, %v2002, %v2004
        %v2009 = vsel %vm408, %v2004, %v2006
        %2013 = vst [vmem:[#allocation3 + $0x78] sm:$0xff] %v2007
        %2014 = vst [vmem:[#allocation3 + $0x80] sm:$0xff] %v2008
        %2015 = vst [vmem:[#allocation3 + $0x88] sm:$0xff] %v2009
        %v2016 = vld [vmem:[#allocation2 + $0x8] sm:$0xff]
        %v2017 = vld [vmem:[#allocation2 + $0x10] sm:$0xff]
        %v2018 = vld [vmem:[#allocation2 + $0x18] sm:$0xff]
        %v2019 = vld [vmem:[#allocation2 + $0x20] sm:$0xff]
        %2024 = vrot.lane.b32.xlu0 %v2016, 111
        %v2025 = vpop.permute.xlu0 %2024
        %2026 = vrot.lane.b32.xlu0 %v2017, 111
        %v2027 = vpop.permute.xlu0 %2026
        %2028 = vrot.lane.b32.xlu0 %v2018, 111
        %v2029 = vpop.permute.xlu0 %2028
        %2030 = vrot.lane.b32.xlu0 %v2019, 111
        %v2031 = vpop.permute.xlu0 %2030
        %v2032 = vsel %vm434, %v2025, %v2027
        %v2033 = vsel %vm434, %v2027, %v2029
        %v2034 = vsel %vm434, %v2029, %v2031
        %2038 = vst [vmem:[#allocation3 + $0x90] sm:$0xff] %v2032
        %2039 = vst [vmem:[#allocation3 + $0x98] sm:$0xff] %v2033
        %2040 = vst [vmem:[#allocation3 + $0xa0] sm:$0xff] %v2034
        %v2041 = vld [vmem:[#allocation2 + $0x8] sm:$0xff]
        %v2042 = vld [vmem:[#allocation2 + $0x10] sm:$0xff]
        %v2043 = vld [vmem:[#allocation2 + $0x18] sm:$0xff]
        %v2044 = vld [vmem:[#allocation2 + $0x20] sm:$0xff]
        %2049 = vrot.lane.b32.xlu0 %v2041, 110
        %v2050 = vpop.permute.xlu0 %2049
        %2051 = vrot.lane.b32.xlu0 %v2042, 110
        %v2052 = vpop.permute.xlu0 %2051
        %2053 = vrot.lane.b32.xlu0 %v2043, 110
        %v2054 = vpop.permute.xlu0 %2053
        %2055 = vrot.lane.b32.xlu0 %v2044, 110
        %v2056 = vpop.permute.xlu0 %2055
        %v2057 = vsel %vm460, %v2050, %v2052
        %v2058 = vsel %vm460, %v2052, %v2054
        %v2059 = vsel %vm460, %v2054, %v2056
        %2063 = vst [vmem:[#allocation3 + $0xa8] sm:$0xff] %v2057
        %2064 = vst [vmem:[#allocation3 + $0xb0] sm:$0xff] %v2058
        %2065 = vst [vmem:[#allocation3 + $0xb8] sm:$0xff] %v2059
        %v2066 = vld [vmem:[#allocation2 + $0x8] sm:$0xff]
        %v2067 = vld [vmem:[#allocation2 + $0x10] sm:$0xff]
        %v2068 = vld [vmem:[#allocation2 + $0x18] sm:$0xff]
        %v2069 = vld [vmem:[#allocation2 + $0x20] sm:$0xff]
        %2074 = vrot.lane.b32.xlu0 %v2066, 109
        %v2075 = vpop.permute.xlu0 %2074
        %2076 = vrot.lane.b32.xlu0 %v2067, 109
        %v2077 = vpop.permute.xlu0 %2076
        %2078 = vrot.lane.b32.xlu0 %v2068, 109
        %v2079 = vpop.permute.xlu0 %2078
        %2080 = vrot.lane.b32.xlu0 %v2069, 109
        %v2081 = vpop.permute.xlu0 %2080
        %v2082 = vsel %vm486, %v2075, %v2077
        %v2083 = vsel %vm486, %v2077, %v2079
        %v2084 = vsel %vm486, %v2079, %v2081
        %2088 = vst [vmem:[#allocation3 + $0xc0] sm:$0xff] %v2082
        %2089 = vst [vmem:[#allocation3 + $0xc8] sm:$0xff] %v2083
        %2090 = vst [vmem:[#allocation3 + $0xd0] sm:$0xff] %v2084
        %s2091 = scalar_lea.vmem [#allocation4], 32
        %v2092 = vld [vmem:[%s2091] sm:$0xff]
        %v2093 = vld [vmem:[#allocation3] sm:$0xff]
        %v2094 = vld [vmem:[#allocation3 + $0x8] sm:$0xff]
        %v2095 = vld [vmem:[#allocation3 + $0x10] sm:$0xff]
        %v2096 = vld [vmem:[#allocation3 + $0x18] sm:$0xff]
        %v2097 = vld [vmem:[#allocation3 + $0x20] sm:$0xff]
        %v2098 = vld [vmem:[#allocation3 + $0x28] sm:$0xff]
        %v2099 = vld [vmem:[#allocation3 + $0x30] sm:$0xff]
        %v2100 = vld [vmem:[#allocation3 + $0x38] sm:$0xff]
        %v2101 = vld [vmem:[#allocation3 + $0x40] sm:$0xff]
        %v2102 = vld [vmem:[#allocation3 + $0x48] sm:$0xff]
        %v2103 = vld [vmem:[#allocation3 + $0x50] sm:$0xff]
        %v2104 = vld [vmem:[#allocation3 + $0x58] sm:$0xff]
        %v2105 = vld [vmem:[#allocation3 + $0x60] sm:$0xff]
        %v2106 = vld [vmem:[#allocation3 + $0x68] sm:$0xff]
        %v2107 = vld [vmem:[#allocation3 + $0x70] sm:$0xff]
        %v2108 = vld [vmem:[#allocation3 + $0x78] sm:$0xff]
        %v2109 = vld [vmem:[#allocation3 + $0x80] sm:$0xff]
        %v2110 = vld [vmem:[#allocation3 + $0x88] sm:$0xff]
        %v2111 = vld [vmem:[#allocation3 + $0x90] sm:$0xff]
        %v2112 = vld [vmem:[#allocation3 + $0x98] sm:$0xff]
        %v2113 = vld [vmem:[#allocation3 + $0xa0] sm:$0xff]
        %v2114 = vld [vmem:[#allocation3 + $0xa8] sm:$0xff]
        %v2115 = vld [vmem:[#allocation3 + $0xb0] sm:$0xff]
        %v2116 = vld [vmem:[#allocation3 + $0xb8] sm:$0xff]
        %v2117 = vld [vmem:[#allocation3 + $0xc0] sm:$0xff]
        %v2118 = vld [vmem:[#allocation3 + $0xc8] sm:$0xff]
        %v2119 = vld [vmem:[#allocation3 + $0xd0] sm:$0xff]
        %s2120 = scalar_lea.vmem %s2, 32
        %v2121 = vld [vmem:[%s2120] sm:$0xff]
        %2123 = vset.pattern.permute.xlu0 0
        %2124 = vperm.xlu0 %2123, %v2121
        %v2125 = vpop.permute.xlu0 %2124
        %v2128 = vsel %vm530, %v2092, 0
        %2130 = vmatprep.subr.mxu0 %v2094
        %2131 = vmatpush1.msra.mxu0 %v2093
        %2132 = vmatprep.subr.mxu0 %v2097
        %2133 = vmatpush1.msra.mxu0 %v2096
        %2134 = vmatprep.subr.mxu0 %v2100
        %2135 = vmatpush1.msra.mxu0 %v2099
        %2136 = vmatprep.subr.mxu0 %v2103
        %2137 = vmatpush1.msra.mxu0 %v2102
        %2138 = vmatprep.subr.mxu0 %v2106
        %2139 = vmatpush1.msra.mxu0 %v2105
        %2140 = vmatprep.subr.mxu0 %v2109
        %2141 = vmatpush1.msra.mxu0 %v2108
        %2142 = vmatprep.subr.mxu0 %v2112
        %2143 = vmatpush1.msra.mxu0 %v2111
        %2144 = vmatprep.subr.mxu0 %v2115
        %2145 = vmatpush1.msra.mxu0 %v2114
        %2146 = vmatprep.subr.mxu0 %v2118
        %2147 = vmatpush1.msra.mxu0 %v2117
        %2148 = vmatprep.subr.mxu0 0.0
        %2149 = vmatpush1.msra.mxu0 0.0
        %2150 = vmatprep.subr.mxu0 0.0
        %2151 = vmatpush1.msra.mxu0 0.0
        %2152 = vmatprep.subr.mxu0 0.0
        %2153 = vmatpush1.msra.mxu0 0.0
        %2154 = vmatprep.subr.mxu0 0.0
        %2155 = vmatpush1.msra.mxu0 0.0
        %2156 = vmatprep.subr.mxu0 0.0
        %2157 = vmatpush1.msra.mxu0 0.0
        %2158 = vmatprep.subr.mxu0 0.0
        %2159 = vmatpush1.msra.mxu0 0.0
        %2160 = vmatprep.subr.mxu0 0.0
        %2161 = vmatpush1.msra.mxu0 0.0
        %2162 = vmatprep.subr.mxu0 0.0
        %2163 = vmatpush1.msra.mxu0 0.0
        %2164 = vmatprep.subr.mxu0 0.0
        %2165 = vmatpush1.msra.mxu0 0.0
        %2166 = vmatprep.subr.mxu0 0.0
        %2167 = vmatpush1.msra.mxu0 0.0
        %2168 = vmatprep.subr.mxu0 0.0
        %2169 = vmatpush1.msra.mxu0 0.0
        %2170 = vmatprep.subr.mxu0 0.0
        %2171 = vmatpush1.msra.mxu0 0.0
        %2172 = vmatprep.subr.mxu0 0.0
        %2173 = vmatpush1.msra.mxu0 0.0
        %2174 = vmatprep.subr.mxu0 0.0
        %2175 = vmatpush1.msra.mxu0 0.0
        %2176 = vmatprep.subr.mxu0 0.0
        %2177 = vmatpush1.msra.mxu0 0.0
        %2178 = vmatprep.subr.mxu0 0.0
        %2179 = vmatpush1.msra.mxu0 0.0
        %2180 = vmatprep.subr.mxu0 0.0
        %2181 = vmatpush1.msra.mxu0 0.0
        %2182 = vmatprep.subr.mxu0 0.0
        %2183 = vmatpush1.msra.mxu0 0.0
        %2184 = vmatprep.subr.mxu0 0.0
        %2185 = vmatpush1.msra.mxu0 0.0
        %2186 = vmatprep.subr.mxu0 0.0
        %2187 = vmatpush1.msra.mxu0 0.0
        %2188 = vmatprep.subr.mxu0 0.0
        %2189 = vmatpush1.msra.mxu0 0.0
        %2190 = vmatprep.subr.mxu0 0.0
        %2191 = vmatpush1.msra.mxu0 0.0
        %2192 = vmatprep.subr.mxu0 0.0
        %2193 = vmatpush1.msra.mxu0 0.0
        %2194 = vmatprep.mubr.f32.mxu0 0.0
        %2195 = vmatmul.mubr.f32.gmra.mrb[0].mxu0 %v2128
        %v2196 = vpop.f32.mrb[0].mxu0
        %v2197 = vadd.f32 %v2125, %v2196
        %v2198 = vpop.f32.mrb[0].mxu0
        %v2199 = vadd.f32 %v2125, %v2198
        %2200 = vdwg.mxu0
        %2201 = vmatprep.subr.mxu0 0.0
        %2202 = vmatpush1.msra.mxu0 %v2095
        %2203 = vmatprep.subr.mxu0 0.0
        %2204 = vmatpush1.msra.mxu0 %v2098
        %2205 = vmatprep.subr.mxu0 0.0
        %2206 = vmatpush1.msra.mxu0 %v2101
        %2207 = vmatprep.subr.mxu0 0.0
        %2208 = vmatpush1.msra.mxu0 %v2104
        %2209 = vmatprep.subr.mxu0 0.0
        %2210 = vmatpush1.msra.mxu0 %v2107
        %2211 = vmatprep.subr.mxu0 0.0
        %2212 = vmatpush1.msra.mxu0 %v2110
        %2213 = vmatprep.subr.mxu0 0.0
        %2214 = vmatpush1.msra.mxu0 %v2113
        %2215 = vmatprep.subr.mxu0 0.0
        %2216 = vmatpush1.msra.mxu0 %v2116
        %2217 = vmatprep.subr.mxu0 0.0
        %2218 = vmatpush1.msra.mxu0 %v2119
        %2219 = vmatprep.subr.mxu0 0.0
        %2220 = vmatpush1.msra.mxu0 0.0
        %2221 = vmatprep.subr.mxu0 0.0
        %2222 = vmatpush1.msra.mxu0 0.0
        %2223 = vmatprep.subr.mxu0 0.0
        %2224 = vmatpush1.msra.mxu0 0.0
        %2225 = vmatprep.subr.mxu0 0.0
        %2226 = vmatpush1.msra.mxu0 0.0
        %2227 = vmatprep.subr.mxu0 0.0
        %2228 = vmatpush1.msra.mxu0 0.0
        %2229 = vmatprep.subr.mxu0 0.0
        %2230 = vmatpush1.msra.mxu0 0.0
        %2231 = vmatprep.subr.mxu0 0.0
        %2232 = vmatpush1.msra.mxu0 0.0
        %2233 = vmatprep.subr.mxu0 0.0
        %2234 = vmatpush1.msra.mxu0 0.0
        %2235 = vmatprep.subr.mxu0 0.0
        %2236 = vmatpush1.msra.mxu0 0.0
        %2237 = vmatprep.subr.mxu0 0.0
        %2238 = vmatpush1.msra.mxu0 0.0
        %2239 = vmatprep.subr.mxu0 0.0
        %2240 = vmatpush1.msra.mxu0 0.0
        %2241 = vmatprep.subr.mxu0 0.0
        %2242 = vmatpush1.msra.mxu0 0.0
        %2243 = vmatprep.subr.mxu0 0.0
        %2244 = vmatpush1.msra.mxu0 0.0
        %2245 = vmatprep.subr.mxu0 0.0
        %2246 = vmatpush1.msra.mxu0 0.0
        %2247 = vmatprep.subr.mxu0 0.0
        %2248 = vmatpush1.msra.mxu0 0.0
        %2249 = vmatprep.subr.mxu0 0.0
        %2250 = vmatpush1.msra.mxu0 0.0
        %2251 = vmatprep.subr.mxu0 0.0
        %2252 = vmatpush1.msra.mxu0 0.0
        %2253 = vmatprep.subr.mxu0 0.0
        %2254 = vmatpush1.msra.mxu0 0.0
        %2255 = vmatprep.subr.mxu0 0.0
        %2256 = vmatpush1.msra.mxu0 0.0
        %2257 = vmatprep.subr.mxu0 0.0
        %2258 = vmatpush1.msra.mxu0 0.0
        %2259 = vmatprep.subr.mxu0 0.0
        %2260 = vmatpush1.msra.mxu0 0.0
        %2261 = vmatprep.subr.mxu0 0.0
        %2262 = vmatpush1.msra.mxu0 0.0
        %2263 = vmatprep.subr.mxu0 0.0
        %2264 = vmatpush1.msra.mxu0 0.0
        %2265 = vmatprep.mubr.f32.mxu0 0.0
        %2266 = vmatmul.mubr.f32.gmra.mrb[0].mxu0 %v2128
        %v2267 = vpop.f32.mrb[0].mxu0
        %v2268 = vadd.f32 %v2125, %v2267
        %v2269 = vpop.f32.mrb[0].mxu0
        %2270 = vdwg.mxu0
        %s2271 = sld [smem:[#allocation10 + $0x2]]
        %vm2272 = vcmp.ge.f32.partialorder %v2197, 0.0
        %vm2273 = vcmp.ge.f32.partialorder %v2199, 0.0
        %vm2274 = vcmp.ge.f32.partialorder %v2268, 0.0
        %v2275 = vstv %s2271
        %v2276 = vmul.f32 %v2275, %v2197
        %v2277 = vmul.f32 %v2275, %v2199
        %v2278 = vmul.f32 %v2275, %v2268
        %v2279 = vsel %vm2272, %v2197, %v2276
        %v2280 = vsel %vm2273, %v2199, %v2277
        %v2281 = vsel %vm2274, %v2268, %v2278
        %v2282 = vmul.f32 %v2279, %v265
        %v2283 = vmul.f32 %v2280, %v266
        %v2284 = vmul.f32 %v2281, %v267
        %2285 = vst [vmem:[#allocation2 + $0x8] sm:$0xff] %v2282
        %2286 = vst [vmem:[#allocation2 + $0x10] sm:$0xff] %v2283
        %2287 = vst [vmem:[#allocation2 + $0x18] sm:$0xff] %v2284
        %v2288 = vld [vmem:[#allocation2] sm:$0xff]
        %v2289 = vld [vmem:[#allocation2 + $0x8] sm:$0xff]
        %v2290 = vld [vmem:[#allocation2 + $0x10] sm:$0xff]
        %v2291 = vld [vmem:[#allocation2 + $0x18] sm:$0xff]
        %2296 = vrot.lane.b32.xlu0 %v2288, 19
        %v2297 = vpop.permute.xlu0 %2296
        %2298 = vrot.lane.b32.xlu0 %v2289, 19
        %v2299 = vpop.permute.xlu0 %2298
        %2300 = vrot.lane.b32.xlu0 %v2290, 19
        %v2301 = vpop.permute.xlu0 %2300
        %2302 = vrot.lane.b32.xlu0 %v2291, 19
        %v2303 = vpop.permute.xlu0 %2302
        %v2304 = vsel %vm298, %v2297, %v2299
        %v2305 = vsel %vm298, %v2299, %v2301
        %v2306 = vsel %vm298, %v2301, %v2303
        %2310 = vst [vmem:[#allocation3] sm:$0xff] %v2304
        %2311 = vst [vmem:[#allocation3 + $0x8] sm:$0xff] %v2305
        %2312 = vst [vmem:[#allocation3 + $0x10] sm:$0xff] %v2306
        %v2313 = vld [vmem:[#allocation2] sm:$0xff]
        %v2314 = vld [vmem:[#allocation2 + $0x8] sm:$0xff]
        %v2315 = vld [vmem:[#allocation2 + $0x10] sm:$0xff]
        %v2316 = vld [vmem:[#allocation2 + $0x18] sm:$0xff]
        %2321 = vrot.lane.b32.xlu0 %v2313, 18
        %v2322 = vpop.permute.xlu0 %2321
        %2323 = vrot.lane.b32.xlu0 %v2314, 18
        %v2324 = vpop.permute.xlu0 %2323
        %2325 = vrot.lane.b32.xlu0 %v2315, 18
        %v2326 = vpop.permute.xlu0 %2325
        %2327 = vrot.lane.b32.xlu0 %v2316, 18
        %v2328 = vpop.permute.xlu0 %2327
        %v2329 = vsel %vm324, %v2322, %v2324
        %v2330 = vsel %vm324, %v2324, %v2326
        %v2331 = vsel %vm324, %v2326, %v2328
        %2335 = vst [vmem:[#allocation3 + $0x18] sm:$0xff] %v2329
        %2336 = vst [vmem:[#allocation3 + $0x20] sm:$0xff] %v2330
        %2337 = vst [vmem:[#allocation3 + $0x28] sm:$0xff] %v2331
        %v2338 = vld [vmem:[#allocation2] sm:$0xff]
        %v2339 = vld [vmem:[#allocation2 + $0x8] sm:$0xff]
        %v2340 = vld [vmem:[#allocation2 + $0x10] sm:$0xff]
        %v2341 = vld [vmem:[#allocation2 + $0x18] sm:$0xff]
        %2346 = vrot.lane.b32.xlu0 %v2338, 17
        %v2347 = vpop.permute.xlu0 %2346
        %2348 = vrot.lane.b32.xlu0 %v2339, 17
        %v2349 = vpop.permute.xlu0 %2348
        %2350 = vrot.lane.b32.xlu0 %v2340, 17
        %v2351 = vpop.permute.xlu0 %2350
        %2352 = vrot.lane.b32.xlu0 %v2341, 17
        %v2353 = vpop.permute.xlu0 %2352
        %v2354 = vsel %vm350, %v2347, %v2349
        %v2355 = vsel %vm350, %v2349, %v2351
        %v2356 = vsel %vm350, %v2351, %v2353
        %2360 = vst [vmem:[#allocation3 + $0x30] sm:$0xff] %v2354
        %2361 = vst [vmem:[#allocation3 + $0x38] sm:$0xff] %v2355
        %2362 = vst [vmem:[#allocation3 + $0x40] sm:$0xff] %v2356
        %v2363 = vld [vmem:[#allocation2] sm:$0xff]
        %v2364 = vld [vmem:[#allocation2 + $0x8] sm:$0xff]
        %v2365 = vld [vmem:[#allocation2 + $0x10] sm:$0xff]
        %v2366 = vld [vmem:[#allocation2 + $0x18] sm:$0xff]
        %2371 = vrot.lane.b32.xlu0 %v2363, 1
        %v2372 = vpop.permute.xlu0 %2371
        %2373 = vrot.lane.b32.xlu0 %v2364, 1
        %v2374 = vpop.permute.xlu0 %2373
        %2375 = vrot.lane.b32.xlu0 %v2365, 1
        %v2376 = vpop.permute.xlu0 %2375
        %2377 = vrot.lane.b32.xlu0 %v2366, 1
        %v2378 = vpop.permute.xlu0 %2377
        %v2379 = vsel %vm376, %v2372, %v2374
        %v2380 = vsel %vm376, %v2374, %v2376
        %v2381 = vsel %vm376, %v2376, %v2378
        %2385 = vst [vmem:[#allocation3 + $0x48] sm:$0xff] %v2379
        %2386 = vst [vmem:[#allocation3 + $0x50] sm:$0xff] %v2380
        %2387 = vst [vmem:[#allocation3 + $0x58] sm:$0xff] %v2381
        %v2388 = vld [vmem:[#allocation2 + $0x8] sm:$0xff]
        %v2389 = vld [vmem:[#allocation2 + $0x10] sm:$0xff]
        %v2390 = vld [vmem:[#allocation2 + $0x18] sm:$0xff]
        %2391 = vst [vmem:[#allocation3 + $0x60] sm:$0xff] %v2388
        %2392 = vst [vmem:[#allocation3 + $0x68] sm:$0xff] %v2389
        %2393 = vst [vmem:[#allocation3 + $0x70] sm:$0xff] %v2390
        %v2394 = vld [vmem:[#allocation2 + $0x8] sm:$0xff]
        %v2395 = vld [vmem:[#allocation2 + $0x10] sm:$0xff]
        %v2396 = vld [vmem:[#allocation2 + $0x18] sm:$0xff]
        %v2397 = vld [vmem:[#allocation2 + $0x20] sm:$0xff]
        %2402 = vrot.lane.b32.xlu0 %v2394, 127
        %v2403 = vpop.permute.xlu0 %2402
        %2404 = vrot.lane.b32.xlu0 %v2395, 127
        %v2405 = vpop.permute.xlu0 %2404
        %2406 = vrot.lane.b32.xlu0 %v2396, 127
        %v2407 = vpop.permute.xlu0 %2406
        %2408 = vrot.lane.b32.xlu0 %v2397, 127
        %v2409 = vpop.permute.xlu0 %2408
        %v2410 = vsel %vm408, %v2403, %v2405
        %v2411 = vsel %vm408, %v2405, %v2407
        %v2412 = vsel %vm408, %v2407, %v2409
        %2416 = vst [vmem:[#allocation3 + $0x78] sm:$0xff] %v2410
        %2417 = vst [vmem:[#allocation3 + $0x80] sm:$0xff] %v2411
        %2418 = vst [vmem:[#allocation3 + $0x88] sm:$0xff] %v2412
        %v2419 = vld [vmem:[#allocation2 + $0x8] sm:$0xff]
        %v2420 = vld [vmem:[#allocation2 + $0x10] sm:$0xff]
        %v2421 = vld [vmem:[#allocation2 + $0x18] sm:$0xff]
        %v2422 = vld [vmem:[#allocation2 + $0x20] sm:$0xff]
        %2427 = vrot.lane.b32.xlu0 %v2419, 111
        %v2428 = vpop.permute.xlu0 %2427
        %2429 = vrot.lane.b32.xlu0 %v2420, 111
        %v2430 = vpop.permute.xlu0 %2429
        %2431 = vrot.lane.b32.xlu0 %v2421, 111
        %v2432 = vpop.permute.xlu0 %2431
        %2433 = vrot.lane.b32.xlu0 %v2422, 111
        %v2434 = vpop.permute.xlu0 %2433
        %v2435 = vsel %vm434, %v2428, %v2430
        %v2436 = vsel %vm434, %v2430, %v2432
        %v2437 = vsel %vm434, %v2432, %v2434
        %2441 = vst [vmem:[#allocation3 + $0x90] sm:$0xff] %v2435
        %2442 = vst [vmem:[#allocation3 + $0x98] sm:$0xff] %v2436
        %2443 = vst [vmem:[#allocation3 + $0xa0] sm:$0xff] %v2437
        %v2444 = vld [vmem:[#allocation2 + $0x8] sm:$0xff]
        %v2445 = vld [vmem:[#allocation2 + $0x10] sm:$0xff]
        %v2446 = vld [vmem:[#allocation2 + $0x18] sm:$0xff]
        %v2447 = vld [vmem:[#allocation2 + $0x20] sm:$0xff]
        %2452 = vrot.lane.b32.xlu0 %v2444, 110
        %v2453 = vpop.permute.xlu0 %2452
        %2454 = vrot.lane.b32.xlu0 %v2445, 110
        %v2455 = vpop.permute.xlu0 %2454
        %2456 = vrot.lane.b32.xlu0 %v2446, 110
        %v2457 = vpop.permute.xlu0 %2456
        %2458 = vrot.lane.b32.xlu0 %v2447, 110
        %v2459 = vpop.permute.xlu0 %2458
        %v2460 = vsel %vm460, %v2453, %v2455
        %v2461 = vsel %vm460, %v2455, %v2457
        %v2462 = vsel %vm460, %v2457, %v2459
        %2466 = vst [vmem:[#allocation3 + $0xa8] sm:$0xff] %v2460
        %2467 = vst [vmem:[#allocation3 + $0xb0] sm:$0xff] %v2461
        %2468 = vst [vmem:[#allocation3 + $0xb8] sm:$0xff] %v2462
        %v2469 = vld [vmem:[#allocation2 + $0x8] sm:$0xff]
        %v2470 = vld [vmem:[#allocation2 + $0x10] sm:$0xff]
        %v2471 = vld [vmem:[#allocation2 + $0x18] sm:$0xff]
        %v2472 = vld [vmem:[#allocation2 + $0x20] sm:$0xff]
        %2477 = vrot.lane.b32.xlu0 %v2469, 109
        %v2478 = vpop.permute.xlu0 %2477
        %2479 = vrot.lane.b32.xlu0 %v2470, 109
        %v2480 = vpop.permute.xlu0 %2479
        %2481 = vrot.lane.b32.xlu0 %v2471, 109
        %v2482 = vpop.permute.xlu0 %2481
        %2483 = vrot.lane.b32.xlu0 %v2472, 109
        %v2484 = vpop.permute.xlu0 %2483
        %v2485 = vsel %vm486, %v2478, %v2480
        %v2486 = vsel %vm486, %v2480, %v2482
        %v2487 = vsel %vm486, %v2482, %v2484
        %2491 = vst [vmem:[#allocation3 + $0xc0] sm:$0xff] %v2485
        %2492 = vst [vmem:[#allocation3 + $0xc8] sm:$0xff] %v2486
        %2493 = vst [vmem:[#allocation3 + $0xd0] sm:$0xff] %v2487
        %s2494 = scalar_lea.vmem [#allocation4], 40
        %v2495 = vld [vmem:[%s2494] sm:$0xff]
        %v2496 = vld [vmem:[#allocation3] sm:$0xff]
        %v2497 = vld [vmem:[#allocation3 + $0x8] sm:$0xff]
        %v2498 = vld [vmem:[#allocation3 + $0x10] sm:$0xff]
        %v2499 = vld [vmem:[#allocation3 + $0x18] sm:$0xff]
        %v2500 = vld [vmem:[#allocation3 + $0x20] sm:$0xff]
        %v2501 = vld [vmem:[#allocation3 + $0x28] sm:$0xff]
        %v2502 = vld [vmem:[#allocation3 + $0x30] sm:$0xff]
        %v2503 = vld [vmem:[#allocation3 + $0x38] sm:$0xff]
        %v2504 = vld [vmem:[#allocation3 + $0x40] sm:$0xff]
        %v2505 = vld [vmem:[#allocation3 + $0x48] sm:$0xff]
        %v2506 = vld [vmem:[#allocation3 + $0x50] sm:$0xff]
        %v2507 = vld [vmem:[#allocation3 + $0x58] sm:$0xff]
        %v2508 = vld [vmem:[#allocation3 + $0x60] sm:$0xff]
        %v2509 = vld [vmem:[#allocation3 + $0x68] sm:$0xff]
        %v2510 = vld [vmem:[#allocation3 + $0x70] sm:$0xff]
        %v2511 = vld [vmem:[#allocation3 + $0x78] sm:$0xff]
        %v2512 = vld [vmem:[#allocation3 + $0x80] sm:$0xff]
        %v2513 = vld [vmem:[#allocation3 + $0x88] sm:$0xff]
        %v2514 = vld [vmem:[#allocation3 + $0x90] sm:$0xff]
        %v2515 = vld [vmem:[#allocation3 + $0x98] sm:$0xff]
        %v2516 = vld [vmem:[#allocation3 + $0xa0] sm:$0xff]
        %v2517 = vld [vmem:[#allocation3 + $0xa8] sm:$0xff]
        %v2518 = vld [vmem:[#allocation3 + $0xb0] sm:$0xff]
        %v2519 = vld [vmem:[#allocation3 + $0xb8] sm:$0xff]
        %v2520 = vld [vmem:[#allocation3 + $0xc0] sm:$0xff]
        %v2521 = vld [vmem:[#allocation3 + $0xc8] sm:$0xff]
        %v2522 = vld [vmem:[#allocation3 + $0xd0] sm:$0xff]
        %s2523 = scalar_lea.vmem %s2, 40
        %v2524 = vld [vmem:[%s2523] sm:$0xff]
        %2526 = vset.pattern.permute.xlu0 0
        %2527 = vperm.xlu0 %2526, %v2524
        %v2528 = vpop.permute.xlu0 %2527
        %v2531 = vsel %vm530, %v2495, 0
        %2533 = vmatprep.subr.mxu0 %v2497
        %2534 = vmatpush1.msra.mxu0 %v2496
        %2535 = vmatprep.subr.mxu0 %v2500
        %2536 = vmatpush1.msra.mxu0 %v2499
        %2537 = vmatprep.subr.mxu0 %v2503
        %2538 = vmatpush1.msra.mxu0 %v2502
        %2539 = vmatprep.subr.mxu0 %v2506
        %2540 = vmatpush1.msra.mxu0 %v2505
        %2541 = vmatprep.subr.mxu0 %v2509
        %2542 = vmatpush1.msra.mxu0 %v2508
        %2543 = vmatprep.subr.mxu0 %v2512
        %2544 = vmatpush1.msra.mxu0 %v2511
        %2545 = vmatprep.subr.mxu0 %v2515
        %2546 = vmatpush1.msra.mxu0 %v2514
        %2547 = vmatprep.subr.mxu0 %v2518
        %2548 = vmatpush1.msra.mxu0 %v2517
        %2549 = vmatprep.subr.mxu0 %v2521
        %2550 = vmatpush1.msra.mxu0 %v2520
        %2551 = vmatprep.subr.mxu0 0.0
        %2552 = vmatpush1.msra.mxu0 0.0
        %2553 = vmatprep.subr.mxu0 0.0
        %2554 = vmatpush1.msra.mxu0 0.0
        %2555 = vmatprep.subr.mxu0 0.0
        %2556 = vmatpush1.msra.mxu0 0.0
        %2557 = vmatprep.subr.mxu0 0.0
        %2558 = vmatpush1.msra.mxu0 0.0
        %2559 = vmatprep.subr.mxu0 0.0
        %2560 = vmatpush1.msra.mxu0 0.0
        %2561 = vmatprep.subr.mxu0 0.0
        %2562 = vmatpush1.msra.mxu0 0.0
        %2563 = vmatprep.subr.mxu0 0.0
        %2564 = vmatpush1.msra.mxu0 0.0
        %2565 = vmatprep.subr.mxu0 0.0
        %2566 = vmatpush1.msra.mxu0 0.0
        %2567 = vmatprep.subr.mxu0 0.0
        %2568 = vmatpush1.msra.mxu0 0.0
        %2569 = vmatprep.subr.mxu0 0.0
        %2570 = vmatpush1.msra.mxu0 0.0
        %2571 = vmatprep.subr.mxu0 0.0
        %2572 = vmatpush1.msra.mxu0 0.0
        %2573 = vmatprep.subr.mxu0 0.0
        %2574 = vmatpush1.msra.mxu0 0.0
        %2575 = vmatprep.subr.mxu0 0.0
        %2576 = vmatpush1.msra.mxu0 0.0
        %2577 = vmatprep.subr.mxu0 0.0
        %2578 = vmatpush1.msra.mxu0 0.0
        %2579 = vmatprep.subr.mxu0 0.0
        %2580 = vmatpush1.msra.mxu0 0.0
        %2581 = vmatprep.subr.mxu0 0.0
        %2582 = vmatpush1.msra.mxu0 0.0
        %2583 = vmatprep.subr.mxu0 0.0
        %2584 = vmatpush1.msra.mxu0 0.0
        %2585 = vmatprep.subr.mxu0 0.0
        %2586 = vmatpush1.msra.mxu0 0.0
        %2587 = vmatprep.subr.mxu0 0.0
        %2588 = vmatpush1.msra.mxu0 0.0
        %2589 = vmatprep.subr.mxu0 0.0
        %2590 = vmatpush1.msra.mxu0 0.0
        %2591 = vmatprep.subr.mxu0 0.0
        %2592 = vmatpush1.msra.mxu0 0.0
        %2593 = vmatprep.subr.mxu0 0.0
        %2594 = vmatpush1.msra.mxu0 0.0
        %2595 = vmatprep.subr.mxu0 0.0
        %2596 = vmatpush1.msra.mxu0 0.0
        %2597 = vmatprep.mubr.f32.mxu0 0.0
        %2598 = vmatmul.mubr.f32.gmra.mrb[0].mxu0 %v2531
        %v2599 = vpop.f32.mrb[0].mxu0
        %v2600 = vadd.f32 %v2528, %v2599
        %v2601 = vpop.f32.mrb[0].mxu0
        %v2602 = vadd.f32 %v2528, %v2601
        %2603 = vdwg.mxu0
        %2604 = vmatprep.subr.mxu0 0.0
        %2605 = vmatpush1.msra.mxu0 %v2498
        %2606 = vmatprep.subr.mxu0 0.0
        %2607 = vmatpush1.msra.mxu0 %v2501
        %2608 = vmatprep.subr.mxu0 0.0
        %2609 = vmatpush1.msra.mxu0 %v2504
        %2610 = vmatprep.subr.mxu0 0.0
        %2611 = vmatpush1.msra.mxu0 %v2507
        %2612 = vmatprep.subr.mxu0 0.0
        %2613 = vmatpush1.msra.mxu0 %v2510
        %2614 = vmatprep.subr.mxu0 0.0
        %2615 = vmatpush1.msra.mxu0 %v2513
        %2616 = vmatprep.subr.mxu0 0.0
        %2617 = vmatpush1.msra.mxu0 %v2516
        %2618 = vmatprep.subr.mxu0 0.0
        %2619 = vmatpush1.msra.mxu0 %v2519
        %2620 = vmatprep.subr.mxu0 0.0
        %2621 = vmatpush1.msra.mxu0 %v2522
        %2622 = vmatprep.subr.mxu0 0.0
        %2623 = vmatpush1.msra.mxu0 0.0
        %2624 = vmatprep.subr.mxu0 0.0
        %2625 = vmatpush1.msra.mxu0 0.0
        %2626 = vmatprep.subr.mxu0 0.0
        %2627 = vmatpush1.msra.mxu0 0.0
        %2628 = vmatprep.subr.mxu0 0.0
        %2629 = vmatpush1.msra.mxu0 0.0
        %2630 = vmatprep.subr.mxu0 0.0
        %2631 = vmatpush1.msra.mxu0 0.0
        %2632 = vmatprep.subr.mxu0 0.0
        %2633 = vmatpush1.msra.mxu0 0.0
        %2634 = vmatprep.subr.mxu0 0.0
        %2635 = vmatpush1.msra.mxu0 0.0
        %2636 = vmatprep.subr.mxu0 0.0
        %2637 = vmatpush1.msra.mxu0 0.0
        %2638 = vmatprep.subr.mxu0 0.0
        %2639 = vmatpush1.msra.mxu0 0.0
        %2640 = vmatprep.subr.mxu0 0.0
        %2641 = vmatpush1.msra.mxu0 0.0
        %2642 = vmatprep.subr.mxu0 0.0
        %2643 = vmatpush1.msra.mxu0 0.0
        %2644 = vmatprep.subr.mxu0 0.0
        %2645 = vmatpush1.msra.mxu0 0.0
        %2646 = vmatprep.subr.mxu0 0.0
        %2647 = vmatpush1.msra.mxu0 0.0
        %2648 = vmatprep.subr.mxu0 0.0
        %2649 = vmatpush1.msra.mxu0 0.0
        %2650 = vmatprep.subr.mxu0 0.0
        %2651 = vmatpush1.msra.mxu0 0.0
        %2652 = vmatprep.subr.mxu0 0.0
        %2653 = vmatpush1.msra.mxu0 0.0
        %2654 = vmatprep.subr.mxu0 0.0
        %2655 = vmatpush1.msra.mxu0 0.0
        %2656 = vmatprep.subr.mxu0 0.0
        %2657 = vmatpush1.msra.mxu0 0.0
        %2658 = vmatprep.subr.mxu0 0.0
        %2659 = vmatpush1.msra.mxu0 0.0
        %2660 = vmatprep.subr.mxu0 0.0
        %2661 = vmatpush1.msra.mxu0 0.0
        %2662 = vmatprep.subr.mxu0 0.0
        %2663 = vmatpush1.msra.mxu0 0.0
        %2664 = vmatprep.subr.mxu0 0.0
        %2665 = vmatpush1.msra.mxu0 0.0
        %2666 = vmatprep.subr.mxu0 0.0
        %2667 = vmatpush1.msra.mxu0 0.0
        %2668 = vmatprep.mubr.f32.mxu0 0.0
        %2669 = vmatmul.mubr.f32.gmra.mrb[0].mxu0 %v2531
        %v2670 = vpop.f32.mrb[0].mxu0
        %v2671 = vadd.f32 %v2528, %v2670
        %v2672 = vpop.f32.mrb[0].mxu0
        %2673 = vdwg.mxu0
        %v2674 = vadd.f32 %v1876, %v2600
        %v2675 = vadd.f32 %v1877, %v2602
        %v2676 = vadd.f32 %v1878, %v2671
        %v2677 = vadd.f32 %v268, %v2674
        %v2678 = vadd.f32 %v269, %v2675
        %v2679 = vadd.f32 %v270, %v2676
        %2680 = vst [vmem:[%s259] sm:$0xff] %v2677
        %2681 = vst [vmem:[%s259 + $0x8] sm:$0xff] %v2678
        %2682 = vst [vmem:[%s259 + $0x10] sm:$0xff] %v2679
        %s2683 = sand.u32 %s140, 1
        %s2684 = scalar_lea.sflag [#allocation6], %s2683
        %s2685 = sand.u32 %s140, 1
        %s2686 = smul.addr %s2685, 24
        %s2687 = scalar_lea.vmem [#allocation11], %s2686
        // Predicated region
        $region53: #{tpu_custom_call.1} parent=39 // pred_check
          %p2688 = pneg %p150
        $region54: #{tpu_custom_call.1} parent=39 // pred_check_branch
          %2690 = sbr.rel (%p2688) target = $region56
        $region55: #{tpu_custom_call.1} parent=39 // pred_region
          %s2692 = ssub.s32 384, 384
          %2693 = vsyncadd %s2684, %s2692
          %s2694 = smul.addr %s22, 3
          %s2695 = smul.addr %s2694, 128
          %s2696 = scalar_lea.hbm %s5, %s2695
          %s2698 = sshll.u32 %s2687, 4
          %s2699 = int_to_ptr.vmem [resolvable:$true] %s2698
          %2701 = dma.vmem_to_hbm [thread:$0]  %s2699, 384, %s2696, %s2684
        $region56: #{tpu_custom_call.1} parent=39 // pred_fallthru
          _
      $region40: #{tpu_custom_call.1} parent=5 // pred_fallthru
        _
      %p2702 = scmp.le.s32.totalorder 2, %s17
      // Predicated region
      $region57: #{tpu_custom_call.1} parent=5 // pred_check
        %p2703 = pneg %p2702
      $region58: #{tpu_custom_call.1} parent=5 // pred_check_branch
        %2705 = sbr.rel (%p2703) target = $region60
      $region59: #{tpu_custom_call.1} parent=5 // pred_region
        %s2706 = ssub.s32 %s17, 2
        // Predicated region
        $region61: #{tpu_custom_call.1} parent=59 // pred_check
          %p2707 = pneg %p156
        $region62: #{tpu_custom_call.1} parent=59 // pred_check_branch
          %2709 = sbr.rel (%p2707) target = $region64
        $region63: #{tpu_custom_call.1} parent=59 // pred_region
          %s2710 = sand.u32 %s141, 1
          %s2711 = scalar_lea.sflag [#allocation6], %s2710
          %s2712 = sand.u32 %s141, 1
          %s2713 = smul.addr %s2712, 24
          %s2714 = scalar_lea.vmem [#allocation11], %s2713
          %2715 = dma.done %s2711, 384
        $region64: #{tpu_custom_call.1} parent=59 // pred_fallthru
          _
      $region60: #{tpu_custom_call.1} parent=5 // pred_fallthru
        _
    $region6: #{tpu_custom_call.1} parent=1 // loop_footer
      %s21 = sadd.s32 1, %s17
    $region7: #{tpu_custom_call.1} parent=1 // loop_footer_branch
      %16 = sbr.rel target = $region3
    $region8: #{tpu_custom_call.1} parent=1 // loop_exit
      _
    %2716 = vsyncpa [#allocation5], 1
    %s2717 = scalar_lea.sflag [#allocation5], 1
    %2718 = vsyncpa %s2717, 1
    %2719 = vsyncpa [#allocation9], 1
    %2720 = vsyncpa [#allocation6], 1
    %s2721 = scalar_lea.sflag [#allocation6], 1
    %2722 = vsyncpa %s2721, 1
    %2723 = vsyncpa [#allocation7], 1
    %s2724 = scalar_lea.sflag [#allocation7], 1
    %2725 = vsyncpa %s2724, 1

</llo_original>
